<compile_context>
chip_gen: v5e
topology: v5e:2x2
jax: 0.10.0
libtpu: 0.0.40
codegen_flags: <defaults>
</compile_context>

<pallas_src>
import functools

import jax
import jax.numpy as jnp
from jax import lax
from jax.experimental import pallas as pl
from jax.experimental.pallas import tpu as pltpu

# ----------------------------- config (small) -------------------------------
B = 2            # batch
SRC_LEN = 10     # source sequence length
TRG_LEN = 8      # target sequence length
H = 32           # hidden == embedding dim
SRC_VOCAB = 20
TRG_VOCAB = 16
N_ENC_LAYERS = 2
N_DEC_LAYERS = 1  # != N_ENC_LAYERS -> exercises the hidden[:n_dec_layers] slice
TEACHER_FORCING_RATIO = 0.5


# ----------------------------- fused Pallas kernel ---------------------------
def seq2seq_kernel(tf_ref,        # (T,)      int32 SMEM  per-step teacher-forcing flag
                   src_emb_ref,   # (S,B,H)   f32   VMEM  embedded source (time-major)
                   trg_emb_ref,   # (T,B,H)   f32   VMEM  embedded teacher tokens
                   enc_w_ref,     # (Le,2H,H) f32         [W_ih^T ; W_hh^T] per layer
                   enc_b_ref,     # (Le,1,H)  f32         b_ih + b_hh
                   dec_w_ref,     # (Ld,2H,H) f32
                   dec_b_ref,     # (Ld,1,H)  f32
                   wfc_ref,       # (H,Vp)    f32         fc weight, zero-padded lanes
                   bfc_ref,       # (1,Vp)    f32
                   dec_emb_ref,   # (V,H)     f32         decoder embedding table
                   out_ref,       # (T,B,Vp)  f32         logits; row 0 stays zero
                   xh_ref,        # (B,2H)    f32   VMEM scratch: [x | h] assembly
                   *, n_enc_layers, n_dec_layers, src_len, trg_len,
                   hidden, vocab):
    f32 = jnp.float32
    b = src_emb_ref.shape[1]
    v_pad = out_ref.shape[-1]

    def rnn_stack(x, hs, w_ref, b_ref, n_layers):
        """One timestep of an n_layers tanh-RNN stack.
        h_new = tanh([x | h_prev] @ [W_ih^T ; W_hh^T] + (b_ih + b_hh))."""
        new_hs = []
        for l in range(n_layers):                      # static, tiny
            xh_ref[:, :hidden] = x
            xh_ref[:, hidden:2 * hidden] = hs[l]
            h_new = jnp.tanh(
                jnp.dot(xh_ref[...], w_ref[l], preferred_element_type=f32)
                + b_ref[l])                            # (1,H) broadcast
            new_hs.append(h_new)
            x = h_new
        return x, new_hs

    # ------------- encoder: serial recurrence over source, fully unrolled ----
    hs = [jnp.zeros((b, hidden), f32) for _ in range(n_enc_layers)]
    for s in range(src_len):
        _, hs = rnn_stack(src_emb_ref[s], hs, enc_w_ref, enc_b_ref, n_enc_layers)

    hs = hs[:n_dec_layers]                             # hidden[:n_dec_layers]

    # outputs[:, 0] stays zero (matches torch.zeros init; loop never writes it)
    out_ref[0] = jnp.zeros((b, v_pad), f32)

    # iotas for masked argmax + one-hot gather (hoisted out of the t loop)
    lane = lax.broadcasted_iota(jnp.int32, (b, v_pad), 1).astype(f32)
    voc = lax.broadcasted_iota(jnp.int32, (b, vocab), 1).astype(f32)
    valid = lane < float(vocab)

    # ------------- decoder: serial recurrence with argmax / TF feedback ------
    x = trg_emb_ref[0]                                 # embedding of trg[:, 0]
    for t in range(1, trg_len):
        top, hs = rnn_stack(x, hs, dec_w_ref, dec_b_ref, n_dec_layers)
        logits = (jnp.dot(top, wfc_ref[...], preferred_element_type=f32)
                  + bfc_ref[...])                      # (B, Vp); padded lanes = 0
        out_ref[t] = logits                            # lane-dense store

        # argmax over the real vocab (lowest index on ties, like torch/jnp)
        masked = jnp.where(valid, logits, -1e30)
        m = jnp.max(masked, axis=-1, keepdims=True)
        idx = jnp.min(jnp.where(masked == m, lane, float(v_pad)),
                      axis=-1, keepdims=True)          # (B,1) float top1 index

        # embedding gather of top1 via one-hot matmul (stays in vregs)
        onehot = (voc == idx).astype(f32)              # (B, V)
        x_model = jnp.dot(onehot, dec_emb_ref[...],
                          preferred_element_type=f32)  # (B, H)

        # per-step teacher-forcing select (scalar flag blends the two embeddings)
        tf = tf_ref[t].astype(f32)                     # 0.0 or 1.0
        x = tf * trg_emb_ref[t] + (1.0 - tf) * x_model


# ----------------------------- kernel wrapper ---------------------------------
def seq2seq_pallas(params, src, trg, tf_flags):
    """Mirrors Seq2Seq.forward. tf_flags[t] is the per-step teacher-forcing bool
    (stands in for torch.rand(1).item() < teacher_forcing_ratio)."""
    Bb, T = trg.shape
    S = src.shape[1]
    Hh = params["enc_emb"].shape[1]
    V = params["wfcT"].shape[1]
    L_enc = params["enc_wihT"].shape[0]
    L_dec = params["dec_wihT"].shape[0]
    Vp = max(128, ((V + 127) // 128) * 128)            # lane-dense padded vocab

    # one-time, data-independent embedding gathers; time-major / feature-last
    src_emb = jnp.transpose(params["enc_emb"][src], (1, 0, 2)).astype(jnp.float32)
    trg_emb = jnp.transpose(params["dec_emb"][trg], (1, 0, 2)).astype(jnp.float32)

    # fuse ih/hh matmuls: per layer [W_ih^T ; W_hh^T]  -> one (B,2H)x(2H,H) dot
    enc_w = jnp.concatenate([params["enc_wihT"], params["enc_whhT"]], axis=1)
    dec_w = jnp.concatenate([params["dec_wihT"], params["dec_whhT"]], axis=1)

    # lane-dense fc: pad the vocab dimension out to a full 128-lane tile
    wfc = jnp.zeros((Hh, Vp), jnp.float32).at[:, :V].set(params["wfcT"])
    bfc = jnp.zeros((1, Vp), jnp.float32).at[:, :V].set(params["bfc"])

    kernel = functools.partial(
        seq2seq_kernel, n_enc_layers=L_enc, n_dec_layers=L_dec,
        src_len=S, trg_len=T, hidden=Hh, vocab=V)

    vmem = pl.BlockSpec(memory_space=pltpu.MemorySpace.VMEM)
    smem = pl.BlockSpec(memory_space=pltpu.MemorySpace.SMEM)

    out_tm = pl.pallas_call(
        kernel,
        out_shape=jax.ShapeDtypeStruct((T, Bb, Vp), jnp.float32),
        in_specs=[smem,                 # tf_flags (int32)
                  vmem, vmem,           # src_emb, trg_emb
                  vmem, vmem,           # enc_w, enc_b
                  vmem, vmem,           # dec_w, dec_b
                  vmem, vmem,           # wfc, bfc
                  vmem],                # dec_emb
        out_specs=vmem,
        scratch_shapes=[pltpu.VMEM((Bb, 2 * Hh), jnp.float32)],
    )(tf_flags.astype(jnp.int32), src_emb, trg_emb, enc_w, params["enc_b"],
      dec_w, params["dec_b"], wfc, bfc, params["dec_emb"])

    # (T, B, Vp) -> (B, T, V); drop the lane padding
    return jnp.transpose(out_tm, (1, 0, 2))[:, :, :V]


seq2seq_forward = jax.jit(seq2seq_pallas)


# ----------------------------- pure-JAX reference -----------------------------
def seq2seq_reference(params, src, trg, tf_flags):
    Bb, T = trg.shape
    V = params["wfcT"].shape[1]
    src_emb = params["enc_emb"][src]
    h = jnp.zeros((N_ENC_LAYERS, Bb, H), jnp.float32)
    for s in range(src_emb.shape[1]):
        x = src_emb[:, s]
        new_h = []
        for l in range(N_ENC_LAYERS):
            hn = jnp.tanh(x @ params["enc_wihT"][l] + h[l] @ params["enc_whhT"][l]
                          + params["enc_b"][l])
            new_h.append(hn)
            x = hn
        h = jnp.stack(new_h)
    hidden = h[:N_DEC_LAYERS]
    outputs = jnp.zeros((Bb, T, V), jnp.float32)
    inp = trg[:, 0]
    for t in range(1, T):
        x = params["dec_emb"][inp]
        new_h = []
        for l in range(N_DEC_LAYERS):
            hn = jnp.tanh(x @ params["dec_wihT"][l] + hidden[l] @ params["dec_whhT"][l]
                          + params["dec_b"][l])
            new_h.append(hn)
            x = hn
        hidden = jnp.stack(new_h)
        logits = x @ params["wfcT"] + params["bfc"]
        outputs = outputs.at[:, t].set(logits)
        top1 = jnp.argmax(logits, axis=-1)
        inp = jnp.where(tf_flags[t], trg[:, t], top1)
    return outputs


# ----------------------------- params ----------------------------------------
def init_params(key):
    ks = jax.random.split(key, 10)
    scale = 0.1

    def rnd(k, shape):
        return (scale * jax.random.normal(k, shape)).astype(jnp.float32)

    # weights stored pre-transposed: wihT[l] = W_ih[l].T  (in, out) so kernels
    # compute x @ wihT.  Biases b = b_ih + b_hh, reshaped to (L, 1, H).
    return {
        "enc_emb": rnd(ks[0], (SRC_VOCAB, H)),
        "enc_wihT": rnd(ks[1], (N_ENC_LAYERS, H, H)),
        "enc_whhT": rnd(ks[2], (N_ENC_LAYERS, H, H)),
        "enc_b": rnd(ks[3], (N_ENC_LAYERS, 1, H)),
        "dec_emb": rnd(ks[4], (TRG_VOCAB, H)),
        "dec_wihT": rnd(ks[5], (N_DEC_LAYERS, H, H)),
        "dec_whhT": rnd(ks[6], (N_DEC_LAYERS, H, H)),
        "dec_b": rnd(ks[7], (N_DEC_LAYERS, 1, H)),
        "wfcT": rnd(ks[8], (H, TRG_VOCAB)),
        "bfc": rnd(ks[9], (1, TRG_VOCAB)),
    }


# ----------------------------- main -------------------------------------------
if __name__ == "__main__":
    root = jax.random.PRNGKey(0)
    k_params, k_src, k_trg, k_tf = jax.random.split(root, 4)

    params = init_params(k_params)
    src = jax.random.randint(k_src, (B, SRC_LEN), 0, SRC_VOCAB, dtype=jnp.int32)
    trg = jax.random.randint(k_trg, (B, TRG_LEN), 0, TRG_VOCAB, dtype=jnp.int32)
    # deterministic stand-in for torch.rand(1).item() < teacher_forcing_ratio
    tf_flags = jax.random.bernoulli(k_tf, TEACHER_FORCING_RATIO, (TRG_LEN,))

    out = seq2seq_forward(params, src, trg, tf_flags)
    out = jax.block_until_ready(out)

    ref = seq2seq_reference(params, src, trg, tf_flags)
    assert out.shape == (B, TRG_LEN, TRG_VOCAB)
    assert bool(jnp.all(jnp.isfinite(out)))
    assert bool(jnp.allclose(out, ref, atol=1e-5, rtol=1e-5))

    print("KERNEL_OK")
</pallas_src>

<mosaic_0001>
module attributes {stable_mosaic.version = 11 : i64} {
  func.func @seq2seq_kernel(%arg0: memref<8xi32, #tpu.memory_space<smem>>, %arg1: memref<10x2x32xf32, #tpu.memory_space<vmem>>, %arg2: memref<8x2x32xf32, #tpu.memory_space<vmem>>, %arg3: memref<2x64x32xf32, #tpu.memory_space<vmem>>, %arg4: memref<2x1x32xf32, #tpu.memory_space<vmem>>, %arg5: memref<1x64x32xf32, #tpu.memory_space<vmem>>, %arg6: memref<1x1x32xf32, #tpu.memory_space<vmem>>, %arg7: memref<32x128xf32, #tpu.memory_space<vmem>>, %arg8: memref<1x128xf32, #tpu.memory_space<vmem>>, %arg9: memref<16x32xf32, #tpu.memory_space<vmem>>, %arg10: memref<8x2x128xf32, #tpu.memory_space<vmem>>, %arg11: memref<2x64xf32, #tpu.memory_space<vmem>>) attributes {dimension_semantics = [], scalar_prefetch = 0 : i64, scratch_operands = 1 : i64, tpu.core_type = #tpu.core_type<tc>} {
    %cst = arith.constant 0.000000e+00 : f32
    %0 = vector.broadcast %cst : f32 to vector<2x32xf32>
    %cst_0 = arith.constant 0.000000e+00 : f32
    %1 = vector.broadcast %cst_0 : f32 to vector<2x32xf32>
    %c0 = arith.constant 0 : index
    %c0_1 = arith.constant 0 : index
    %c0_2 = arith.constant 0 : index
    %2 = vector.load %arg1[%c0, %c0_1, %c0_2] : memref<10x2x32xf32, #tpu.memory_space<vmem>>, vector<1x2x32xf32>
    %3 = vector.shape_cast %2 : vector<1x2x32xf32> to vector<2x32xf32>
    %c0_3 = arith.constant 0 : index
    %c0_4 = arith.constant 0 : index
    %4 = vector.load %arg11[%c0_3, %c0_4] : memref<2x64xf32, #tpu.memory_space<vmem>>, vector<2x32xf32>
    tpu.vector_store %arg11[%c0_3, %c0_4], %3 {strides = array<i32>} : memref<2x64xf32, #tpu.memory_space<vmem>>, vector<2x32xf32>,
    %c0_5 = arith.constant 0 : index
    %c32 = arith.constant 32 : index
    %5 = vector.load %arg11[%c0_5, %c32] : memref<2x64xf32, #tpu.memory_space<vmem>>, vector<2x32xf32>
    tpu.vector_store %arg11[%c0_5, %c32], %0 {strides = array<i32>} : memref<2x64xf32, #tpu.memory_space<vmem>>, vector<2x32xf32>,
    %c0_6 = arith.constant 0 : index
    %c0_7 = arith.constant 0 : index
    %6 = vector.load %arg11[%c0_6, %c0_7] : memref<2x64xf32, #tpu.memory_space<vmem>>, vector<2x64xf32>
    %c0_8 = arith.constant 0 : index
    %c0_9 = arith.constant 0 : index
    %c0_10 = arith.constant 0 : index
    %7 = vector.load %arg3[%c0_8, %c0_9, %c0_10] : memref<2x64x32xf32, #tpu.memory_space<vmem>>, vector<1x64x32xf32>
    %8 = vector.shape_cast %7 : vector<1x64x32xf32> to vector<64x32xf32>
    %cst_11 = arith.constant dense<0.000000e+00> : vector<2x32xf32>
    %9 = tpu.matmul %6, %8, %cst_11 {dimension_numbers = #tpu.dot_dimension_numbers<[1], [0], [0], [1], [0, 0, 1, 1], [], []>} : vector<2x64xf32>, vector<64x32xf32>, vector<2x32xf32> -> vector<2x32xf32>
    %c0_12 = arith.constant 0 : index
    %c0_13 = arith.constant 0 : index
    %c0_14 = arith.constant 0 : index
    %10 = vector.load %arg4[%c0_12, %c0_13, %c0_14] : memref<2x1x32xf32, #tpu.memory_space<vmem>>, vector<1x1x32xf32>
    %11 = vector.shape_cast %10 : vector<1x1x32xf32> to vector<1x32xf32>
    %12 = vector.broadcast %11 : vector<1x32xf32> to vector<2x32xf32>
    %13 = arith.addf %9, %12 : vector<2x32xf32>
    %14 = math.tanh %13 : vector<2x32xf32>
    %c0_15 = arith.constant 0 : index
    %c0_16 = arith.constant 0 : index
    %15 = vector.load %arg11[%c0_15, %c0_16] : memref<2x64xf32, #tpu.memory_space<vmem>>, vector<2x32xf32>
    tpu.vector_store %arg11[%c0_15, %c0_16], %14 {strides = array<i32>} : memref<2x64xf32, #tpu.memory_space<vmem>>, vector<2x32xf32>,
    %c0_17 = arith.constant 0 : index
    %c32_18 = arith.constant 32 : index
    %16 = vector.load %arg11[%c0_17, %c32_18] : memref<2x64xf32, #tpu.memory_space<vmem>>, vector<2x32xf32>
    tpu.vector_store %arg11[%c0_17, %c32_18], %1 {strides = array<i32>} : memref<2x64xf32, #tpu.memory_space<vmem>>, vector<2x32xf32>,
    %c0_19 = arith.constant 0 : index
    %c0_20 = arith.constant 0 : index
    %17 = vector.load %arg11[%c0_19, %c0_20] : memref<2x64xf32, #tpu.memory_space<vmem>>, vector<2x64xf32>
    %c1 = arith.constant 1 : index
    %c0_21 = arith.constant 0 : index
    %c0_22 = arith.constant 0 : index
    %18 = vector.load %arg3[%c1, %c0_21, %c0_22] : memref<2x64x32xf32, #tpu.memory_space<vmem>>, vector<1x64x32xf32>
    %19 = vector.shape_cast %18 : vector<1x64x32xf32> to vector<64x32xf32>
    %cst_23 = arith.constant dense<0.000000e+00> : vector<2x32xf32>
    %20 = tpu.matmul %17, %19, %cst_23 {dimension_numbers = #tpu.dot_dimension_numbers<[1], [0], [0], [1], [0, 0, 1, 1], [], []>} : vector<2x64xf32>, vector<64x32xf32>, vector<2x32xf32> -> vector<2x32xf32>
    %c1_24 = arith.constant 1 : index
    %c0_25 = arith.constant 0 : index
    %c0_26 = arith.constant 0 : index
    %21 = vector.load %arg4[%c1_24, %c0_25, %c0_26] : memref<2x1x32xf32, #tpu.memory_space<vmem>>, vector<1x1x32xf32>
    %22 = vector.shape_cast %21 : vector<1x1x32xf32> to vector<1x32xf32>
    %23 = vector.broadcast %22 : vector<1x32xf32> to vector<2x32xf32>
    %24 = arith.addf %20, %23 : vector<2x32xf32>
    %25 = math.tanh %24 : vector<2x32xf32>
    %c1_27 = arith.constant 1 : index
    %c0_28 = arith.constant 0 : index
    %c0_29 = arith.constant 0 : index
    %26 = vector.load %arg1[%c1_27, %c0_28, %c0_29] : memref<10x2x32xf32, #tpu.memory_space<vmem>>, vector<1x2x32xf32>
    %27 = vector.shape_cast %26 : vector<1x2x32xf32> to vector<2x32xf32>
    %c0_30 = arith.constant 0 : index
    %c0_31 = arith.constant 0 : index
    %28 = vector.load %arg11[%c0_30, %c0_31] : memref<2x64xf32, #tpu.memory_space<vmem>>, vector<2x32xf32>
    tpu.vector_store %arg11[%c0_30, %c0_31], %27 {strides = array<i32>} : memref<2x64xf32, #tpu.memory_space<vmem>>, vector<2x32xf32>,
    %c0_32 = arith.constant 0 : index
    %c32_33 = arith.constant 32 : index
    %29 = vector.load %arg11[%c0_32, %c32_33] : memref<2x64xf32, #tpu.memory_space<vmem>>, vector<2x32xf32>
    tpu.vector_store %arg11[%c0_32, %c32_33], %14 {strides = array<i32>} : memref<2x64xf32, #tpu.memory_space<vmem>>, vector<2x32xf32>,
    %c0_34 = arith.constant 0 : index
    %c0_35 = arith.constant 0 : index
    %30 = vector.load %arg11[%c0_34, %c0_35] : memref<2x64xf32, #tpu.memory_space<vmem>>, vector<2x64xf32>
    %c0_36 = arith.constant 0 : index
    %c0_37 = arith.constant 0 : index
    %c0_38 = arith.constant 0 : index
    %31 = vector.load %arg3[%c0_36, %c0_37, %c0_38] : memref<2x64x32xf32, #tpu.memory_space<vmem>>, vector<1x64x32xf32>
    %32 = vector.shape_cast %31 : vector<1x64x32xf32> to vector<64x32xf32>
    %cst_39 = arith.constant dense<0.000000e+00> : vector<2x32xf32>
    %33 = tpu.matmul %30, %32, %cst_39 {dimension_numbers = #tpu.dot_dimension_numbers<[1], [0], [0], [1], [0, 0, 1, 1], [], []>} : vector<2x64xf32>, vector<64x32xf32>, vector<2x32xf32> -> vector<2x32xf32>
    %c0_40 = arith.constant 0 : index
    %c0_41 = arith.constant 0 : index
    %c0_42 = arith.constant 0 : index
    %34 = vector.load %arg4[%c0_40, %c0_41, %c0_42] : memref<2x1x32xf32, #tpu.memory_space<vmem>>, vector<1x1x32xf32>
    %35 = vector.shape_cast %34 : vector<1x1x32xf32> to vector<1x32xf32>
    %36 = vector.broadcast %35 : vector<1x32xf32> to vector<2x32xf32>
    %37 = arith.addf %33, %36 : vector<2x32xf32>
    %38 = math.tanh %37 : vector<2x32xf32>
    %c0_43 = arith.constant 0 : index
    %c0_44 = arith.constant 0 : index
    %39 = vector.load %arg11[%c0_43, %c0_44] : memref<2x64xf32, #tpu.memory_space<vmem>>, vector<2x32xf32>
    tpu.vector_store %arg11[%c0_43, %c0_44], %38 {strides = array<i32>} : memref<2x64xf32, #tpu.memory_space<vmem>>, vector<2x32xf32>,
    %c0_45 = arith.constant 0 : index
    %c32_46 = arith.constant 32 : index
    %40 = vector.load %arg11[%c0_45, %c32_46] : memref<2x64xf32, #tpu.memory_space<vmem>>, vector<2x32xf32>
    tpu.vector_store %arg11[%c0_45, %c32_46], %25 {strides = array<i32>} : memref<2x64xf32, #tpu.memory_space<vmem>>, vector<2x32xf32>,
    %c0_47 = arith.constant 0 : index
    %c0_48 = arith.constant 0 : index
    %41 = vector.load %arg11[%c0_47, %c0_48] : memref<2x64xf32, #tpu.memory_space<vmem>>, vector<2x64xf32>
    %c1_49 = arith.constant 1 : index
    %c0_50 = arith.constant 0 : index
    %c0_51 = arith.constant 0 : index
    %42 = vector.load %arg3[%c1_49, %c0_50, %c0_51] : memref<2x64x32xf32, #tpu.memory_space<vmem>>, vector<1x64x32xf32>
    %43 = vector.shape_cast %42 : vector<1x64x32xf32> to vector<64x32xf32>
    %cst_52 = arith.constant dense<0.000000e+00> : vector<2x32xf32>
    %44 = tpu.matmul %41, %43, %cst_52 {dimension_numbers = #tpu.dot_dimension_numbers<[1], [0], [0], [1], [0, 0, 1, 1], [], []>} : vector<2x64xf32>, vector<64x32xf32>, vector<2x32xf32> -> vector<2x32xf32>
    %c1_53 = arith.constant 1 : index
    %c0_54 = arith.constant 0 : index
    %c0_55 = arith.constant 0 : index
    %45 = vector.load %arg4[%c1_53, %c0_54, %c0_55] : memref<2x1x32xf32, #tpu.memory_space<vmem>>, vector<1x1x32xf32>
    %46 = vector.shape_cast %45 : vector<1x1x32xf32> to vector<1x32xf32>
    %47 = vector.broadcast %46 : vector<1x32xf32> to vector<2x32xf32>
    %48 = arith.addf %44, %47 : vector<2x32xf32>
    %49 = math.tanh %48 : vector<2x32xf32>
    %c2 = arith.constant 2 : index
    %c0_56 = arith.constant 0 : index
    %c0_57 = arith.constant 0 : index
    %50 = vector.load %arg1[%c2, %c0_56, %c0_57] : memref<10x2x32xf32, #tpu.memory_space<vmem>>, vector<1x2x32xf32>
    %51 = vector.shape_cast %50 : vector<1x2x32xf32> to vector<2x32xf32>
    %c0_58 = arith.constant 0 : index
    %c0_59 = arith.constant 0 : index
    %52 = vector.load %arg11[%c0_58, %c0_59] : memref<2x64xf32, #tpu.memory_space<vmem>>, vector<2x32xf32>
    tpu.vector_store %arg11[%c0_58, %c0_59], %51 {strides = array<i32>} : memref<2x64xf32, #tpu.memory_space<vmem>>, vector<2x32xf32>,
    %c0_60 = arith.constant 0 : index
    %c32_61 = arith.constant 32 : index
    %53 = vector.load %arg11[%c0_60, %c32_61] : memref<2x64xf32, #tpu.memory_space<vmem>>, vector<2x32xf32>
    tpu.vector_store %arg11[%c0_60, %c32_61], %38 {strides = array<i32>} : memref<2x64xf32, #tpu.memory_space<vmem>>, vector<2x32xf32>,
    %c0_62 = arith.constant 0 : index
    %c0_63 = arith.constant 0 : index
    %54 = vector.load %arg11[%c0_62, %c0_63] : memref<2x64xf32, #tpu.memory_space<vmem>>, vector<2x64xf32>
    %c0_64 = arith.constant 0 : index
    %c0_65 = arith.constant 0 : index
    %c0_66 = arith.constant 0 : index
    %55 = vector.load %arg3[%c0_64, %c0_65, %c0_66] : memref<2x64x32xf32, #tpu.memory_space<vmem>>, vector<1x64x32xf32>
    %56 = vector.shape_cast %55 : vector<1x64x32xf32> to vector<64x32xf32>
    %cst_67 = arith.constant dense<0.000000e+00> : vector<2x32xf32>
    %57 = tpu.matmul %54, %56, %cst_67 {dimension_numbers = #tpu.dot_dimension_numbers<[1], [0], [0], [1], [0, 0, 1, 1], [], []>} : vector<2x64xf32>, vector<64x32xf32>, vector<2x32xf32> -> vector<2x32xf32>
    %c0_68 = arith.constant 0 : index
    %c0_69 = arith.constant 0 : index
    %c0_70 = arith.constant 0 : index
    %58 = vector.load %arg4[%c0_68, %c0_69, %c0_70] : memref<2x1x32xf32, #tpu.memory_space<vmem>>, vector<1x1x32xf32>
    %59 = vector.shape_cast %58 : vector<1x1x32xf32> to vector<1x32xf32>
    %60 = vector.broadcast %59 : vector<1x32xf32> to vector<2x32xf32>
    %61 = arith.addf %57, %60 : vector<2x32xf32>
    %62 = math.tanh %61 : vector<2x32xf32>
    %c0_71 = arith.constant 0 : index
    %c0_72 = arith.constant 0 : index
    %63 = vector.load %arg11[%c0_71, %c0_72] : memref<2x64xf32, #tpu.memory_space<vmem>>, vector<2x32xf32>
    tpu.vector_store %arg11[%c0_71, %c0_72], %62 {strides = array<i32>} : memref<2x64xf32, #tpu.memory_space<vmem>>, vector<2x32xf32>,
    %c0_73 = arith.constant 0 : index
    %c32_74 = arith.constant 32 : index
    %64 = vector.load %arg11[%c0_73, %c32_74] : memref<2x64xf32, #tpu.memory_space<vmem>>, vector<2x32xf32>
    tpu.vector_store %arg11[%c0_73, %c32_74], %49 {strides = array<i32>} : memref<2x64xf32, #tpu.memory_space<vmem>>, vector<2x32xf32>,
    %c0_75 = arith.constant 0 : index
    %c0_76 = arith.constant 0 : index
    %65 = vector.load %arg11[%c0_75, %c0_76] : memref<2x64xf32, #tpu.memory_space<vmem>>, vector<2x64xf32>
    %c1_77 = arith.constant 1 : index
    %c0_78 = arith.constant 0 : index
    %c0_79 = arith.constant 0 : index
    %66 = vector.load %arg3[%c1_77, %c0_78, %c0_79] : memref<2x64x32xf32, #tpu.memory_space<vmem>>, vector<1x64x32xf32>
    %67 = vector.shape_cast %66 : vector<1x64x32xf32> to vector<64x32xf32>
    %cst_80 = arith.constant dense<0.000000e+00> : vector<2x32xf32>
    %68 = tpu.matmul %65, %67, %cst_80 {dimension_numbers = #tpu.dot_dimension_numbers<[1], [0], [0], [1], [0, 0, 1, 1], [], []>} : vector<2x64xf32>, vector<64x32xf32>, vector<2x32xf32> -> vector<2x32xf32>
    %c1_81 = arith.constant 1 : index
    %c0_82 = arith.constant 0 : index
    %c0_83 = arith.constant 0 : index
    %69 = vector.load %arg4[%c1_81, %c0_82, %c0_83] : memref<2x1x32xf32, #tpu.memory_space<vmem>>, vector<1x1x32xf32>
    %70 = vector.shape_cast %69 : vector<1x1x32xf32> to vector<1x32xf32>
    %71 = vector.broadcast %70 : vector<1x32xf32> to vector<2x32xf32>
    %72 = arith.addf %68, %71 : vector<2x32xf32>
    %73 = math.tanh %72 : vector<2x32xf32>
    %c3 = arith.constant 3 : index
    %c0_84 = arith.constant 0 : index
    %c0_85 = arith.constant 0 : index
    %74 = vector.load %arg1[%c3, %c0_84, %c0_85] : memref<10x2x32xf32, #tpu.memory_space<vmem>>, vector<1x2x32xf32>
    %75 = vector.shape_cast %74 : vector<1x2x32xf32> to vector<2x32xf32>
    %c0_86 = arith.constant 0 : index
    %c0_87 = arith.constant 0 : index
    %76 = vector.load %arg11[%c0_86, %c0_87] : memref<2x64xf32, #tpu.memory_space<vmem>>, vector<2x32xf32>
    tpu.vector_store %arg11[%c0_86, %c0_87], %75 {strides = array<i32>} : memref<2x64xf32, #tpu.memory_space<vmem>>, vector<2x32xf32>,
    %c0_88 = arith.constant 0 : index
    %c32_89 = arith.constant 32 : index
    %77 = vector.load %arg11[%c0_88, %c32_89] : memref<2x64xf32, #tpu.memory_space<vmem>>, vector<2x32xf32>
    tpu.vector_store %arg11[%c0_88, %c32_89], %62 {strides = array<i32>} : memref<2x64xf32, #tpu.memory_space<vmem>>, vector<2x32xf32>,
    %c0_90 = arith.constant 0 : index
    %c0_91 = arith.constant 0 : index
    %78 = vector.load %arg11[%c0_90, %c0_91] : memref<2x64xf32, #tpu.memory_space<vmem>>, vector<2x64xf32>
    %c0_92 = arith.constant 0 : index
    %c0_93 = arith.constant 0 : index
    %c0_94 = arith.constant 0 : index
    %79 = vector.load %arg3[%c0_92, %c0_93, %c0_94] : memref<2x64x32xf32, #tpu.memory_space<vmem>>, vector<1x64x32xf32>
    %80 = vector.shape_cast %79 : vector<1x64x32xf32> to vector<64x32xf32>
    %cst_95 = arith.constant dense<0.000000e+00> : vector<2x32xf32>
    %81 = tpu.matmul %78, %80, %cst_95 {dimension_numbers = #tpu.dot_dimension_numbers<[1], [0], [0], [1], [0, 0, 1, 1], [], []>} : vector<2x64xf32>, vector<64x32xf32>, vector<2x32xf32> -> vector<2x32xf32>
    %c0_96 = arith.constant 0 : index
    %c0_97 = arith.constant 0 : index
    %c0_98 = arith.constant 0 : index
    %82 = vector.load %arg4[%c0_96, %c0_97, %c0_98] : memref<2x1x32xf32, #tpu.memory_space<vmem>>, vector<1x1x32xf32>
    %83 = vector.shape_cast %82 : vector<1x1x32xf32> to vector<1x32xf32>
    %84 = vector.broadcast %83 : vector<1x32xf32> to vector<2x32xf32>
    %85 = arith.addf %81, %84 : vector<2x32xf32>
    %86 = math.tanh %85 : vector<2x32xf32>
    %c0_99 = arith.constant 0 : index
    %c0_100 = arith.constant 0 : index
    %87 = vector.load %arg11[%c0_99, %c0_100] : memref<2x64xf32, #tpu.memory_space<vmem>>, vector<2x32xf32>
    tpu.vector_store %arg11[%c0_99, %c0_100], %86 {strides = array<i32>} : memref<2x64xf32, #tpu.memory_space<vmem>>, vector<2x32xf32>,
    %c0_101 = arith.constant 0 : index
    %c32_102 = arith.constant 32 : index
    %88 = vector.load %arg11[%c0_101, %c32_102] : memref<2x64xf32, #tpu.memory_space<vmem>>, vector<2x32xf32>
    tpu.vector_store %arg11[%c0_101, %c32_102], %73 {strides = array<i32>} : memref<2x64xf32, #tpu.memory_space<vmem>>, vector<2x32xf32>,
    %c0_103 = arith.constant 0 : index
    %c0_104 = arith.constant 0 : index
    %89 = vector.load %arg11[%c0_103, %c0_104] : memref<2x64xf32, #tpu.memory_space<vmem>>, vector<2x64xf32>
    %c1_105 = arith.constant 1 : index
    %c0_106 = arith.constant 0 : index
    %c0_107 = arith.constant 0 : index
    %90 = vector.load %arg3[%c1_105, %c0_106, %c0_107] : memref<2x64x32xf32, #tpu.memory_space<vmem>>, vector<1x64x32xf32>
    %91 = vector.shape_cast %90 : vector<1x64x32xf32> to vector<64x32xf32>
    %cst_108 = arith.constant dense<0.000000e+00> : vector<2x32xf32>
    %92 = tpu.matmul %89, %91, %cst_108 {dimension_numbers = #tpu.dot_dimension_numbers<[1], [0], [0], [1], [0, 0, 1, 1], [], []>} : vector<2x64xf32>, vector<64x32xf32>, vector<2x32xf32> -> vector<2x32xf32>
    %c1_109 = arith.constant 1 : index
    %c0_110 = arith.constant 0 : index
    %c0_111 = arith.constant 0 : index
    %93 = vector.load %arg4[%c1_109, %c0_110, %c0_111] : memref<2x1x32xf32, #tpu.memory_space<vmem>>, vector<1x1x32xf32>
    %94 = vector.shape_cast %93 : vector<1x1x32xf32> to vector<1x32xf32>
    %95 = vector.broadcast %94 : vector<1x32xf32> to vector<2x32xf32>
    %96 = arith.addf %92, %95 : vector<2x32xf32>
    %97 = math.tanh %96 : vector<2x32xf32>
    %c4 = arith.constant 4 : index
    %c0_112 = arith.constant 0 : index
    %c0_113 = arith.constant 0 : index
    %98 = vector.load %arg1[%c4, %c0_112, %c0_113] : memref<10x2x32xf32, #tpu.memory_space<vmem>>, vector<1x2x32xf32>
    %99 = vector.shape_cast %98 : vector<1x2x32xf32> to vector<2x32xf32>
    %c0_114 = arith.constant 0 : index
    %c0_115 = arith.constant 0 : index
    %100 = vector.load %arg11[%c0_114, %c0_115] : memref<2x64xf32, #tpu.memory_space<vmem>>, vector<2x32xf32>
    tpu.vector_store %arg11[%c0_114, %c0_115], %99 {strides = array<i32>} : memref<2x64xf32, #tpu.memory_space<vmem>>, vector<2x32xf32>,
    %c0_116 = arith.constant 0 : index
    %c32_117 = arith.constant 32 : index
    %101 = vector.load %arg11[%c0_116, %c32_117] : memref<2x64xf32, #tpu.memory_space<vmem>>, vector<2x32xf32>
    tpu.vector_store %arg11[%c0_116, %c32_117], %86 {strides = array<i32>} : memref<2x64xf32, #tpu.memory_space<vmem>>, vector<2x32xf32>,
    %c0_118 = arith.constant 0 : index
    %c0_119 = arith.constant 0 : index
    %102 = vector.load %arg11[%c0_118, %c0_119] : memref<2x64xf32, #tpu.memory_space<vmem>>, vector<2x64xf32>
    %c0_120 = arith.constant 0 : index
    %c0_121 = arith.constant 0 : index
    %c0_122 = arith.constant 0 : index
    %103 = vector.load %arg3[%c0_120, %c0_121, %c0_122] : memref<2x64x32xf32, #tpu.memory_space<vmem>>, vector<1x64x32xf32>
    %104 = vector.shape_cast %103 : vector<1x64x32xf32> to vector<64x32xf32>
    %cst_123 = arith.constant dense<0.000000e+00> : vector<2x32xf32>
    %105 = tpu.matmul %102, %104, %cst_123 {dimension_numbers = #tpu.dot_dimension_numbers<[1], [0], [0], [1], [0, 0, 1, 1], [], []>} : vector<2x64xf32>, vector<64x32xf32>, vector<2x32xf32> -> vector<2x32xf32>
    %c0_124 = arith.constant 0 : index
    %c0_125 = arith.constant 0 : index
    %c0_126 = arith.constant 0 : index
    %106 = vector.load %arg4[%c0_124, %c0_125, %c0_126] : memref<2x1x32xf32, #tpu.memory_space<vmem>>, vector<1x1x32xf32>
    %107 = vector.shape_cast %106 : vector<1x1x32xf32> to vector<1x32xf32>
    %108 = vector.broadcast %107 : vector<1x32xf32> to vector<2x32xf32>
    %109 = arith.addf %105, %108 : vector<2x32xf32>
    %110 = math.tanh %109 : vector<2x32xf32>
    %c0_127 = arith.constant 0 : index
    %c0_128 = arith.constant 0 : index
    %111 = vector.load %arg11[%c0_127, %c0_128] : memref<2x64xf32, #tpu.memory_space<vmem>>, vector<2x32xf32>
    tpu.vector_store %arg11[%c0_127, %c0_128], %110 {strides = array<i32>} : memref<2x64xf32, #tpu.memory_space<vmem>>, vector<2x32xf32>,
    %c0_129 = arith.constant 0 : index
    %c32_130 = arith.constant 32 : index
    %112 = vector.load %arg11[%c0_129, %c32_130] : memref<2x64xf32, #tpu.memory_space<vmem>>, vector<2x32xf32>
    tpu.vector_store %arg11[%c0_129, %c32_130], %97 {strides = array<i32>} : memref<2x64xf32, #tpu.memory_space<vmem>>, vector<2x32xf32>,
    %c0_131 = arith.constant 0 : index
    %c0_132 = arith.constant 0 : index
    %113 = vector.load %arg11[%c0_131, %c0_132] : memref<2x64xf32, #tpu.memory_space<vmem>>, vector<2x64xf32>
    %c1_133 = arith.constant 1 : index
    %c0_134 = arith.constant 0 : index
    %c0_135 = arith.constant 0 : index
    %114 = vector.load %arg3[%c1_133, %c0_134, %c0_135] : memref<2x64x32xf32, #tpu.memory_space<vmem>>, vector<1x64x32xf32>
    %115 = vector.shape_cast %114 : vector<1x64x32xf32> to vector<64x32xf32>
    %cst_136 = arith.constant dense<0.000000e+00> : vector<2x32xf32>
    %116 = tpu.matmul %113, %115, %cst_136 {dimension_numbers = #tpu.dot_dimension_numbers<[1], [0], [0], [1], [0, 0, 1, 1], [], []>} : vector<2x64xf32>, vector<64x32xf32>, vector<2x32xf32> -> vector<2x32xf32>
    %c1_137 = arith.constant 1 : index
    %c0_138 = arith.constant 0 : index
    %c0_139 = arith.constant 0 : index
    %117 = vector.load %arg4[%c1_137, %c0_138, %c0_139] : memref<2x1x32xf32, #tpu.memory_space<vmem>>, vector<1x1x32xf32>
    %118 = vector.shape_cast %117 : vector<1x1x32xf32> to vector<1x32xf32>
    %119 = vector.broadcast %118 : vector<1x32xf32> to vector<2x32xf32>
    %120 = arith.addf %116, %119 : vector<2x32xf32>
    %121 = math.tanh %120 : vector<2x32xf32>
    %c5 = arith.constant 5 : index
    %c0_140 = arith.constant 0 : index
    %c0_141 = arith.constant 0 : index
    %122 = vector.load %arg1[%c5, %c0_140, %c0_141] : memref<10x2x32xf32, #tpu.memory_space<vmem>>, vector<1x2x32xf32>
    %123 = vector.shape_cast %122 : vector<1x2x32xf32> to vector<2x32xf32>
    %c0_142 = arith.constant 0 : index
    %c0_143 = arith.constant 0 : index
    %124 = vector.load %arg11[%c0_142, %c0_143] : memref<2x64xf32, #tpu.memory_space<vmem>>, vector<2x32xf32>
    tpu.vector_store %arg11[%c0_142, %c0_143], %123 {strides = array<i32>} : memref<2x64xf32, #tpu.memory_space<vmem>>, vector<2x32xf32>,
    %c0_144 = arith.constant 0 : index
    %c32_145 = arith.constant 32 : index
    %125 = vector.load %arg11[%c0_144, %c32_145] : memref<2x64xf32, #tpu.memory_space<vmem>>, vector<2x32xf32>
    tpu.vector_store %arg11[%c0_144, %c32_145], %110 {strides = array<i32>} : memref<2x64xf32, #tpu.memory_space<vmem>>, vector<2x32xf32>,
    %c0_146 = arith.constant 0 : index
    %c0_147 = arith.constant 0 : index
    %126 = vector.load %arg11[%c0_146, %c0_147] : memref<2x64xf32, #tpu.memory_space<vmem>>, vector<2x64xf32>
    %c0_148 = arith.constant 0 : index
    %c0_149 = arith.constant 0 : index
    %c0_150 = arith.constant 0 : index
    %127 = vector.load %arg3[%c0_148, %c0_149, %c0_150] : memref<2x64x32xf32, #tpu.memory_space<vmem>>, vector<1x64x32xf32>
    %128 = vector.shape_cast %127 : vector<1x64x32xf32> to vector<64x32xf32>
    %cst_151 = arith.constant dense<0.000000e+00> : vector<2x32xf32>
    %129 = tpu.matmul %126, %128, %cst_151 {dimension_numbers = #tpu.dot_dimension_numbers<[1], [0], [0], [1], [0, 0, 1, 1], [], []>} : vector<2x64xf32>, vector<64x32xf32>, vector<2x32xf32> -> vector<2x32xf32>
    %c0_152 = arith.constant 0 : index
    %c0_153 = arith.constant 0 : index
    %c0_154 = arith.constant 0 : index
    %130 = vector.load %arg4[%c0_152, %c0_153, %c0_154] : memref<2x1x32xf32, #tpu.memory_space<vmem>>, vector<1x1x32xf32>
    %131 = vector.shape_cast %130 : vector<1x1x32xf32> to vector<1x32xf32>
    %132 = vector.broadcast %131 : vector<1x32xf32> to vector<2x32xf32>
    %133 = arith.addf %129, %132 : vector<2x32xf32>
    %134 = math.tanh %133 : vector<2x32xf32>
    %c0_155 = arith.constant 0 : index
    %c0_156 = arith.constant 0 : index
    %135 = vector.load %arg11[%c0_155, %c0_156] : memref<2x64xf32, #tpu.memory_space<vmem>>, vector<2x32xf32>
    tpu.vector_store %arg11[%c0_155, %c0_156], %134 {strides = array<i32>} : memref<2x64xf32, #tpu.memory_space<vmem>>, vector<2x32xf32>,
    %c0_157 = arith.constant 0 : index
    %c32_158 = arith.constant 32 : index
    %136 = vector.load %arg11[%c0_157, %c32_158] : memref<2x64xf32, #tpu.memory_space<vmem>>, vector<2x32xf32>
    tpu.vector_store %arg11[%c0_157, %c32_158], %121 {strides = array<i32>} : memref<2x64xf32, #tpu.memory_space<vmem>>, vector<2x32xf32>,
    %c0_159 = arith.constant 0 : index
    %c0_160 = arith.constant 0 : index
    %137 = vector.load %arg11[%c0_159, %c0_160] : memref<2x64xf32, #tpu.memory_space<vmem>>, vector<2x64xf32>
    %c1_161 = arith.constant 1 : index
    %c0_162 = arith.constant 0 : index
    %c0_163 = arith.constant 0 : index
    %138 = vector.load %arg3[%c1_161, %c0_162, %c0_163] : memref<2x64x32xf32, #tpu.memory_space<vmem>>, vector<1x64x32xf32>
    %139 = vector.shape_cast %138 : vector<1x64x32xf32> to vector<64x32xf32>
    %cst_164 = arith.constant dense<0.000000e+00> : vector<2x32xf32>
    %140 = tpu.matmul %137, %139, %cst_164 {dimension_numbers = #tpu.dot_dimension_numbers<[1], [0], [0], [1], [0, 0, 1, 1], [], []>} : vector<2x64xf32>, vector<64x32xf32>, vector<2x32xf32> -> vector<2x32xf32>
    %c1_165 = arith.constant 1 : index
    %c0_166 = arith.constant 0 : index
    %c0_167 = arith.constant 0 : index
    %141 = vector.load %arg4[%c1_165, %c0_166, %c0_167] : memref<2x1x32xf32, #tpu.memory_space<vmem>>, vector<1x1x32xf32>
    %142 = vector.shape_cast %141 : vector<1x1x32xf32> to vector<1x32xf32>
    %143 = vector.broadcast %142 : vector<1x32xf32> to vector<2x32xf32>
    %144 = arith.addf %140, %143 : vector<2x32xf32>
    %145 = math.tanh %144 : vector<2x32xf32>
    %c6 = arith.constant 6 : index
    %c0_168 = arith.constant 0 : index
    %c0_169 = arith.constant 0 : index
    %146 = vector.load %arg1[%c6, %c0_168, %c0_169] : memref<10x2x32xf32, #tpu.memory_space<vmem>>, vector<1x2x32xf32>
    %147 = vector.shape_cast %146 : vector<1x2x32xf32> to vector<2x32xf32>
    %c0_170 = arith.constant 0 : index
    %c0_171 = arith.constant 0 : index
    %148 = vector.load %arg11[%c0_170, %c0_171] : memref<2x64xf32, #tpu.memory_space<vmem>>, vector<2x32xf32>
    tpu.vector_store %arg11[%c0_170, %c0_171], %147 {strides = array<i32>} : memref<2x64xf32, #tpu.memory_space<vmem>>, vector<2x32xf32>,
    %c0_172 = arith.constant 0 : index
    %c32_173 = arith.constant 32 : index
    %149 = vector.load %arg11[%c0_172, %c32_173] : memref<2x64xf32, #tpu.memory_space<vmem>>, vector<2x32xf32>
    tpu.vector_store %arg11[%c0_172, %c32_173], %134 {strides = array<i32>} : memref<2x64xf32, #tpu.memory_space<vmem>>, vector<2x32xf32>,
    %c0_174 = arith.constant 0 : index
    %c0_175 = arith.constant 0 : index
    %150 = vector.load %arg11[%c0_174, %c0_175] : memref<2x64xf32, #tpu.memory_space<vmem>>, vector<2x64xf32>
    %c0_176 = arith.constant 0 : index
    %c0_177 = arith.constant 0 : index
    %c0_178 = arith.constant 0 : index
    %151 = vector.load %arg3[%c0_176, %c0_177, %c0_178] : memref<2x64x32xf32, #tpu.memory_space<vmem>>, vector<1x64x32xf32>
    %152 = vector.shape_cast %151 : vector<1x64x32xf32> to vector<64x32xf32>
    %cst_179 = arith.constant dense<0.000000e+00> : vector<2x32xf32>
    %153 = tpu.matmul %150, %152, %cst_179 {dimension_numbers = #tpu.dot_dimension_numbers<[1], [0], [0], [1], [0, 0, 1, 1], [], []>} : vector<2x64xf32>, vector<64x32xf32>, vector<2x32xf32> -> vector<2x32xf32>
    %c0_180 = arith.constant 0 : index
    %c0_181 = arith.constant 0 : index
    %c0_182 = arith.constant 0 : index
    %154 = vector.load %arg4[%c0_180, %c0_181, %c0_182] : memref<2x1x32xf32, #tpu.memory_space<vmem>>, vector<1x1x32xf32>
    %155 = vector.shape_cast %154 : vector<1x1x32xf32> to vector<1x32xf32>
    %156 = vector.broadcast %155 : vector<1x32xf32> to vector<2x32xf32>
    %157 = arith.addf %153, %156 : vector<2x32xf32>
    %158 = math.tanh %157 : vector<2x32xf32>
    %c0_183 = arith.constant 0 : index
    %c0_184 = arith.constant 0 : index
    %159 = vector.load %arg11[%c0_183, %c0_184] : memref<2x64xf32, #tpu.memory_space<vmem>>, vector<2x32xf32>
    tpu.vector_store %arg11[%c0_183, %c0_184], %158 {strides = array<i32>} : memref<2x64xf32, #tpu.memory_space<vmem>>, vector<2x32xf32>,
    %c0_185 = arith.constant 0 : index
    %c32_186 = arith.constant 32 : index
    %160 = vector.load %arg11[%c0_185, %c32_186] : memref<2x64xf32, #tpu.memory_space<vmem>>, vector<2x32xf32>
    tpu.vector_store %arg11[%c0_185, %c32_186], %145 {strides = array<i32>} : memref<2x64xf32, #tpu.memory_space<vmem>>, vector<2x32xf32>,
    %c0_187 = arith.constant 0 : index
    %c0_188 = arith.constant 0 : index
    %161 = vector.load %arg11[%c0_187, %c0_188] : memref<2x64xf32, #tpu.memory_space<vmem>>, vector<2x64xf32>
    %c1_189 = arith.constant 1 : index
    %c0_190 = arith.constant 0 : index
    %c0_191 = arith.constant 0 : index
    %162 = vector.load %arg3[%c1_189, %c0_190, %c0_191] : memref<2x64x32xf32, #tpu.memory_space<vmem>>, vector<1x64x32xf32>
    %163 = vector.shape_cast %162 : vector<1x64x32xf32> to vector<64x32xf32>
    %cst_192 = arith.constant dense<0.000000e+00> : vector<2x32xf32>
    %164 = tpu.matmul %161, %163, %cst_192 {dimension_numbers = #tpu.dot_dimension_numbers<[1], [0], [0], [1], [0, 0, 1, 1], [], []>} : vector<2x64xf32>, vector<64x32xf32>, vector<2x32xf32> -> vector<2x32xf32>
    %c1_193 = arith.constant 1 : index
    %c0_194 = arith.constant 0 : index
    %c0_195 = arith.constant 0 : index
    %165 = vector.load %arg4[%c1_193, %c0_194, %c0_195] : memref<2x1x32xf32, #tpu.memory_space<vmem>>, vector<1x1x32xf32>
    %166 = vector.shape_cast %165 : vector<1x1x32xf32> to vector<1x32xf32>
    %167 = vector.broadcast %166 : vector<1x32xf32> to vector<2x32xf32>
    %168 = arith.addf %164, %167 : vector<2x32xf32>
    %169 = math.tanh %168 : vector<2x32xf32>
    %c7 = arith.constant 7 : index
    %c0_196 = arith.constant 0 : index
    %c0_197 = arith.constant 0 : index
    %170 = vector.load %arg1[%c7, %c0_196, %c0_197] : memref<10x2x32xf32, #tpu.memory_space<vmem>>, vector<1x2x32xf32>
    %171 = vector.shape_cast %170 : vector<1x2x32xf32> to vector<2x32xf32>
    %c0_198 = arith.constant 0 : index
    %c0_199 = arith.constant 0 : index
    %172 = vector.load %arg11[%c0_198, %c0_199] : memref<2x64xf32, #tpu.memory_space<vmem>>, vector<2x32xf32>
    tpu.vector_store %arg11[%c0_198, %c0_199], %171 {strides = array<i32>} : memref<2x64xf32, #tpu.memory_space<vmem>>, vector<2x32xf32>,
    %c0_200 = arith.constant 0 : index
    %c32_201 = arith.constant 32 : index
    %173 = vector.load %arg11[%c0_200, %c32_201] : memref<2x64xf32, #tpu.memory_space<vmem>>, vector<2x32xf32>
    tpu.vector_store %arg11[%c0_200, %c32_201], %158 {strides = array<i32>} : memref<2x64xf32, #tpu.memory_space<vmem>>, vector<2x32xf32>,
    %c0_202 = arith.constant 0 : index
    %c0_203 = arith.constant 0 : index
    %174 = vector.load %arg11[%c0_202, %c0_203] : memref<2x64xf32, #tpu.memory_space<vmem>>, vector<2x64xf32>
    %c0_204 = arith.constant 0 : index
    %c0_205 = arith.constant 0 : index
    %c0_206 = arith.constant 0 : index
    %175 = vector.load %arg3[%c0_204, %c0_205, %c0_206] : memref<2x64x32xf32, #tpu.memory_space<vmem>>, vector<1x64x32xf32>
    %176 = vector.shape_cast %175 : vector<1x64x32xf32> to vector<64x32xf32>
    %cst_207 = arith.constant dense<0.000000e+00> : vector<2x32xf32>
    %177 = tpu.matmul %174, %176, %cst_207 {dimension_numbers = #tpu.dot_dimension_numbers<[1], [0], [0], [1], [0, 0, 1, 1], [], []>} : vector<2x64xf32>, vector<64x32xf32>, vector<2x32xf32> -> vector<2x32xf32>
    %c0_208 = arith.constant 0 : index
    %c0_209 = arith.constant 0 : index
    %c0_210 = arith.constant 0 : index
    %178 = vector.load %arg4[%c0_208, %c0_209, %c0_210] : memref<2x1x32xf32, #tpu.memory_space<vmem>>, vector<1x1x32xf32>
    %179 = vector.shape_cast %178 : vector<1x1x32xf32> to vector<1x32xf32>
    %180 = vector.broadcast %179 : vector<1x32xf32> to vector<2x32xf32>
    %181 = arith.addf %177, %180 : vector<2x32xf32>
    %182 = math.tanh %181 : vector<2x32xf32>
    %c0_211 = arith.constant 0 : index
    %c0_212 = arith.constant 0 : index
    %183 = vector.load %arg11[%c0_211, %c0_212] : memref<2x64xf32, #tpu.memory_space<vmem>>, vector<2x32xf32>
    tpu.vector_store %arg11[%c0_211, %c0_212], %182 {strides = array<i32>} : memref<2x64xf32, #tpu.memory_space<vmem>>, vector<2x32xf32>,
    %c0_213 = arith.constant 0 : index
    %c32_214 = arith.constant 32 : index
    %184 = vector.load %arg11[%c0_213, %c32_214] : memref<2x64xf32, #tpu.memory_space<vmem>>, vector<2x32xf32>
    tpu.vector_store %arg11[%c0_213, %c32_214], %169 {strides = array<i32>} : memref<2x64xf32, #tpu.memory_space<vmem>>, vector<2x32xf32>,
    %c0_215 = arith.constant 0 : index
    %c0_216 = arith.constant 0 : index
    %185 = vector.load %arg11[%c0_215, %c0_216] : memref<2x64xf32, #tpu.memory_space<vmem>>, vector<2x64xf32>
    %c1_217 = arith.constant 1 : index
    %c0_218 = arith.constant 0 : index
    %c0_219 = arith.constant 0 : index
    %186 = vector.load %arg3[%c1_217, %c0_218, %c0_219] : memref<2x64x32xf32, #tpu.memory_space<vmem>>, vector<1x64x32xf32>
    %187 = vector.shape_cast %186 : vector<1x64x32xf32> to vector<64x32xf32>
    %cst_220 = arith.constant dense<0.000000e+00> : vector<2x32xf32>
    %188 = tpu.matmul %185, %187, %cst_220 {dimension_numbers = #tpu.dot_dimension_numbers<[1], [0], [0], [1], [0, 0, 1, 1], [], []>} : vector<2x64xf32>, vector<64x32xf32>, vector<2x32xf32> -> vector<2x32xf32>
    %c1_221 = arith.constant 1 : index
    %c0_222 = arith.constant 0 : index
    %c0_223 = arith.constant 0 : index
    %189 = vector.load %arg4[%c1_221, %c0_222, %c0_223] : memref<2x1x32xf32, #tpu.memory_space<vmem>>, vector<1x1x32xf32>
    %190 = vector.shape_cast %189 : vector<1x1x32xf32> to vector<1x32xf32>
    %191 = vector.broadcast %190 : vector<1x32xf32> to vector<2x32xf32>
    %192 = arith.addf %188, %191 : vector<2x32xf32>
    %193 = math.tanh %192 : vector<2x32xf32>
    %c8 = arith.constant 8 : index
    %c0_224 = arith.constant 0 : index
    %c0_225 = arith.constant 0 : index
    %194 = vector.load %arg1[%c8, %c0_224, %c0_225] : memref<10x2x32xf32, #tpu.memory_space<vmem>>, vector<1x2x32xf32>
    %195 = vector.shape_cast %194 : vector<1x2x32xf32> to vector<2x32xf32>
    %c0_226 = arith.constant 0 : index
    %c0_227 = arith.constant 0 : index
    %196 = vector.load %arg11[%c0_226, %c0_227] : memref<2x64xf32, #tpu.memory_space<vmem>>, vector<2x32xf32>
    tpu.vector_store %arg11[%c0_226, %c0_227], %195 {strides = array<i32>} : memref<2x64xf32, #tpu.memory_space<vmem>>, vector<2x32xf32>,
    %c0_228 = arith.constant 0 : index
    %c32_229 = arith.constant 32 : index
    %197 = vector.load %arg11[%c0_228, %c32_229] : memref<2x64xf32, #tpu.memory_space<vmem>>, vector<2x32xf32>
    tpu.vector_store %arg11[%c0_228, %c32_229], %182 {strides = array<i32>} : memref<2x64xf32, #tpu.memory_space<vmem>>, vector<2x32xf32>,
    %c0_230 = arith.constant 0 : index
    %c0_231 = arith.constant 0 : index
    %198 = vector.load %arg11[%c0_230, %c0_231] : memref<2x64xf32, #tpu.memory_space<vmem>>, vector<2x64xf32>
    %c0_232 = arith.constant 0 : index
    %c0_233 = arith.constant 0 : index
    %c0_234 = arith.constant 0 : index
    %199 = vector.load %arg3[%c0_232, %c0_233, %c0_234] : memref<2x64x32xf32, #tpu.memory_space<vmem>>, vector<1x64x32xf32>
    %200 = vector.shape_cast %199 : vector<1x64x32xf32> to vector<64x32xf32>
    %cst_235 = arith.constant dense<0.000000e+00> : vector<2x32xf32>
    %201 = tpu.matmul %198, %200, %cst_235 {dimension_numbers = #tpu.dot_dimension_numbers<[1], [0], [0], [1], [0, 0, 1, 1], [], []>} : vector<2x64xf32>, vector<64x32xf32>, vector<2x32xf32> -> vector<2x32xf32>
    %c0_236 = arith.constant 0 : index
    %c0_237 = arith.constant 0 : index
    %c0_238 = arith.constant 0 : index
    %202 = vector.load %arg4[%c0_236, %c0_237, %c0_238] : memref<2x1x32xf32, #tpu.memory_space<vmem>>, vector<1x1x32xf32>
    %203 = vector.shape_cast %202 : vector<1x1x32xf32> to vector<1x32xf32>
    %204 = vector.broadcast %203 : vector<1x32xf32> to vector<2x32xf32>
    %205 = arith.addf %201, %204 : vector<2x32xf32>
    %206 = math.tanh %205 : vector<2x32xf32>
    %c0_239 = arith.constant 0 : index
    %c0_240 = arith.constant 0 : index
    %207 = vector.load %arg11[%c0_239, %c0_240] : memref<2x64xf32, #tpu.memory_space<vmem>>, vector<2x32xf32>
    tpu.vector_store %arg11[%c0_239, %c0_240], %206 {strides = array<i32>} : memref<2x64xf32, #tpu.memory_space<vmem>>, vector<2x32xf32>,
    %c0_241 = arith.constant 0 : index
    %c32_242 = arith.constant 32 : index
    %208 = vector.load %arg11[%c0_241, %c32_242] : memref<2x64xf32, #tpu.memory_space<vmem>>, vector<2x32xf32>
    tpu.vector_store %arg11[%c0_241, %c32_242], %193 {strides = array<i32>} : memref<2x64xf32, #tpu.memory_space<vmem>>, vector<2x32xf32>,
    %c0_243 = arith.constant 0 : index
    %c0_244 = arith.constant 0 : index
    %209 = vector.load %arg11[%c0_243, %c0_244] : memref<2x64xf32, #tpu.memory_space<vmem>>, vector<2x64xf32>
    %c1_245 = arith.constant 1 : index
    %c0_246 = arith.constant 0 : index
    %c0_247 = arith.constant 0 : index
    %210 = vector.load %arg3[%c1_245, %c0_246, %c0_247] : memref<2x64x32xf32, #tpu.memory_space<vmem>>, vector<1x64x32xf32>
    %211 = vector.shape_cast %210 : vector<1x64x32xf32> to vector<64x32xf32>
    %cst_248 = arith.constant dense<0.000000e+00> : vector<2x32xf32>
    %212 = tpu.matmul %209, %211, %cst_248 {dimension_numbers = #tpu.dot_dimension_numbers<[1], [0], [0], [1], [0, 0, 1, 1], [], []>} : vector<2x64xf32>, vector<64x32xf32>, vector<2x32xf32> -> vector<2x32xf32>
    %c1_249 = arith.constant 1 : index
    %c0_250 = arith.constant 0 : index
    %c0_251 = arith.constant 0 : index
    %213 = vector.load %arg4[%c1_249, %c0_250, %c0_251] : memref<2x1x32xf32, #tpu.memory_space<vmem>>, vector<1x1x32xf32>
    %214 = vector.shape_cast %213 : vector<1x1x32xf32> to vector<1x32xf32>
    %215 = vector.broadcast %214 : vector<1x32xf32> to vector<2x32xf32>
    %216 = arith.addf %212, %215 : vector<2x32xf32>
    %217 = math.tanh %216 : vector<2x32xf32>
    %c9 = arith.constant 9 : index
    %c0_252 = arith.constant 0 : index
    %c0_253 = arith.constant 0 : index
    %218 = vector.load %arg1[%c9, %c0_252, %c0_253] : memref<10x2x32xf32, #tpu.memory_space<vmem>>, vector<1x2x32xf32>
    %219 = vector.shape_cast %218 : vector<1x2x32xf32> to vector<2x32xf32>
    %c0_254 = arith.constant 0 : index
    %c0_255 = arith.constant 0 : index
    %220 = vector.load %arg11[%c0_254, %c0_255] : memref<2x64xf32, #tpu.memory_space<vmem>>, vector<2x32xf32>
    tpu.vector_store %arg11[%c0_254, %c0_255], %219 {strides = array<i32>} : memref<2x64xf32, #tpu.memory_space<vmem>>, vector<2x32xf32>,
    %c0_256 = arith.constant 0 : index
    %c32_257 = arith.constant 32 : index
    %221 = vector.load %arg11[%c0_256, %c32_257] : memref<2x64xf32, #tpu.memory_space<vmem>>, vector<2x32xf32>
    tpu.vector_store %arg11[%c0_256, %c32_257], %206 {strides = array<i32>} : memref<2x64xf32, #tpu.memory_space<vmem>>, vector<2x32xf32>,
    %c0_258 = arith.constant 0 : index
    %c0_259 = arith.constant 0 : index
    %222 = vector.load %arg11[%c0_258, %c0_259] : memref<2x64xf32, #tpu.memory_space<vmem>>, vector<2x64xf32>
    %c0_260 = arith.constant 0 : index
    %c0_261 = arith.constant 0 : index
    %c0_262 = arith.constant 0 : index
    %223 = vector.load %arg3[%c0_260, %c0_261, %c0_262] : memref<2x64x32xf32, #tpu.memory_space<vmem>>, vector<1x64x32xf32>
    %224 = vector.shape_cast %223 : vector<1x64x32xf32> to vector<64x32xf32>
    %cst_263 = arith.constant dense<0.000000e+00> : vector<2x32xf32>
    %225 = tpu.matmul %222, %224, %cst_263 {dimension_numbers = #tpu.dot_dimension_numbers<[1], [0], [0], [1], [0, 0, 1, 1], [], []>} : vector<2x64xf32>, vector<64x32xf32>, vector<2x32xf32> -> vector<2x32xf32>
    %c0_264 = arith.constant 0 : index
    %c0_265 = arith.constant 0 : index
    %c0_266 = arith.constant 0 : index
    %226 = vector.load %arg4[%c0_264, %c0_265, %c0_266] : memref<2x1x32xf32, #tpu.memory_space<vmem>>, vector<1x1x32xf32>
    %227 = vector.shape_cast %226 : vector<1x1x32xf32> to vector<1x32xf32>
    %228 = vector.broadcast %227 : vector<1x32xf32> to vector<2x32xf32>
    %229 = arith.addf %225, %228 : vector<2x32xf32>
    %230 = math.tanh %229 : vector<2x32xf32>
    %c0_267 = arith.constant 0 : index
    %c0_268 = arith.constant 0 : index
    %231 = vector.load %arg11[%c0_267, %c0_268] : memref<2x64xf32, #tpu.memory_space<vmem>>, vector<2x32xf32>
    tpu.vector_store %arg11[%c0_267, %c0_268], %230 {strides = array<i32>} : memref<2x64xf32, #tpu.memory_space<vmem>>, vector<2x32xf32>,
    %c0_269 = arith.constant 0 : index
    %c32_270 = arith.constant 32 : index
    %232 = vector.load %arg11[%c0_269, %c32_270] : memref<2x64xf32, #tpu.memory_space<vmem>>, vector<2x32xf32>
    tpu.vector_store %arg11[%c0_269, %c32_270], %217 {strides = array<i32>} : memref<2x64xf32, #tpu.memory_space<vmem>>, vector<2x32xf32>,
    %cst_271 = arith.constant 0.000000e+00 : f32
    %233 = vector.broadcast %cst_271 : f32 to vector<2x128xf32>
    %c0_272 = arith.constant 0 : index
    %c0_273 = arith.constant 0 : index
    %c0_274 = arith.constant 0 : index
    %234 = vector.load %arg10[%c0_272, %c0_273, %c0_274] : memref<8x2x128xf32, #tpu.memory_space<vmem>>, vector<1x2x128xf32>
    %235 = vector.shape_cast %234 : vector<1x2x128xf32> to vector<2x128xf32>
    %236 = vector.shape_cast %233 : vector<2x128xf32> to vector<1x2x128xf32>
    tpu.vector_store %arg10[%c0_272, %c0_273, %c0_274], %236 {strides = array<i32>} : memref<8x2x128xf32, #tpu.memory_space<vmem>>, vector<1x2x128xf32>,
    %237 = tpu.iota {dimensions = array<i32: 1>} : vector<2x128xi32>
    %238 = arith.sitofp %237 : vector<2x128xi32> to vector<2x128xf32>
    %239 = tpu.iota {dimensions = array<i32: 1>} : vector<2x16xi32>
    %240 = arith.sitofp %239 : vector<2x16xi32> to vector<2x16xf32>
    %cst_275 = arith.constant 1.600000e+01 : f32
    %241 = vector.broadcast %cst_275 : f32 to vector<2x128xf32>
    %242 = arith.cmpf olt, %238, %241 : vector<2x128xf32>
    %c0_276 = arith.constant 0 : index
    %c0_277 = arith.constant 0 : index
    %c0_278 = arith.constant 0 : index
    %243 = vector.load %arg2[%c0_276, %c0_277, %c0_278] : memref<8x2x32xf32, #tpu.memory_space<vmem>>, vector<1x2x32xf32>
    %244 = vector.shape_cast %243 : vector<1x2x32xf32> to vector<2x32xf32>
    %c0_279 = arith.constant 0 : index
    %c0_280 = arith.constant 0 : index
    %245 = vector.load %arg11[%c0_279, %c0_280] : memref<2x64xf32, #tpu.memory_space<vmem>>, vector<2x32xf32>
    tpu.vector_store %arg11[%c0_279, %c0_280], %244 {strides = array<i32>} : memref<2x64xf32, #tpu.memory_space<vmem>>, vector<2x32xf32>,
    %c0_281 = arith.constant 0 : index
    %c32_282 = arith.constant 32 : index
    %246 = vector.load %arg11[%c0_281, %c32_282] : memref<2x64xf32, #tpu.memory_space<vmem>>, vector<2x32xf32>
    tpu.vector_store %arg11[%c0_281, %c32_282], %230 {strides = array<i32>} : memref<2x64xf32, #tpu.memory_space<vmem>>, vector<2x32xf32>,
    %c0_283 = arith.constant 0 : index
    %c0_284 = arith.constant 0 : index
    %247 = vector.load %arg11[%c0_283, %c0_284] : memref<2x64xf32, #tpu.memory_space<vmem>>, vector<2x64xf32>
    %c0_285 = arith.constant 0 : index
    %c0_286 = arith.constant 0 : index
    %c0_287 = arith.constant 0 : index
    %248 = vector.load %arg5[%c0_285, %c0_286, %c0_287] : memref<1x64x32xf32, #tpu.memory_space<vmem>>, vector<1x64x32xf32>
    %249 = vector.shape_cast %248 : vector<1x64x32xf32> to vector<64x32xf32>
    %cst_288 = arith.constant dense<0.000000e+00> : vector<2x32xf32>
    %250 = tpu.matmul %247, %249, %cst_288 {dimension_numbers = #tpu.dot_dimension_numbers<[1], [0], [0], [1], [0, 0, 1, 1], [], []>} : vector<2x64xf32>, vector<64x32xf32>, vector<2x32xf32> -> vector<2x32xf32>
    %c0_289 = arith.constant 0 : index
    %c0_290 = arith.constant 0 : index
    %c0_291 = arith.constant 0 : index
    %251 = vector.load %arg6[%c0_289, %c0_290, %c0_291] : memref<1x1x32xf32, #tpu.memory_space<vmem>>, vector<1x1x32xf32>
    %252 = vector.shape_cast %251 : vector<1x1x32xf32> to vector<1x32xf32>
    %253 = vector.broadcast %252 : vector<1x32xf32> to vector<2x32xf32>
    %254 = arith.addf %250, %253 : vector<2x32xf32>
    %255 = math.tanh %254 : vector<2x32xf32>
    %c0_292 = arith.constant 0 : index
    %c0_293 = arith.constant 0 : index
    %256 = vector.load %arg7[%c0_292, %c0_293] : memref<32x128xf32, #tpu.memory_space<vmem>>, vector<32x128xf32>
    %cst_294 = arith.constant dense<0.000000e+00> : vector<2x128xf32>
    %257 = tpu.matmul %255, %256, %cst_294 {dimension_numbers = #tpu.dot_dimension_numbers<[1], [0], [0], [1], [0, 0, 1, 1], [], []>} : vector<2x32xf32>, vector<32x128xf32>, vector<2x128xf32> -> vector<2x128xf32>
    %c0_295 = arith.constant 0 : index
    %c0_296 = arith.constant 0 : index
    %258 = vector.load %arg8[%c0_295, %c0_296] : memref<1x128xf32, #tpu.memory_space<vmem>>, vector<1x128xf32>
    %259 = vector.broadcast %258 : vector<1x128xf32> to vector<2x128xf32>
    %260 = arith.addf %257, %259 : vector<2x128xf32>
    %c1_297 = arith.constant 1 : index
    %c0_298 = arith.constant 0 : index
    %c0_299 = arith.constant 0 : index
    %261 = vector.load %arg10[%c1_297, %c0_298, %c0_299] : memref<8x2x128xf32, #tpu.memory_space<vmem>>, vector<1x2x128xf32>
    %262 = vector.shape_cast %261 : vector<1x2x128xf32> to vector<2x128xf32>
    %263 = vector.shape_cast %260 : vector<2x128xf32> to vector<1x2x128xf32>
    tpu.vector_store %arg10[%c1_297, %c0_298, %c0_299], %263 {strides = array<i32>} : memref<8x2x128xf32, #tpu.memory_space<vmem>>, vector<1x2x128xf32>,
    %cst_300 = arith.constant -1.000000e+30 : f32
    %264 = vector.broadcast %cst_300 : f32 to vector<2x128xf32>
    %265 = arith.select %242, %260, %264 : vector<2x128xi1>, vector<2x128xf32>
    %cst_301 = arith.constant dense<0xFF800000> : vector<2xf32>
    %266 = vector.multi_reduction <maximumf>, %265, %cst_301 [1] : vector<2x128xf32> to vector<2xf32>
    %267 = vector.shape_cast %266 : vector<2xf32> to vector<2x1xf32>
    %268 = vector.broadcast %267 : vector<2x1xf32> to vector<2x128xf32>
    %269 = arith.cmpf oeq, %265, %268 : vector<2x128xf32>
    %cst_302 = arith.constant 1.280000e+02 : f32
    %270 = vector.broadcast %cst_302 : f32 to vector<2x128xf32>
    %271 = arith.select %269, %238, %270 : vector<2x128xi1>, vector<2x128xf32>
    %cst_303 = arith.constant dense<0x7F800000> : vector<2xf32>
    %272 = vector.multi_reduction <minimumf>, %271, %cst_303 [1] : vector<2x128xf32> to vector<2xf32>
    %273 = vector.shape_cast %272 : vector<2xf32> to vector<2x1xf32>
    %274 = vector.broadcast %273 : vector<2x1xf32> to vector<2x16xf32>
    %275 = arith.cmpf oeq, %240, %274 : vector<2x16xf32>
    %276 = arith.extui %275 : vector<2x16xi1> to vector<2x16xi32>
    %277 = arith.sitofp %276 : vector<2x16xi32> to vector<2x16xf32>
    %c0_304 = arith.constant 0 : index
    %c0_305 = arith.constant 0 : index
    %278 = vector.load %arg9[%c0_304, %c0_305] : memref<16x32xf32, #tpu.memory_space<vmem>>, vector<16x32xf32>
    %cst_306 = arith.constant dense<0.000000e+00> : vector<2x32xf32>
    %279 = tpu.matmul %277, %278, %cst_306 {dimension_numbers = #tpu.dot_dimension_numbers<[1], [0], [0], [1], [0, 0, 1, 1], [], []>} : vector<2x16xf32>, vector<16x32xf32>, vector<2x32xf32> -> vector<2x32xf32>
    %c1_307 = arith.constant 1 : index
    %280 = memref.load %arg0[%c1_307] : memref<8xi32, #tpu.memory_space<smem>>
    %281 = arith.sitofp %280 : i32 to f32
    %c1_308 = arith.constant 1 : index
    %c0_309 = arith.constant 0 : index
    %c0_310 = arith.constant 0 : index
    %282 = vector.load %arg2[%c1_308, %c0_309, %c0_310] : memref<8x2x32xf32, #tpu.memory_space<vmem>>, vector<1x2x32xf32>
    %283 = vector.shape_cast %282 : vector<1x2x32xf32> to vector<2x32xf32>
    %284 = vector.broadcast %281 : f32 to vector<2x32xf32>
    %285 = arith.mulf %284, %283 : vector<2x32xf32>
    %cst_311 = arith.constant 1.000000e+00 : f32
    %286 = arith.subf %cst_311, %281 : f32
    %287 = vector.broadcast %286 : f32 to vector<2x32xf32>
    %288 = arith.mulf %287, %279 : vector<2x32xf32>
    %289 = arith.addf %285, %288 : vector<2x32xf32>
    %c0_312 = arith.constant 0 : index
    %c0_313 = arith.constant 0 : index
    %290 = vector.load %arg11[%c0_312, %c0_313] : memref<2x64xf32, #tpu.memory_space<vmem>>, vector<2x32xf32>
    tpu.vector_store %arg11[%c0_312, %c0_313], %289 {strides = array<i32>} : memref<2x64xf32, #tpu.memory_space<vmem>>, vector<2x32xf32>,
    %c0_314 = arith.constant 0 : index
    %c32_315 = arith.constant 32 : index
    %291 = vector.load %arg11[%c0_314, %c32_315] : memref<2x64xf32, #tpu.memory_space<vmem>>, vector<2x32xf32>
    tpu.vector_store %arg11[%c0_314, %c32_315], %255 {strides = array<i32>} : memref<2x64xf32, #tpu.memory_space<vmem>>, vector<2x32xf32>,
    %c0_316 = arith.constant 0 : index
    %c0_317 = arith.constant 0 : index
    %292 = vector.load %arg11[%c0_316, %c0_317] : memref<2x64xf32, #tpu.memory_space<vmem>>, vector<2x64xf32>
    %c0_318 = arith.constant 0 : index
    %c0_319 = arith.constant 0 : index
    %c0_320 = arith.constant 0 : index
    %293 = vector.load %arg5[%c0_318, %c0_319, %c0_320] : memref<1x64x32xf32, #tpu.memory_space<vmem>>, vector<1x64x32xf32>
    %294 = vector.shape_cast %293 : vector<1x64x32xf32> to vector<64x32xf32>
    %cst_321 = arith.constant dense<0.000000e+00> : vector<2x32xf32>
    %295 = tpu.matmul %292, %294, %cst_321 {dimension_numbers = #tpu.dot_dimension_numbers<[1], [0], [0], [1], [0, 0, 1, 1], [], []>} : vector<2x64xf32>, vector<64x32xf32>, vector<2x32xf32> -> vector<2x32xf32>
    %c0_322 = arith.constant 0 : index
    %c0_323 = arith.constant 0 : index
    %c0_324 = arith.constant 0 : index
    %296 = vector.load %arg6[%c0_322, %c0_323, %c0_324] : memref<1x1x32xf32, #tpu.memory_space<vmem>>, vector<1x1x32xf32>
    %297 = vector.shape_cast %296 : vector<1x1x32xf32> to vector<1x32xf32>
    %298 = vector.broadcast %297 : vector<1x32xf32> to vector<2x32xf32>
    %299 = arith.addf %295, %298 : vector<2x32xf32>
    %300 = math.tanh %299 : vector<2x32xf32>
    %c0_325 = arith.constant 0 : index
    %c0_326 = arith.constant 0 : index
    %301 = vector.load %arg7[%c0_325, %c0_326] : memref<32x128xf32, #tpu.memory_space<vmem>>, vector<32x128xf32>
    %cst_327 = arith.constant dense<0.000000e+00> : vector<2x128xf32>
    %302 = tpu.matmul %300, %301, %cst_327 {dimension_numbers = #tpu.dot_dimension_numbers<[1], [0], [0], [1], [0, 0, 1, 1], [], []>} : vector<2x32xf32>, vector<32x128xf32>, vector<2x128xf32> -> vector<2x128xf32>
    %c0_328 = arith.constant 0 : index
    %c0_329 = arith.constant 0 : index
    %303 = vector.load %arg8[%c0_328, %c0_329] : memref<1x128xf32, #tpu.memory_space<vmem>>, vector<1x128xf32>
    %304 = vector.broadcast %303 : vector<1x128xf32> to vector<2x128xf32>
    %305 = arith.addf %302, %304 : vector<2x128xf32>
    %c2_330 = arith.constant 2 : index
    %c0_331 = arith.constant 0 : index
    %c0_332 = arith.constant 0 : index
    %306 = vector.load %arg10[%c2_330, %c0_331, %c0_332] : memref<8x2x128xf32, #tpu.memory_space<vmem>>, vector<1x2x128xf32>
    %307 = vector.shape_cast %306 : vector<1x2x128xf32> to vector<2x128xf32>
    %308 = vector.shape_cast %305 : vector<2x128xf32> to vector<1x2x128xf32>
    tpu.vector_store %arg10[%c2_330, %c0_331, %c0_332], %308 {strides = array<i32>} : memref<8x2x128xf32, #tpu.memory_space<vmem>>, vector<1x2x128xf32>,
    %cst_333 = arith.constant -1.000000e+30 : f32
    %309 = vector.broadcast %cst_333 : f32 to vector<2x128xf32>
    %310 = arith.select %242, %305, %309 : vector<2x128xi1>, vector<2x128xf32>
    %cst_334 = arith.constant dense<0xFF800000> : vector<2xf32>
    %311 = vector.multi_reduction <maximumf>, %310, %cst_334 [1] : vector<2x128xf32> to vector<2xf32>
    %312 = vector.shape_cast %311 : vector<2xf32> to vector<2x1xf32>
    %313 = vector.broadcast %312 : vector<2x1xf32> to vector<2x128xf32>
    %314 = arith.cmpf oeq, %310, %313 : vector<2x128xf32>
    %cst_335 = arith.constant 1.280000e+02 : f32
    %315 = vector.broadcast %cst_335 : f32 to vector<2x128xf32>
    %316 = arith.select %314, %238, %315 : vector<2x128xi1>, vector<2x128xf32>
    %cst_336 = arith.constant dense<0x7F800000> : vector<2xf32>
    %317 = vector.multi_reduction <minimumf>, %316, %cst_336 [1] : vector<2x128xf32> to vector<2xf32>
    %318 = vector.shape_cast %317 : vector<2xf32> to vector<2x1xf32>
    %319 = vector.broadcast %318 : vector<2x1xf32> to vector<2x16xf32>
    %320 = arith.cmpf oeq, %240, %319 : vector<2x16xf32>
    %321 = arith.extui %320 : vector<2x16xi1> to vector<2x16xi32>
    %322 = arith.sitofp %321 : vector<2x16xi32> to vector<2x16xf32>
    %c0_337 = arith.constant 0 : index
    %c0_338 = arith.constant 0 : index
    %323 = vector.load %arg9[%c0_337, %c0_338] : memref<16x32xf32, #tpu.memory_space<vmem>>, vector<16x32xf32>
    %cst_339 = arith.constant dense<0.000000e+00> : vector<2x32xf32>
    %324 = tpu.matmul %322, %323, %cst_339 {dimension_numbers = #tpu.dot_dimension_numbers<[1], [0], [0], [1], [0, 0, 1, 1], [], []>} : vector<2x16xf32>, vector<16x32xf32>, vector<2x32xf32> -> vector<2x32xf32>
    %c2_340 = arith.constant 2 : index
    %325 = memref.load %arg0[%c2_340] : memref<8xi32, #tpu.memory_space<smem>>
    %326 = arith.sitofp %325 : i32 to f32
    %c2_341 = arith.constant 2 : index
    %c0_342 = arith.constant 0 : index
    %c0_343 = arith.constant 0 : index
    %327 = vector.load %arg2[%c2_341, %c0_342, %c0_343] : memref<8x2x32xf32, #tpu.memory_space<vmem>>, vector<1x2x32xf32>
    %328 = vector.shape_cast %327 : vector<1x2x32xf32> to vector<2x32xf32>
    %329 = vector.broadcast %326 : f32 to vector<2x32xf32>
    %330 = arith.mulf %329, %328 : vector<2x32xf32>
    %cst_344 = arith.constant 1.000000e+00 : f32
    %331 = arith.subf %cst_344, %326 : f32
    %332 = vector.broadcast %331 : f32 to vector<2x32xf32>
    %333 = arith.mulf %332, %324 : vector<2x32xf32>
    %334 = arith.addf %330, %333 : vector<2x32xf32>
    %c0_345 = arith.constant 0 : index
    %c0_346 = arith.constant 0 : index
    %335 = vector.load %arg11[%c0_345, %c0_346] : memref<2x64xf32, #tpu.memory_space<vmem>>, vector<2x32xf32>
    tpu.vector_store %arg11[%c0_345, %c0_346], %334 {strides = array<i32>} : memref<2x64xf32, #tpu.memory_space<vmem>>, vector<2x32xf32>,
    %c0_347 = arith.constant 0 : index
    %c32_348 = arith.constant 32 : index
    %336 = vector.load %arg11[%c0_347, %c32_348] : memref<2x64xf32, #tpu.memory_space<vmem>>, vector<2x32xf32>
    tpu.vector_store %arg11[%c0_347, %c32_348], %300 {strides = array<i32>} : memref<2x64xf32, #tpu.memory_space<vmem>>, vector<2x32xf32>,
    %c0_349 = arith.constant 0 : index
    %c0_350 = arith.constant 0 : index
    %337 = vector.load %arg11[%c0_349, %c0_350] : memref<2x64xf32, #tpu.memory_space<vmem>>, vector<2x64xf32>
    %c0_351 = arith.constant 0 : index
    %c0_352 = arith.constant 0 : index
    %c0_353 = arith.constant 0 : index
    %338 = vector.load %arg5[%c0_351, %c0_352, %c0_353] : memref<1x64x32xf32, #tpu.memory_space<vmem>>, vector<1x64x32xf32>
    %339 = vector.shape_cast %338 : vector<1x64x32xf32> to vector<64x32xf32>
    %cst_354 = arith.constant dense<0.000000e+00> : vector<2x32xf32>
    %340 = tpu.matmul %337, %339, %cst_354 {dimension_numbers = #tpu.dot_dimension_numbers<[1], [0], [0], [1], [0, 0, 1, 1], [], []>} : vector<2x64xf32>, vector<64x32xf32>, vector<2x32xf32> -> vector<2x32xf32>
    %c0_355 = arith.constant 0 : index
    %c0_356 = arith.constant 0 : index
    %c0_357 = arith.constant 0 : index
    %341 = vector.load %arg6[%c0_355, %c0_356, %c0_357] : memref<1x1x32xf32, #tpu.memory_space<vmem>>, vector<1x1x32xf32>
    %342 = vector.shape_cast %341 : vector<1x1x32xf32> to vector<1x32xf32>
    %343 = vector.broadcast %342 : vector<1x32xf32> to vector<2x32xf32>
    %344 = arith.addf %340, %343 : vector<2x32xf32>
    %345 = math.tanh %344 : vector<2x32xf32>
    %c0_358 = arith.constant 0 : index
    %c0_359 = arith.constant 0 : index
    %346 = vector.load %arg7[%c0_358, %c0_359] : memref<32x128xf32, #tpu.memory_space<vmem>>, vector<32x128xf32>
    %cst_360 = arith.constant dense<0.000000e+00> : vector<2x128xf32>
    %347 = tpu.matmul %345, %346, %cst_360 {dimension_numbers = #tpu.dot_dimension_numbers<[1], [0], [0], [1], [0, 0, 1, 1], [], []>} : vector<2x32xf32>, vector<32x128xf32>, vector<2x128xf32> -> vector<2x128xf32>
    %c0_361 = arith.constant 0 : index
    %c0_362 = arith.constant 0 : index
    %348 = vector.load %arg8[%c0_361, %c0_362] : memref<1x128xf32, #tpu.memory_space<vmem>>, vector<1x128xf32>
    %349 = vector.broadcast %348 : vector<1x128xf32> to vector<2x128xf32>
    %350 = arith.addf %347, %349 : vector<2x128xf32>
    %c3_363 = arith.constant 3 : index
    %c0_364 = arith.constant 0 : index
    %c0_365 = arith.constant 0 : index
    %351 = vector.load %arg10[%c3_363, %c0_364, %c0_365] : memref<8x2x128xf32, #tpu.memory_space<vmem>>, vector<1x2x128xf32>
    %352 = vector.shape_cast %351 : vector<1x2x128xf32> to vector<2x128xf32>
    %353 = vector.shape_cast %350 : vector<2x128xf32> to vector<1x2x128xf32>
    tpu.vector_store %arg10[%c3_363, %c0_364, %c0_365], %353 {strides = array<i32>} : memref<8x2x128xf32, #tpu.memory_space<vmem>>, vector<1x2x128xf32>,
    %cst_366 = arith.constant -1.000000e+30 : f32
    %354 = vector.broadcast %cst_366 : f32 to vector<2x128xf32>
    %355 = arith.select %242, %350, %354 : vector<2x128xi1>, vector<2x128xf32>
    %cst_367 = arith.constant dense<0xFF800000> : vector<2xf32>
    %356 = vector.multi_reduction <maximumf>, %355, %cst_367 [1] : vector<2x128xf32> to vector<2xf32>
    %357 = vector.shape_cast %356 : vector<2xf32> to vector<2x1xf32>
    %358 = vector.broadcast %357 : vector<2x1xf32> to vector<2x128xf32>
    %359 = arith.cmpf oeq, %355, %358 : vector<2x128xf32>
    %cst_368 = arith.constant 1.280000e+02 : f32
    %360 = vector.broadcast %cst_368 : f32 to vector<2x128xf32>
    %361 = arith.select %359, %238, %360 : vector<2x128xi1>, vector<2x128xf32>
    %cst_369 = arith.constant dense<0x7F800000> : vector<2xf32>
    %362 = vector.multi_reduction <minimumf>, %361, %cst_369 [1] : vector<2x128xf32> to vector<2xf32>
    %363 = vector.shape_cast %362 : vector<2xf32> to vector<2x1xf32>
    %364 = vector.broadcast %363 : vector<2x1xf32> to vector<2x16xf32>
    %365 = arith.cmpf oeq, %240, %364 : vector<2x16xf32>
    %366 = arith.extui %365 : vector<2x16xi1> to vector<2x16xi32>
    %367 = arith.sitofp %366 : vector<2x16xi32> to vector<2x16xf32>
    %c0_370 = arith.constant 0 : index
    %c0_371 = arith.constant 0 : index
    %368 = vector.load %arg9[%c0_370, %c0_371] : memref<16x32xf32, #tpu.memory_space<vmem>>, vector<16x32xf32>
    %cst_372 = arith.constant dense<0.000000e+00> : vector<2x32xf32>
    %369 = tpu.matmul %367, %368, %cst_372 {dimension_numbers = #tpu.dot_dimension_numbers<[1], [0], [0], [1], [0, 0, 1, 1], [], []>} : vector<2x16xf32>, vector<16x32xf32>, vector<2x32xf32> -> vector<2x32xf32>
    %c3_373 = arith.constant 3 : index
    %370 = memref.load %arg0[%c3_373] : memref<8xi32, #tpu.memory_space<smem>>
    %371 = arith.sitofp %370 : i32 to f32
    %c3_374 = arith.constant 3 : index
    %c0_375 = arith.constant 0 : index
    %c0_376 = arith.constant 0 : index
    %372 = vector.load %arg2[%c3_374, %c0_375, %c0_376] : memref<8x2x32xf32, #tpu.memory_space<vmem>>, vector<1x2x32xf32>
    %373 = vector.shape_cast %372 : vector<1x2x32xf32> to vector<2x32xf32>
    %374 = vector.broadcast %371 : f32 to vector<2x32xf32>
    %375 = arith.mulf %374, %373 : vector<2x32xf32>
    %cst_377 = arith.constant 1.000000e+00 : f32
    %376 = arith.subf %cst_377, %371 : f32
    %377 = vector.broadcast %376 : f32 to vector<2x32xf32>
    %378 = arith.mulf %377, %369 : vector<2x32xf32>
    %379 = arith.addf %375, %378 : vector<2x32xf32>
    %c0_378 = arith.constant 0 : index
    %c0_379 = arith.constant 0 : index
    %380 = vector.load %arg11[%c0_378, %c0_379] : memref<2x64xf32, #tpu.memory_space<vmem>>, vector<2x32xf32>
    tpu.vector_store %arg11[%c0_378, %c0_379], %379 {strides = array<i32>} : memref<2x64xf32, #tpu.memory_space<vmem>>, vector<2x32xf32>,
    %c0_380 = arith.constant 0 : index
    %c32_381 = arith.constant 32 : index
    %381 = vector.load %arg11[%c0_380, %c32_381] : memref<2x64xf32, #tpu.memory_space<vmem>>, vector<2x32xf32>
    tpu.vector_store %arg11[%c0_380, %c32_381], %345 {strides = array<i32>} : memref<2x64xf32, #tpu.memory_space<vmem>>, vector<2x32xf32>,
    %c0_382 = arith.constant 0 : index
    %c0_383 = arith.constant 0 : index
    %382 = vector.load %arg11[%c0_382, %c0_383] : memref<2x64xf32, #tpu.memory_space<vmem>>, vector<2x64xf32>
    %c0_384 = arith.constant 0 : index
    %c0_385 = arith.constant 0 : index
    %c0_386 = arith.constant 0 : index
    %383 = vector.load %arg5[%c0_384, %c0_385, %c0_386] : memref<1x64x32xf32, #tpu.memory_space<vmem>>, vector<1x64x32xf32>
    %384 = vector.shape_cast %383 : vector<1x64x32xf32> to vector<64x32xf32>
    %cst_387 = arith.constant dense<0.000000e+00> : vector<2x32xf32>
    %385 = tpu.matmul %382, %384, %cst_387 {dimension_numbers = #tpu.dot_dimension_numbers<[1], [0], [0], [1], [0, 0, 1, 1], [], []>} : vector<2x64xf32>, vector<64x32xf32>, vector<2x32xf32> -> vector<2x32xf32>
    %c0_388 = arith.constant 0 : index
    %c0_389 = arith.constant 0 : index
    %c0_390 = arith.constant 0 : index
    %386 = vector.load %arg6[%c0_388, %c0_389, %c0_390] : memref<1x1x32xf32, #tpu.memory_space<vmem>>, vector<1x1x32xf32>
    %387 = vector.shape_cast %386 : vector<1x1x32xf32> to vector<1x32xf32>
    %388 = vector.broadcast %387 : vector<1x32xf32> to vector<2x32xf32>
    %389 = arith.addf %385, %388 : vector<2x32xf32>
    %390 = math.tanh %389 : vector<2x32xf32>
    %c0_391 = arith.constant 0 : index
    %c0_392 = arith.constant 0 : index
    %391 = vector.load %arg7[%c0_391, %c0_392] : memref<32x128xf32, #tpu.memory_space<vmem>>, vector<32x128xf32>
    %cst_393 = arith.constant dense<0.000000e+00> : vector<2x128xf32>
    %392 = tpu.matmul %390, %391, %cst_393 {dimension_numbers = #tpu.dot_dimension_numbers<[1], [0], [0], [1], [0, 0, 1, 1], [], []>} : vector<2x32xf32>, vector<32x128xf32>, vector<2x128xf32> -> vector<2x128xf32>
    %c0_394 = arith.constant 0 : index
    %c0_395 = arith.constant 0 : index
    %393 = vector.load %arg8[%c0_394, %c0_395] : memref<1x128xf32, #tpu.memory_space<vmem>>, vector<1x128xf32>
    %394 = vector.broadcast %393 : vector<1x128xf32> to vector<2x128xf32>
    %395 = arith.addf %392, %394 : vector<2x128xf32>
    %c4_396 = arith.constant 4 : index
    %c0_397 = arith.constant 0 : index
    %c0_398 = arith.constant 0 : index
    %396 = vector.load %arg10[%c4_396, %c0_397, %c0_398] : memref<8x2x128xf32, #tpu.memory_space<vmem>>, vector<1x2x128xf32>
    %397 = vector.shape_cast %396 : vector<1x2x128xf32> to vector<2x128xf32>
    %398 = vector.shape_cast %395 : vector<2x128xf32> to vector<1x2x128xf32>
    tpu.vector_store %arg10[%c4_396, %c0_397, %c0_398], %398 {strides = array<i32>} : memref<8x2x128xf32, #tpu.memory_space<vmem>>, vector<1x2x128xf32>,
    %cst_399 = arith.constant -1.000000e+30 : f32
    %399 = vector.broadcast %cst_399 : f32 to vector<2x128xf32>
    %400 = arith.select %242, %395, %399 : vector<2x128xi1>, vector<2x128xf32>
    %cst_400 = arith.constant dense<0xFF800000> : vector<2xf32>
    %401 = vector.multi_reduction <maximumf>, %400, %cst_400 [1] : vector<2x128xf32> to vector<2xf32>
    %402 = vector.shape_cast %401 : vector<2xf32> to vector<2x1xf32>
    %403 = vector.broadcast %402 : vector<2x1xf32> to vector<2x128xf32>
    %404 = arith.cmpf oeq, %400, %403 : vector<2x128xf32>
    %cst_401 = arith.constant 1.280000e+02 : f32
    %405 = vector.broadcast %cst_401 : f32 to vector<2x128xf32>
    %406 = arith.select %404, %238, %405 : vector<2x128xi1>, vector<2x128xf32>
    %cst_402 = arith.constant dense<0x7F800000> : vector<2xf32>
    %407 = vector.multi_reduction <minimumf>, %406, %cst_402 [1] : vector<2x128xf32> to vector<2xf32>
    %408 = vector.shape_cast %407 : vector<2xf32> to vector<2x1xf32>
    %409 = vector.broadcast %408 : vector<2x1xf32> to vector<2x16xf32>
    %410 = arith.cmpf oeq, %240, %409 : vector<2x16xf32>
    %411 = arith.extui %410 : vector<2x16xi1> to vector<2x16xi32>
    %412 = arith.sitofp %411 : vector<2x16xi32> to vector<2x16xf32>
    %c0_403 = arith.constant 0 : index
    %c0_404 = arith.constant 0 : index
    %413 = vector.load %arg9[%c0_403, %c0_404] : memref<16x32xf32, #tpu.memory_space<vmem>>, vector<16x32xf32>
    %cst_405 = arith.constant dense<0.000000e+00> : vector<2x32xf32>
    %414 = tpu.matmul %412, %413, %cst_405 {dimension_numbers = #tpu.dot_dimension_numbers<[1], [0], [0], [1], [0, 0, 1, 1], [], []>} : vector<2x16xf32>, vector<16x32xf32>, vector<2x32xf32> -> vector<2x32xf32>
    %c4_406 = arith.constant 4 : index
    %415 = memref.load %arg0[%c4_406] : memref<8xi32, #tpu.memory_space<smem>>
    %416 = arith.sitofp %415 : i32 to f32
    %c4_407 = arith.constant 4 : index
    %c0_408 = arith.constant 0 : index
    %c0_409 = arith.constant 0 : index
    %417 = vector.load %arg2[%c4_407, %c0_408, %c0_409] : memref<8x2x32xf32, #tpu.memory_space<vmem>>, vector<1x2x32xf32>
    %418 = vector.shape_cast %417 : vector<1x2x32xf32> to vector<2x32xf32>
    %419 = vector.broadcast %416 : f32 to vector<2x32xf32>
    %420 = arith.mulf %419, %418 : vector<2x32xf32>
    %cst_410 = arith.constant 1.000000e+00 : f32
    %421 = arith.subf %cst_410, %416 : f32
    %422 = vector.broadcast %421 : f32 to vector<2x32xf32>
    %423 = arith.mulf %422, %414 : vector<2x32xf32>
    %424 = arith.addf %420, %423 : vector<2x32xf32>
    %c0_411 = arith.constant 0 : index
    %c0_412 = arith.constant 0 : index
    %425 = vector.load %arg11[%c0_411, %c0_412] : memref<2x64xf32, #tpu.memory_space<vmem>>, vector<2x32xf32>
    tpu.vector_store %arg11[%c0_411, %c0_412], %424 {strides = array<i32>} : memref<2x64xf32, #tpu.memory_space<vmem>>, vector<2x32xf32>,
    %c0_413 = arith.constant 0 : index
    %c32_414 = arith.constant 32 : index
    %426 = vector.load %arg11[%c0_413, %c32_414] : memref<2x64xf32, #tpu.memory_space<vmem>>, vector<2x32xf32>
    tpu.vector_store %arg11[%c0_413, %c32_414], %390 {strides = array<i32>} : memref<2x64xf32, #tpu.memory_space<vmem>>, vector<2x32xf32>,
    %c0_415 = arith.constant 0 : index
    %c0_416 = arith.constant 0 : index
    %427 = vector.load %arg11[%c0_415, %c0_416] : memref<2x64xf32, #tpu.memory_space<vmem>>, vector<2x64xf32>
    %c0_417 = arith.constant 0 : index
    %c0_418 = arith.constant 0 : index
    %c0_419 = arith.constant 0 : index
    %428 = vector.load %arg5[%c0_417, %c0_418, %c0_419] : memref<1x64x32xf32, #tpu.memory_space<vmem>>, vector<1x64x32xf32>
    %429 = vector.shape_cast %428 : vector<1x64x32xf32> to vector<64x32xf32>
    %cst_420 = arith.constant dense<0.000000e+00> : vector<2x32xf32>
    %430 = tpu.matmul %427, %429, %cst_420 {dimension_numbers = #tpu.dot_dimension_numbers<[1], [0], [0], [1], [0, 0, 1, 1], [], []>} : vector<2x64xf32>, vector<64x32xf32>, vector<2x32xf32> -> vector<2x32xf32>
    %c0_421 = arith.constant 0 : index
    %c0_422 = arith.constant 0 : index
    %c0_423 = arith.constant 0 : index
    %431 = vector.load %arg6[%c0_421, %c0_422, %c0_423] : memref<1x1x32xf32, #tpu.memory_space<vmem>>, vector<1x1x32xf32>
    %432 = vector.shape_cast %431 : vector<1x1x32xf32> to vector<1x32xf32>
    %433 = vector.broadcast %432 : vector<1x32xf32> to vector<2x32xf32>
    %434 = arith.addf %430, %433 : vector<2x32xf32>
    %435 = math.tanh %434 : vector<2x32xf32>
    %c0_424 = arith.constant 0 : index
    %c0_425 = arith.constant 0 : index
    %436 = vector.load %arg7[%c0_424, %c0_425] : memref<32x128xf32, #tpu.memory_space<vmem>>, vector<32x128xf32>
    %cst_426 = arith.constant dense<0.000000e+00> : vector<2x128xf32>
    %437 = tpu.matmul %435, %436, %cst_426 {dimension_numbers = #tpu.dot_dimension_numbers<[1], [0], [0], [1], [0, 0, 1, 1], [], []>} : vector<2x32xf32>, vector<32x128xf32>, vector<2x128xf32> -> vector<2x128xf32>
    %c0_427 = arith.constant 0 : index
    %c0_428 = arith.constant 0 : index
    %438 = vector.load %arg8[%c0_427, %c0_428] : memref<1x128xf32, #tpu.memory_space<vmem>>, vector<1x128xf32>
    %439 = vector.broadcast %438 : vector<1x128xf32> to vector<2x128xf32>
    %440 = arith.addf %437, %439 : vector<2x128xf32>
    %c5_429 = arith.constant 5 : index
    %c0_430 = arith.constant 0 : index
    %c0_431 = arith.constant 0 : index
    %441 = vector.load %arg10[%c5_429, %c0_430, %c0_431] : memref<8x2x128xf32, #tpu.memory_space<vmem>>, vector<1x2x128xf32>
    %442 = vector.shape_cast %441 : vector<1x2x128xf32> to vector<2x128xf32>
    %443 = vector.shape_cast %440 : vector<2x128xf32> to vector<1x2x128xf32>
    tpu.vector_store %arg10[%c5_429, %c0_430, %c0_431], %443 {strides = array<i32>} : memref<8x2x128xf32, #tpu.memory_space<vmem>>, vector<1x2x128xf32>,
    %cst_432 = arith.constant -1.000000e+30 : f32
    %444 = vector.broadcast %cst_432 : f32 to vector<2x128xf32>
    %445 = arith.select %242, %440, %444 : vector<2x128xi1>, vector<2x128xf32>
    %cst_433 = arith.constant dense<0xFF800000> : vector<2xf32>
    %446 = vector.multi_reduction <maximumf>, %445, %cst_433 [1] : vector<2x128xf32> to vector<2xf32>
    %447 = vector.shape_cast %446 : vector<2xf32> to vector<2x1xf32>
    %448 = vector.broadcast %447 : vector<2x1xf32> to vector<2x128xf32>
    %449 = arith.cmpf oeq, %445, %448 : vector<2x128xf32>
    %cst_434 = arith.constant 1.280000e+02 : f32
    %450 = vector.broadcast %cst_434 : f32 to vector<2x128xf32>
    %451 = arith.select %449, %238, %450 : vector<2x128xi1>, vector<2x128xf32>
    %cst_435 = arith.constant dense<0x7F800000> : vector<2xf32>
    %452 = vector.multi_reduction <minimumf>, %451, %cst_435 [1] : vector<2x128xf32> to vector<2xf32>
    %453 = vector.shape_cast %452 : vector<2xf32> to vector<2x1xf32>
    %454 = vector.broadcast %453 : vector<2x1xf32> to vector<2x16xf32>
    %455 = arith.cmpf oeq, %240, %454 : vector<2x16xf32>
    %456 = arith.extui %455 : vector<2x16xi1> to vector<2x16xi32>
    %457 = arith.sitofp %456 : vector<2x16xi32> to vector<2x16xf32>
    %c0_436 = arith.constant 0 : index
    %c0_437 = arith.constant 0 : index
    %458 = vector.load %arg9[%c0_436, %c0_437] : memref<16x32xf32, #tpu.memory_space<vmem>>, vector<16x32xf32>
    %cst_438 = arith.constant dense<0.000000e+00> : vector<2x32xf32>
    %459 = tpu.matmul %457, %458, %cst_438 {dimension_numbers = #tpu.dot_dimension_numbers<[1], [0], [0], [1], [0, 0, 1, 1], [], []>} : vector<2x16xf32>, vector<16x32xf32>, vector<2x32xf32> -> vector<2x32xf32>
    %c5_439 = arith.constant 5 : index
    %460 = memref.load %arg0[%c5_439] : memref<8xi32, #tpu.memory_space<smem>>
    %461 = arith.sitofp %460 : i32 to f32
    %c5_440 = arith.constant 5 : index
    %c0_441 = arith.constant 0 : index
    %c0_442 = arith.constant 0 : index
    %462 = vector.load %arg2[%c5_440, %c0_441, %c0_442] : memref<8x2x32xf32, #tpu.memory_space<vmem>>, vector<1x2x32xf32>
    %463 = vector.shape_cast %462 : vector<1x2x32xf32> to vector<2x32xf32>
    %464 = vector.broadcast %461 : f32 to vector<2x32xf32>
    %465 = arith.mulf %464, %463 : vector<2x32xf32>
    %cst_443 = arith.constant 1.000000e+00 : f32
    %466 = arith.subf %cst_443, %461 : f32
    %467 = vector.broadcast %466 : f32 to vector<2x32xf32>
    %468 = arith.mulf %467, %459 : vector<2x32xf32>
    %469 = arith.addf %465, %468 : vector<2x32xf32>
    %c0_444 = arith.constant 0 : index
    %c0_445 = arith.constant 0 : index
    %470 = vector.load %arg11[%c0_444, %c0_445] : memref<2x64xf32, #tpu.memory_space<vmem>>, vector<2x32xf32>
    tpu.vector_store %arg11[%c0_444, %c0_445], %469 {strides = array<i32>} : memref<2x64xf32, #tpu.memory_space<vmem>>, vector<2x32xf32>,
    %c0_446 = arith.constant 0 : index
    %c32_447 = arith.constant 32 : index
    %471 = vector.load %arg11[%c0_446, %c32_447] : memref<2x64xf32, #tpu.memory_space<vmem>>, vector<2x32xf32>
    tpu.vector_store %arg11[%c0_446, %c32_447], %435 {strides = array<i32>} : memref<2x64xf32, #tpu.memory_space<vmem>>, vector<2x32xf32>,
    %c0_448 = arith.constant 0 : index
    %c0_449 = arith.constant 0 : index
    %472 = vector.load %arg11[%c0_448, %c0_449] : memref<2x64xf32, #tpu.memory_space<vmem>>, vector<2x64xf32>
    %c0_450 = arith.constant 0 : index
    %c0_451 = arith.constant 0 : index
    %c0_452 = arith.constant 0 : index
    %473 = vector.load %arg5[%c0_450, %c0_451, %c0_452] : memref<1x64x32xf32, #tpu.memory_space<vmem>>, vector<1x64x32xf32>
    %474 = vector.shape_cast %473 : vector<1x64x32xf32> to vector<64x32xf32>
    %cst_453 = arith.constant dense<0.000000e+00> : vector<2x32xf32>
    %475 = tpu.matmul %472, %474, %cst_453 {dimension_numbers = #tpu.dot_dimension_numbers<[1], [0], [0], [1], [0, 0, 1, 1], [], []>} : vector<2x64xf32>, vector<64x32xf32>, vector<2x32xf32> -> vector<2x32xf32>
    %c0_454 = arith.constant 0 : index
    %c0_455 = arith.constant 0 : index
    %c0_456 = arith.constant 0 : index
    %476 = vector.load %arg6[%c0_454, %c0_455, %c0_456] : memref<1x1x32xf32, #tpu.memory_space<vmem>>, vector<1x1x32xf32>
    %477 = vector.shape_cast %476 : vector<1x1x32xf32> to vector<1x32xf32>
    %478 = vector.broadcast %477 : vector<1x32xf32> to vector<2x32xf32>
    %479 = arith.addf %475, %478 : vector<2x32xf32>
    %480 = math.tanh %479 : vector<2x32xf32>
    %c0_457 = arith.constant 0 : index
    %c0_458 = arith.constant 0 : index
    %481 = vector.load %arg7[%c0_457, %c0_458] : memref<32x128xf32, #tpu.memory_space<vmem>>, vector<32x128xf32>
    %cst_459 = arith.constant dense<0.000000e+00> : vector<2x128xf32>
    %482 = tpu.matmul %480, %481, %cst_459 {dimension_numbers = #tpu.dot_dimension_numbers<[1], [0], [0], [1], [0, 0, 1, 1], [], []>} : vector<2x32xf32>, vector<32x128xf32>, vector<2x128xf32> -> vector<2x128xf32>
    %c0_460 = arith.constant 0 : index
    %c0_461 = arith.constant 0 : index
    %483 = vector.load %arg8[%c0_460, %c0_461] : memref<1x128xf32, #tpu.memory_space<vmem>>, vector<1x128xf32>
    %484 = vector.broadcast %483 : vector<1x128xf32> to vector<2x128xf32>
    %485 = arith.addf %482, %484 : vector<2x128xf32>
    %c6_462 = arith.constant 6 : index
    %c0_463 = arith.constant 0 : index
    %c0_464 = arith.constant 0 : index
    %486 = vector.load %arg10[%c6_462, %c0_463, %c0_464] : memref<8x2x128xf32, #tpu.memory_space<vmem>>, vector<1x2x128xf32>
    %487 = vector.shape_cast %486 : vector<1x2x128xf32> to vector<2x128xf32>
    %488 = vector.shape_cast %485 : vector<2x128xf32> to vector<1x2x128xf32>
    tpu.vector_store %arg10[%c6_462, %c0_463, %c0_464], %488 {strides = array<i32>} : memref<8x2x128xf32, #tpu.memory_space<vmem>>, vector<1x2x128xf32>,
    %cst_465 = arith.constant -1.000000e+30 : f32
    %489 = vector.broadcast %cst_465 : f32 to vector<2x128xf32>
    %490 = arith.select %242, %485, %489 : vector<2x128xi1>, vector<2x128xf32>
    %cst_466 = arith.constant dense<0xFF800000> : vector<2xf32>
    %491 = vector.multi_reduction <maximumf>, %490, %cst_466 [1] : vector<2x128xf32> to vector<2xf32>
    %492 = vector.shape_cast %491 : vector<2xf32> to vector<2x1xf32>
    %493 = vector.broadcast %492 : vector<2x1xf32> to vector<2x128xf32>
    %494 = arith.cmpf oeq, %490, %493 : vector<2x128xf32>
    %cst_467 = arith.constant 1.280000e+02 : f32
    %495 = vector.broadcast %cst_467 : f32 to vector<2x128xf32>
    %496 = arith.select %494, %238, %495 : vector<2x128xi1>, vector<2x128xf32>
    %cst_468 = arith.constant dense<0x7F800000> : vector<2xf32>
    %497 = vector.multi_reduction <minimumf>, %496, %cst_468 [1] : vector<2x128xf32> to vector<2xf32>
    %498 = vector.shape_cast %497 : vector<2xf32> to vector<2x1xf32>
    %499 = vector.broadcast %498 : vector<2x1xf32> to vector<2x16xf32>
    %500 = arith.cmpf oeq, %240, %499 : vector<2x16xf32>
    %501 = arith.extui %500 : vector<2x16xi1> to vector<2x16xi32>
    %502 = arith.sitofp %501 : vector<2x16xi32> to vector<2x16xf32>
    %c0_469 = arith.constant 0 : index
    %c0_470 = arith.constant 0 : index
    %503 = vector.load %arg9[%c0_469, %c0_470] : memref<16x32xf32, #tpu.memory_space<vmem>>, vector<16x32xf32>
    %cst_471 = arith.constant dense<0.000000e+00> : vector<2x32xf32>
    %504 = tpu.matmul %502, %503, %cst_471 {dimension_numbers = #tpu.dot_dimension_numbers<[1], [0], [0], [1], [0, 0, 1, 1], [], []>} : vector<2x16xf32>, vector<16x32xf32>, vector<2x32xf32> -> vector<2x32xf32>
    %c6_472 = arith.constant 6 : index
    %505 = memref.load %arg0[%c6_472] : memref<8xi32, #tpu.memory_space<smem>>
    %506 = arith.sitofp %505 : i32 to f32
    %c6_473 = arith.constant 6 : index
    %c0_474 = arith.constant 0 : index
    %c0_475 = arith.constant 0 : index
    %507 = vector.load %arg2[%c6_473, %c0_474, %c0_475] : memref<8x2x32xf32, #tpu.memory_space<vmem>>, vector<1x2x32xf32>
    %508 = vector.shape_cast %507 : vector<1x2x32xf32> to vector<2x32xf32>
    %509 = vector.broadcast %506 : f32 to vector<2x32xf32>
    %510 = arith.mulf %509, %508 : vector<2x32xf32>
    %cst_476 = arith.constant 1.000000e+00 : f32
    %511 = arith.subf %cst_476, %506 : f32
    %512 = vector.broadcast %511 : f32 to vector<2x32xf32>
    %513 = arith.mulf %512, %504 : vector<2x32xf32>
    %514 = arith.addf %510, %513 : vector<2x32xf32>
    %c0_477 = arith.constant 0 : index
    %c0_478 = arith.constant 0 : index
    %515 = vector.load %arg11[%c0_477, %c0_478] : memref<2x64xf32, #tpu.memory_space<vmem>>, vector<2x32xf32>
    tpu.vector_store %arg11[%c0_477, %c0_478], %514 {strides = array<i32>} : memref<2x64xf32, #tpu.memory_space<vmem>>, vector<2x32xf32>,
    %c0_479 = arith.constant 0 : index
    %c32_480 = arith.constant 32 : index
    %516 = vector.load %arg11[%c0_479, %c32_480] : memref<2x64xf32, #tpu.memory_space<vmem>>, vector<2x32xf32>
    tpu.vector_store %arg11[%c0_479, %c32_480], %480 {strides = array<i32>} : memref<2x64xf32, #tpu.memory_space<vmem>>, vector<2x32xf32>,
    %c0_481 = arith.constant 0 : index
    %c0_482 = arith.constant 0 : index
    %517 = vector.load %arg11[%c0_481, %c0_482] : memref<2x64xf32, #tpu.memory_space<vmem>>, vector<2x64xf32>
    %c0_483 = arith.constant 0 : index
    %c0_484 = arith.constant 0 : index
    %c0_485 = arith.constant 0 : index
    %518 = vector.load %arg5[%c0_483, %c0_484, %c0_485] : memref<1x64x32xf32, #tpu.memory_space<vmem>>, vector<1x64x32xf32>
    %519 = vector.shape_cast %518 : vector<1x64x32xf32> to vector<64x32xf32>
    %cst_486 = arith.constant dense<0.000000e+00> : vector<2x32xf32>
    %520 = tpu.matmul %517, %519, %cst_486 {dimension_numbers = #tpu.dot_dimension_numbers<[1], [0], [0], [1], [0, 0, 1, 1], [], []>} : vector<2x64xf32>, vector<64x32xf32>, vector<2x32xf32> -> vector<2x32xf32>
    %c0_487 = arith.constant 0 : index
    %c0_488 = arith.constant 0 : index
    %c0_489 = arith.constant 0 : index
    %521 = vector.load %arg6[%c0_487, %c0_488, %c0_489] : memref<1x1x32xf32, #tpu.memory_space<vmem>>, vector<1x1x32xf32>
    %522 = vector.shape_cast %521 : vector<1x1x32xf32> to vector<1x32xf32>
    %523 = vector.broadcast %522 : vector<1x32xf32> to vector<2x32xf32>
    %524 = arith.addf %520, %523 : vector<2x32xf32>
    %525 = math.tanh %524 : vector<2x32xf32>
    %c0_490 = arith.constant 0 : index
    %c0_491 = arith.constant 0 : index
    %526 = vector.load %arg7[%c0_490, %c0_491] : memref<32x128xf32, #tpu.memory_space<vmem>>, vector<32x128xf32>
    %cst_492 = arith.constant dense<0.000000e+00> : vector<2x128xf32>
    %527 = tpu.matmul %525, %526, %cst_492 {dimension_numbers = #tpu.dot_dimension_numbers<[1], [0], [0], [1], [0, 0, 1, 1], [], []>} : vector<2x32xf32>, vector<32x128xf32>, vector<2x128xf32> -> vector<2x128xf32>
    %c0_493 = arith.constant 0 : index
    %c0_494 = arith.constant 0 : index
    %528 = vector.load %arg8[%c0_493, %c0_494] : memref<1x128xf32, #tpu.memory_space<vmem>>, vector<1x128xf32>
    %529 = vector.broadcast %528 : vector<1x128xf32> to vector<2x128xf32>
    %530 = arith.addf %527, %529 : vector<2x128xf32>
    %c7_495 = arith.constant 7 : index
    %c0_496 = arith.constant 0 : index
    %c0_497 = arith.constant 0 : index
    %531 = vector.load %arg10[%c7_495, %c0_496, %c0_497] : memref<8x2x128xf32, #tpu.memory_space<vmem>>, vector<1x2x128xf32>
    %532 = vector.shape_cast %531 : vector<1x2x128xf32> to vector<2x128xf32>
    %533 = vector.shape_cast %530 : vector<2x128xf32> to vector<1x2x128xf32>
    tpu.vector_store %arg10[%c7_495, %c0_496, %c0_497], %533 {strides = array<i32>} : memref<8x2x128xf32, #tpu.memory_space<vmem>>, vector<1x2x128xf32>,
    return
  }
}

</mosaic_0001>

<llo_original>
// kernel: seq2seq_pallas.1
$region0: #{seq2seq_pallas.1}
  #allocation0 [shape = 'u32[]', space=smem, size = 0x4, offset = 0x4, fixed_abs, tag = 'smem constant byte address 0x4 - core index']
  #allocation1 [shape = 'u32[72,128]{1,0:T(1,128)}', space=vmem, size = 0x9000, scoped, tag = 'internal scratch']
  #allocation2 [shape = 'f32[2,64]{1,0:T(2,128)}', space=vmem, size = 0x400, scoped, tag = 'scratch operand']
  %s0 = inlined_call_operand.vmem [shape: s32[8], index: 0, kind: input, shape index: {}]
  %s1 = inlined_call_operand.vmem [shape: f32[10,2,32], index: 1, kind: input, shape index: {}]
  %s2 = inlined_call_operand.vmem [shape: f32[8,2,32], index: 2, kind: input, shape index: {}]
  %s3 = inlined_call_operand.vmem [shape: f32[2,64,32], index: 3, kind: input, shape index: {}]
  %s4 = inlined_call_operand.vmem [shape: f32[2,1,32], index: 4, kind: input, shape index: {}]
  %s5 = inlined_call_operand.vmem [shape: f32[1,64,32], index: 5, kind: input, shape index: {}]
  %s6 = inlined_call_operand.vmem [shape: f32[1,1,32], index: 6, kind: input, shape index: {}]
  %s7 = inlined_call_operand.vmem [shape: f32[32,128], index: 7, kind: input, shape index: {}]
  %s8 = inlined_call_operand.vmem [shape: f32[1,128], index: 8, kind: input, shape index: {}]
  %s9 = inlined_call_operand.vmem [shape: f32[16,32], index: 9, kind: input, shape index: {}]
  %s10 = inlined_call_operand.vmem [shape: f32[8,2,128], index: 10, kind: output, shape index: {}]
  %s11 = sld [smem:[#allocation0]]
  $region54: #{seq2seq_pallas.1} parent=0
    _
  %s13 = ssub.s32 1, %s11
  %s14 = scalar_select 0, %s13, %s11
  $region1: #{seq2seq_pallas.1} parent=0
    #allocation3 [shape = 'u8[512]{0}', space=smem, size = 0x200, scoped, tag = 'input window, operand 0, single buffered']
    #allocation4 [shape = 's32[1]{0}', space=sflag, size = 0x4, scoped, tag = 'scoped memory for seq2seq_pallas.1']
    %15 = vsyncpa [#allocation4], 0
    // Predicated region
    $region2: #{seq2seq_pallas.1} parent=1 // pred_check
      _
    $region3: #{seq2seq_pallas.1} parent=1 // pred_check_branch
      %17 = sbr.rel (0) target = $region5
    $region4: #{seq2seq_pallas.1} parent=1 // pred_region
      %19 = vsyncadd [#allocation4], 0
      %s21 = sshll.u32 %s0, 4
      %s22 = int_to_ptr.vmem [resolvable:$true] %s21
      %24 = dma.vmem_to_smem %s22, 16, [#allocation3], [#allocation4]
    $region5: #{seq2seq_pallas.1} parent=1 // pred_fallthru
      _
    // Predicated region
    $region6: #{seq2seq_pallas.1} parent=1 // pred_check
      _
    $region7: #{seq2seq_pallas.1} parent=1 // pred_check_branch
      %26 = sbr.rel (0) target = $region9
    $region8: #{seq2seq_pallas.1} parent=1 // pred_region
      _
    $region9: #{seq2seq_pallas.1} parent=1 // pred_fallthru
      _
    // Predicated region
    $region10: #{seq2seq_pallas.1} parent=1 // pred_check
      _
    $region11: #{seq2seq_pallas.1} parent=1 // pred_check_branch
      %28 = sbr.rel (0) target = $region13
    $region12: #{seq2seq_pallas.1} parent=1 // pred_region
      _
    $region13: #{seq2seq_pallas.1} parent=1 // pred_fallthru
      _
    // Predicated region
    $region14: #{seq2seq_pallas.1} parent=1 // pred_check
      _
    $region15: #{seq2seq_pallas.1} parent=1 // pred_check_branch
      %30 = sbr.rel (0) target = $region17
    $region16: #{seq2seq_pallas.1} parent=1 // pred_region
      _
    $region17: #{seq2seq_pallas.1} parent=1 // pred_fallthru
      _
    // Predicated region
    $region18: #{seq2seq_pallas.1} parent=1 // pred_check
      _
    $region19: #{seq2seq_pallas.1} parent=1 // pred_check_branch
      %32 = sbr.rel (0) target = $region21
    $region20: #{seq2seq_pallas.1} parent=1 // pred_region
      _
    $region21: #{seq2seq_pallas.1} parent=1 // pred_fallthru
      _
    // Predicated region
    $region22: #{seq2seq_pallas.1} parent=1 // pred_check
      _
    $region23: #{seq2seq_pallas.1} parent=1 // pred_check_branch
      %34 = sbr.rel (0) target = $region25
    $region24: #{seq2seq_pallas.1} parent=1 // pred_region
      _
    $region25: #{seq2seq_pallas.1} parent=1 // pred_fallthru
      _
    // Predicated region
    $region26: #{seq2seq_pallas.1} parent=1 // pred_check
      _
    $region27: #{seq2seq_pallas.1} parent=1 // pred_check_branch
      %36 = sbr.rel (0) target = $region29
    $region28: #{seq2seq_pallas.1} parent=1 // pred_region
      _
    $region29: #{seq2seq_pallas.1} parent=1 // pred_fallthru
      _
    // Predicated region
    $region30: #{seq2seq_pallas.1} parent=1 // pred_check
      _
    $region31: #{seq2seq_pallas.1} parent=1 // pred_check_branch
      %38 = sbr.rel (0) target = $region33
    $region32: #{seq2seq_pallas.1} parent=1 // pred_region
      _
    $region33: #{seq2seq_pallas.1} parent=1 // pred_fallthru
      _
    // Predicated region
    $region34: #{seq2seq_pallas.1} parent=1 // pred_check
      _
    $region35: #{seq2seq_pallas.1} parent=1 // pred_check_branch
      %40 = sbr.rel (0) target = $region37
    $region36: #{seq2seq_pallas.1} parent=1 // pred_region
      _
    $region37: #{seq2seq_pallas.1} parent=1 // pred_fallthru
      _
    // Predicated region
    $region38: #{seq2seq_pallas.1} parent=1 // pred_check
      _
    $region39: #{seq2seq_pallas.1} parent=1 // pred_check_branch
      %42 = sbr.rel (0) target = $region41
    $region40: #{seq2seq_pallas.1} parent=1 // pred_region
      _
    $region41: #{seq2seq_pallas.1} parent=1 // pred_fallthru
      _
    // Predicated region
    $region42: #{seq2seq_pallas.1} parent=1 // pred_check
      _
    $region43: #{seq2seq_pallas.1} parent=1 // pred_check_branch
      %44 = sbr.rel (0) target = $region45
    $region44: #{seq2seq_pallas.1} parent=1 // pred_region
      %46 = dma.done [#allocation4], 16
    $region45: #{seq2seq_pallas.1} parent=1 // pred_fallthru
      _
    %47 = sfence
    %v48 = vld [vmem:[%s1] sm:$0x3]
    %vm49 = vcmask 254976
    %50 = vst.msk [vmem:[#allocation2] sm:$0x3] %vm49, %v48
    %vm51 = vcmask 517376
    %52 = vst.msk [vmem:[#allocation2] sm:$0x3] %vm51, 0.0
    %v53 = vld [vmem:[#allocation2] sm:$0x3]
    %v54 = vld [vmem:[%s3] sm:$0xff]
    %v55 = vld [vmem:[%s3 + $0x8] sm:$0xff]
    %v56 = vld [vmem:[%s3 + $0x10] sm:$0xff]
    %v57 = vld [vmem:[%s3 + $0x18] sm:$0xff]
    %v58 = vld [vmem:[%s3 + $0x20] sm:$0xff]
    %v59 = vld [vmem:[%s3 + $0x28] sm:$0xff]
    %v60 = vld [vmem:[%s3 + $0x30] sm:$0xff]
    %v61 = vld [vmem:[%s3 + $0x38] sm:$0xff]
    %v62 = vld [vmem:[%s4] sm:$0x1]
    %v64 = vperm.slane %v62, 0
    %vm66 = vcmask 523264
    %v68 = vsel %vm66, %v53, 0
    %70 = vmatpush.msra.mxu0 0.0
    %71 = vmatpush.msra.mxu0 0.0
    %72 = vmatpush.msra.mxu0 0.0
    %73 = vmatpush.msra.mxu0 0.0
    %74 = vmatpush.msra.mxu0 0.0
    %75 = vmatpush.msra.mxu0 0.0
    %76 = vmatpush.msra.mxu0 0.0
    %77 = vmatpush.msra.mxu0 0.0
    %78 = vmatpush.msra.mxu0 %v61
    %79 = vmatpush.msra.mxu0 %v60
    %80 = vmatpush.msra.mxu0 %v59
    %81 = vmatpush.msra.mxu0 %v58
    %82 = vmatpush.msra.mxu0 %v57
    %83 = vmatpush.msra.mxu0 %v56
    %84 = vmatpush.msra.mxu0 %v55
    %85 = vmatpush.msra.mxu0 %v54
    %86 = vmatmul.f32.gmra.mxu0 %v68
    %v87 = vpop.f32.mrf.mxu0
    %v88 = vadd.f32 %v64, %v87
    %89 = vdwg.mxu0
    %v90 = vtanh.pop %v88
    %91 = vst.msk [vmem:[#allocation2] sm:$0x3] %vm49, %v90
    %92 = vst.msk [vmem:[#allocation2] sm:$0x3] %vm51, 0.0
    %v93 = vld [vmem:[#allocation2] sm:$0x3]
    %s94 = scalar_lea.vmem %s3, 64
    %v95 = vld [vmem:[%s94] sm:$0xff]
    %v96 = vld [vmem:[%s94 + $0x8] sm:$0xff]
    %v97 = vld [vmem:[%s94 + $0x10] sm:$0xff]
    %v98 = vld [vmem:[%s94 + $0x18] sm:$0xff]
    %v99 = vld [vmem:[%s94 + $0x20] sm:$0xff]
    %v100 = vld [vmem:[%s94 + $0x28] sm:$0xff]
    %v101 = vld [vmem:[%s94 + $0x30] sm:$0xff]
    %v102 = vld [vmem:[%s94 + $0x38] sm:$0xff]
    %s103 = scalar_lea.vmem %s4, 1
    %v104 = vld [vmem:[%s103] sm:$0x1]
    %v106 = vperm.slane %v104, 0
    %v109 = vsel %vm66, %v93, 0
    %111 = vmatpush.msra.mxu0 0.0
    %112 = vmatpush.msra.mxu0 0.0
    %113 = vmatpush.msra.mxu0 0.0
    %114 = vmatpush.msra.mxu0 0.0
    %115 = vmatpush.msra.mxu0 0.0
    %116 = vmatpush.msra.mxu0 0.0
    %117 = vmatpush.msra.mxu0 0.0
    %118 = vmatpush.msra.mxu0 0.0
    %119 = vmatpush.msra.mxu0 %v102
    %120 = vmatpush.msra.mxu0 %v101
    %121 = vmatpush.msra.mxu0 %v100
    %122 = vmatpush.msra.mxu0 %v99
    %123 = vmatpush.msra.mxu0 %v98
    %124 = vmatpush.msra.mxu0 %v97
    %125 = vmatpush.msra.mxu0 %v96
    %126 = vmatpush.msra.mxu0 %v95
    %127 = vmatmul.f32.gmra.mxu0 %v109
    %v128 = vpop.f32.mrf.mxu0
    %v129 = vadd.f32 %v106, %v128
    %130 = vdwg.mxu0
    %v131 = vtanh.pop %v129
    %s132 = scalar_lea.vmem %s1, 2
    %v133 = vld [vmem:[%s132] sm:$0x3]
    %134 = vst.msk [vmem:[#allocation2] sm:$0x3] %vm49, %v133
    %136 = vrot.lane.b32.xlu0 %v90, 32
    %v137 = vpop.permute.xlu0 %136
    %139 = vst.msk [vmem:[#allocation2] sm:$0x3] %vm51, %v137
    %v140 = vld [vmem:[#allocation2] sm:$0x3]
    %v141 = vld [vmem:[%s3] sm:$0xff]
    %v142 = vld [vmem:[%s3 + $0x8] sm:$0xff]
    %v143 = vld [vmem:[%s3 + $0x10] sm:$0xff]
    %v144 = vld [vmem:[%s3 + $0x18] sm:$0xff]
    %v145 = vld [vmem:[%s3 + $0x20] sm:$0xff]
    %v146 = vld [vmem:[%s3 + $0x28] sm:$0xff]
    %v147 = vld [vmem:[%s3 + $0x30] sm:$0xff]
    %v148 = vld [vmem:[%s3 + $0x38] sm:$0xff]
    %v149 = vld [vmem:[%s4] sm:$0x1]
    %v151 = vperm.slane %v149, 0
    %v154 = vsel %vm66, %v140, 0
    %156 = vmatpush.msra.mxu0 0.0
    %157 = vmatpush.msra.mxu0 0.0
    %158 = vmatpush.msra.mxu0 0.0
    %159 = vmatpush.msra.mxu0 0.0
    %160 = vmatpush.msra.mxu0 0.0
    %161 = vmatpush.msra.mxu0 0.0
    %162 = vmatpush.msra.mxu0 0.0
    %163 = vmatpush.msra.mxu0 0.0
    %164 = vmatpush.msra.mxu0 %v148
    %165 = vmatpush.msra.mxu0 %v147
    %166 = vmatpush.msra.mxu0 %v146
    %167 = vmatpush.msra.mxu0 %v145
    %168 = vmatpush.msra.mxu0 %v144
    %169 = vmatpush.msra.mxu0 %v143
    %170 = vmatpush.msra.mxu0 %v142
    %171 = vmatpush.msra.mxu0 %v141
    %172 = vmatmul.f32.gmra.mxu0 %v154
    %v173 = vpop.f32.mrf.mxu0
    %v174 = vadd.f32 %v151, %v173
    %175 = vdwg.mxu0
    %v176 = vtanh.pop %v174
    %177 = vst.msk [vmem:[#allocation2] sm:$0x3] %vm49, %v176
    %179 = vrot.lane.b32.xlu0 %v131, 32
    %v180 = vpop.permute.xlu0 %179
    %182 = vst.msk [vmem:[#allocation2] sm:$0x3] %vm51, %v180
    %v183 = vld [vmem:[#allocation2] sm:$0x3]
    %v184 = vld [vmem:[%s94] sm:$0xff]
    %v185 = vld [vmem:[%s94 + $0x8] sm:$0xff]
    %v186 = vld [vmem:[%s94 + $0x10] sm:$0xff]
    %v187 = vld [vmem:[%s94 + $0x18] sm:$0xff]
    %v188 = vld [vmem:[%s94 + $0x20] sm:$0xff]
    %v189 = vld [vmem:[%s94 + $0x28] sm:$0xff]
    %v190 = vld [vmem:[%s94 + $0x30] sm:$0xff]
    %v191 = vld [vmem:[%s94 + $0x38] sm:$0xff]
    %v192 = vld [vmem:[%s103] sm:$0x1]
    %v194 = vperm.slane %v192, 0
    %v197 = vsel %vm66, %v183, 0
    %199 = vmatpush.msra.mxu0 0.0
    %200 = vmatpush.msra.mxu0 0.0
    %201 = vmatpush.msra.mxu0 0.0
    %202 = vmatpush.msra.mxu0 0.0
    %203 = vmatpush.msra.mxu0 0.0
    %204 = vmatpush.msra.mxu0 0.0
    %205 = vmatpush.msra.mxu0 0.0
    %206 = vmatpush.msra.mxu0 0.0
    %207 = vmatpush.msra.mxu0 %v191
    %208 = vmatpush.msra.mxu0 %v190
    %209 = vmatpush.msra.mxu0 %v189
    %210 = vmatpush.msra.mxu0 %v188
    %211 = vmatpush.msra.mxu0 %v187
    %212 = vmatpush.msra.mxu0 %v186
    %213 = vmatpush.msra.mxu0 %v185
    %214 = vmatpush.msra.mxu0 %v184
    %215 = vmatmul.f32.gmra.mxu0 %v197
    %v216 = vpop.f32.mrf.mxu0
    %v217 = vadd.f32 %v194, %v216
    %218 = vdwg.mxu0
    %v219 = vtanh.pop %v217
    %s220 = scalar_lea.vmem %s1, 4
    %v221 = vld [vmem:[%s220] sm:$0x3]
    %222 = vst.msk [vmem:[#allocation2] sm:$0x3] %vm49, %v221
    %224 = vrot.lane.b32.xlu0 %v176, 32
    %v225 = vpop.permute.xlu0 %224
    %227 = vst.msk [vmem:[#allocation2] sm:$0x3] %vm51, %v225
    %v228 = vld [vmem:[#allocation2] sm:$0x3]
    %v229 = vld [vmem:[%s3] sm:$0xff]
    %v230 = vld [vmem:[%s3 + $0x8] sm:$0xff]
    %v231 = vld [vmem:[%s3 + $0x10] sm:$0xff]
    %v232 = vld [vmem:[%s3 + $0x18] sm:$0xff]
    %v233 = vld [vmem:[%s3 + $0x20] sm:$0xff]
    %v234 = vld [vmem:[%s3 + $0x28] sm:$0xff]
    %v235 = vld [vmem:[%s3 + $0x30] sm:$0xff]
    %v236 = vld [vmem:[%s3 + $0x38] sm:$0xff]
    %v237 = vld [vmem:[%s4] sm:$0x1]
    %v239 = vperm.slane %v237, 0
    %v242 = vsel %vm66, %v228, 0
    %244 = vmatpush.msra.mxu0 0.0
    %245 = vmatpush.msra.mxu0 0.0
    %246 = vmatpush.msra.mxu0 0.0
    %247 = vmatpush.msra.mxu0 0.0
    %248 = vmatpush.msra.mxu0 0.0
    %249 = vmatpush.msra.mxu0 0.0
    %250 = vmatpush.msra.mxu0 0.0
    %251 = vmatpush.msra.mxu0 0.0
    %252 = vmatpush.msra.mxu0 %v236
    %253 = vmatpush.msra.mxu0 %v235
    %254 = vmatpush.msra.mxu0 %v234
    %255 = vmatpush.msra.mxu0 %v233
    %256 = vmatpush.msra.mxu0 %v232
    %257 = vmatpush.msra.mxu0 %v231
    %258 = vmatpush.msra.mxu0 %v230
    %259 = vmatpush.msra.mxu0 %v229
    %260 = vmatmul.f32.gmra.mxu0 %v242
    %v261 = vpop.f32.mrf.mxu0
    %v262 = vadd.f32 %v239, %v261
    %263 = vdwg.mxu0
    %v264 = vtanh.pop %v262
    %265 = vst.msk [vmem:[#allocation2] sm:$0x3] %vm49, %v264
    %267 = vrot.lane.b32.xlu0 %v219, 32
    %v268 = vpop.permute.xlu0 %267
    %270 = vst.msk [vmem:[#allocation2] sm:$0x3] %vm51, %v268
    %v271 = vld [vmem:[#allocation2] sm:$0x3]
    %v272 = vld [vmem:[%s94] sm:$0xff]
    %v273 = vld [vmem:[%s94 + $0x8] sm:$0xff]
    %v274 = vld [vmem:[%s94 + $0x10] sm:$0xff]
    %v275 = vld [vmem:[%s94 + $0x18] sm:$0xff]
    %v276 = vld [vmem:[%s94 + $0x20] sm:$0xff]
    %v277 = vld [vmem:[%s94 + $0x28] sm:$0xff]
    %v278 = vld [vmem:[%s94 + $0x30] sm:$0xff]
    %v279 = vld [vmem:[%s94 + $0x38] sm:$0xff]
    %v280 = vld [vmem:[%s103] sm:$0x1]
    %v282 = vperm.slane %v280, 0
    %v285 = vsel %vm66, %v271, 0
    %287 = vmatpush.msra.mxu0 0.0
    %288 = vmatpush.msra.mxu0 0.0
    %289 = vmatpush.msra.mxu0 0.0
    %290 = vmatpush.msra.mxu0 0.0
    %291 = vmatpush.msra.mxu0 0.0
    %292 = vmatpush.msra.mxu0 0.0
    %293 = vmatpush.msra.mxu0 0.0
    %294 = vmatpush.msra.mxu0 0.0
    %295 = vmatpush.msra.mxu0 %v279
    %296 = vmatpush.msra.mxu0 %v278
    %297 = vmatpush.msra.mxu0 %v277
    %298 = vmatpush.msra.mxu0 %v276
    %299 = vmatpush.msra.mxu0 %v275
    %300 = vmatpush.msra.mxu0 %v274
    %301 = vmatpush.msra.mxu0 %v273
    %302 = vmatpush.msra.mxu0 %v272
    %303 = vmatmul.f32.gmra.mxu0 %v285
    %v304 = vpop.f32.mrf.mxu0
    %v305 = vadd.f32 %v282, %v304
    %306 = vdwg.mxu0
    %v307 = vtanh.pop %v305
    %s308 = scalar_lea.vmem %s1, 6
    %v309 = vld [vmem:[%s308] sm:$0x3]
    %310 = vst.msk [vmem:[#allocation2] sm:$0x3] %vm49, %v309
    %312 = vrot.lane.b32.xlu0 %v264, 32
    %v313 = vpop.permute.xlu0 %312
    %315 = vst.msk [vmem:[#allocation2] sm:$0x3] %vm51, %v313
    %v316 = vld [vmem:[#allocation2] sm:$0x3]
    %v317 = vld [vmem:[%s3] sm:$0xff]
    %v318 = vld [vmem:[%s3 + $0x8] sm:$0xff]
    %v319 = vld [vmem:[%s3 + $0x10] sm:$0xff]
    %v320 = vld [vmem:[%s3 + $0x18] sm:$0xff]
    %v321 = vld [vmem:[%s3 + $0x20] sm:$0xff]
    %v322 = vld [vmem:[%s3 + $0x28] sm:$0xff]
    %v323 = vld [vmem:[%s3 + $0x30] sm:$0xff]
    %v324 = vld [vmem:[%s3 + $0x38] sm:$0xff]
    %v325 = vld [vmem:[%s4] sm:$0x1]
    %v327 = vperm.slane %v325, 0
    %v330 = vsel %vm66, %v316, 0
    %332 = vmatpush.msra.mxu0 0.0
    %333 = vmatpush.msra.mxu0 0.0
    %334 = vmatpush.msra.mxu0 0.0
    %335 = vmatpush.msra.mxu0 0.0
    %336 = vmatpush.msra.mxu0 0.0
    %337 = vmatpush.msra.mxu0 0.0
    %338 = vmatpush.msra.mxu0 0.0
    %339 = vmatpush.msra.mxu0 0.0
    %340 = vmatpush.msra.mxu0 %v324
    %341 = vmatpush.msra.mxu0 %v323
    %342 = vmatpush.msra.mxu0 %v322
    %343 = vmatpush.msra.mxu0 %v321
    %344 = vmatpush.msra.mxu0 %v320
    %345 = vmatpush.msra.mxu0 %v319
    %346 = vmatpush.msra.mxu0 %v318
    %347 = vmatpush.msra.mxu0 %v317
    %348 = vmatmul.f32.gmra.mxu0 %v330
    %v349 = vpop.f32.mrf.mxu0
    %v350 = vadd.f32 %v327, %v349
    %351 = vdwg.mxu0
    %v352 = vtanh.pop %v350
    %353 = vst.msk [vmem:[#allocation2] sm:$0x3] %vm49, %v352
    %355 = vrot.lane.b32.xlu0 %v307, 32
    %v356 = vpop.permute.xlu0 %355
    %358 = vst.msk [vmem:[#allocation2] sm:$0x3] %vm51, %v356
    %v359 = vld [vmem:[#allocation2] sm:$0x3]
    %v360 = vld [vmem:[%s94] sm:$0xff]
    %v361 = vld [vmem:[%s94 + $0x8] sm:$0xff]
    %v362 = vld [vmem:[%s94 + $0x10] sm:$0xff]
    %v363 = vld [vmem:[%s94 + $0x18] sm:$0xff]
    %v364 = vld [vmem:[%s94 + $0x20] sm:$0xff]
    %v365 = vld [vmem:[%s94 + $0x28] sm:$0xff]
    %v366 = vld [vmem:[%s94 + $0x30] sm:$0xff]
    %v367 = vld [vmem:[%s94 + $0x38] sm:$0xff]
    %v368 = vld [vmem:[%s103] sm:$0x1]
    %v370 = vperm.slane %v368, 0
    %v373 = vsel %vm66, %v359, 0
    %375 = vmatpush.msra.mxu0 0.0
    %376 = vmatpush.msra.mxu0 0.0
    %377 = vmatpush.msra.mxu0 0.0
    %378 = vmatpush.msra.mxu0 0.0
    %379 = vmatpush.msra.mxu0 0.0
    %380 = vmatpush.msra.mxu0 0.0
    %381 = vmatpush.msra.mxu0 0.0
    %382 = vmatpush.msra.mxu0 0.0
    %383 = vmatpush.msra.mxu0 %v367
    %384 = vmatpush.msra.mxu0 %v366
    %385 = vmatpush.msra.mxu0 %v365
    %386 = vmatpush.msra.mxu0 %v364
    %387 = vmatpush.msra.mxu0 %v363
    %388 = vmatpush.msra.mxu0 %v362
    %389 = vmatpush.msra.mxu0 %v361
    %390 = vmatpush.msra.mxu0 %v360
    %391 = vmatmul.f32.gmra.mxu0 %v373
    %v392 = vpop.f32.mrf.mxu0
    %v393 = vadd.f32 %v370, %v392
    %394 = vdwg.mxu0
    %v395 = vtanh.pop %v393
    %s396 = scalar_lea.vmem %s1, 8
    %v397 = vld [vmem:[%s396] sm:$0x3]
    %398 = vst.msk [vmem:[#allocation2] sm:$0x3] %vm49, %v397
    %400 = vrot.lane.b32.xlu0 %v352, 32
    %v401 = vpop.permute.xlu0 %400
    %403 = vst.msk [vmem:[#allocation2] sm:$0x3] %vm51, %v401
    %v404 = vld [vmem:[#allocation2] sm:$0x3]
    %v405 = vld [vmem:[%s3] sm:$0xff]
    %v406 = vld [vmem:[%s3 + $0x8] sm:$0xff]
    %v407 = vld [vmem:[%s3 + $0x10] sm:$0xff]
    %v408 = vld [vmem:[%s3 + $0x18] sm:$0xff]
    %v409 = vld [vmem:[%s3 + $0x20] sm:$0xff]
    %v410 = vld [vmem:[%s3 + $0x28] sm:$0xff]
    %v411 = vld [vmem:[%s3 + $0x30] sm:$0xff]
    %v412 = vld [vmem:[%s3 + $0x38] sm:$0xff]
    %v413 = vld [vmem:[%s4] sm:$0x1]
    %v415 = vperm.slane %v413, 0
    %v418 = vsel %vm66, %v404, 0
    %420 = vmatpush.msra.mxu0 0.0
    %421 = vmatpush.msra.mxu0 0.0
    %422 = vmatpush.msra.mxu0 0.0
    %423 = vmatpush.msra.mxu0 0.0
    %424 = vmatpush.msra.mxu0 0.0
    %425 = vmatpush.msra.mxu0 0.0
    %426 = vmatpush.msra.mxu0 0.0
    %427 = vmatpush.msra.mxu0 0.0
    %428 = vmatpush.msra.mxu0 %v412
    %429 = vmatpush.msra.mxu0 %v411
    %430 = vmatpush.msra.mxu0 %v410
    %431 = vmatpush.msra.mxu0 %v409
    %432 = vmatpush.msra.mxu0 %v408
    %433 = vmatpush.msra.mxu0 %v407
    %434 = vmatpush.msra.mxu0 %v406
    %435 = vmatpush.msra.mxu0 %v405
    %436 = vmatmul.f32.gmra.mxu0 %v418
    %v437 = vpop.f32.mrf.mxu0
    %v438 = vadd.f32 %v415, %v437
    %439 = vdwg.mxu0
    %v440 = vtanh.pop %v438
    %441 = vst.msk [vmem:[#allocation2] sm:$0x3] %vm49, %v440
    %443 = vrot.lane.b32.xlu0 %v395, 32
    %v444 = vpop.permute.xlu0 %443
    %446 = vst.msk [vmem:[#allocation2] sm:$0x3] %vm51, %v444
    %v447 = vld [vmem:[#allocation2] sm:$0x3]
    %v448 = vld [vmem:[%s94] sm:$0xff]
    %v449 = vld [vmem:[%s94 + $0x8] sm:$0xff]
    %v450 = vld [vmem:[%s94 + $0x10] sm:$0xff]
    %v451 = vld [vmem:[%s94 + $0x18] sm:$0xff]
    %v452 = vld [vmem:[%s94 + $0x20] sm:$0xff]
    %v453 = vld [vmem:[%s94 + $0x28] sm:$0xff]
    %v454 = vld [vmem:[%s94 + $0x30] sm:$0xff]
    %v455 = vld [vmem:[%s94 + $0x38] sm:$0xff]
    %v456 = vld [vmem:[%s103] sm:$0x1]
    %v458 = vperm.slane %v456, 0
    %v461 = vsel %vm66, %v447, 0
    %463 = vmatpush.msra.mxu0 0.0
    %464 = vmatpush.msra.mxu0 0.0
    %465 = vmatpush.msra.mxu0 0.0
    %466 = vmatpush.msra.mxu0 0.0
    %467 = vmatpush.msra.mxu0 0.0
    %468 = vmatpush.msra.mxu0 0.0
    %469 = vmatpush.msra.mxu0 0.0
    %470 = vmatpush.msra.mxu0 0.0
    %471 = vmatpush.msra.mxu0 %v455
    %472 = vmatpush.msra.mxu0 %v454
    %473 = vmatpush.msra.mxu0 %v453
    %474 = vmatpush.msra.mxu0 %v452
    %475 = vmatpush.msra.mxu0 %v451
    %476 = vmatpush.msra.mxu0 %v450
    %477 = vmatpush.msra.mxu0 %v449
    %478 = vmatpush.msra.mxu0 %v448
    %479 = vmatmul.f32.gmra.mxu0 %v461
    %v480 = vpop.f32.mrf.mxu0
    %v481 = vadd.f32 %v458, %v480
    %482 = vdwg.mxu0
    %v483 = vtanh.pop %v481
    %s484 = scalar_lea.vmem %s1, 10
    %v485 = vld [vmem:[%s484] sm:$0x3]
    %486 = vst.msk [vmem:[#allocation2] sm:$0x3] %vm49, %v485
    %488 = vrot.lane.b32.xlu0 %v440, 32
    %v489 = vpop.permute.xlu0 %488
    %491 = vst.msk [vmem:[#allocation2] sm:$0x3] %vm51, %v489
    %v492 = vld [vmem:[#allocation2] sm:$0x3]
    %v493 = vld [vmem:[%s3] sm:$0xff]
    %v494 = vld [vmem:[%s3 + $0x8] sm:$0xff]
    %v495 = vld [vmem:[%s3 + $0x10] sm:$0xff]
    %v496 = vld [vmem:[%s3 + $0x18] sm:$0xff]
    %v497 = vld [vmem:[%s3 + $0x20] sm:$0xff]
    %v498 = vld [vmem:[%s3 + $0x28] sm:$0xff]
    %v499 = vld [vmem:[%s3 + $0x30] sm:$0xff]
    %v500 = vld [vmem:[%s3 + $0x38] sm:$0xff]
    %v501 = vld [vmem:[%s4] sm:$0x1]
    %v503 = vperm.slane %v501, 0
    %v506 = vsel %vm66, %v492, 0
    %508 = vmatpush.msra.mxu0 0.0
    %509 = vmatpush.msra.mxu0 0.0
    %510 = vmatpush.msra.mxu0 0.0
    %511 = vmatpush.msra.mxu0 0.0
    %512 = vmatpush.msra.mxu0 0.0
    %513 = vmatpush.msra.mxu0 0.0
    %514 = vmatpush.msra.mxu0 0.0
    %515 = vmatpush.msra.mxu0 0.0
    %516 = vmatpush.msra.mxu0 %v500
    %517 = vmatpush.msra.mxu0 %v499
    %518 = vmatpush.msra.mxu0 %v498
    %519 = vmatpush.msra.mxu0 %v497
    %520 = vmatpush.msra.mxu0 %v496
    %521 = vmatpush.msra.mxu0 %v495
    %522 = vmatpush.msra.mxu0 %v494
    %523 = vmatpush.msra.mxu0 %v493
    %524 = vmatmul.f32.gmra.mxu0 %v506
    %v525 = vpop.f32.mrf.mxu0
    %v526 = vadd.f32 %v503, %v525
    %527 = vdwg.mxu0
    %v528 = vtanh.pop %v526
    %529 = vst.msk [vmem:[#allocation2] sm:$0x3] %vm49, %v528
    %531 = vrot.lane.b32.xlu0 %v483, 32
    %v532 = vpop.permute.xlu0 %531
    %534 = vst.msk [vmem:[#allocation2] sm:$0x3] %vm51, %v532
    %v535 = vld [vmem:[#allocation2] sm:$0x3]
    %v536 = vld [vmem:[%s94] sm:$0xff]
    %v537 = vld [vmem:[%s94 + $0x8] sm:$0xff]
    %v538 = vld [vmem:[%s94 + $0x10] sm:$0xff]
    %v539 = vld [vmem:[%s94 + $0x18] sm:$0xff]
    %v540 = vld [vmem:[%s94 + $0x20] sm:$0xff]
    %v541 = vld [vmem:[%s94 + $0x28] sm:$0xff]
    %v542 = vld [vmem:[%s94 + $0x30] sm:$0xff]
    %v543 = vld [vmem:[%s94 + $0x38] sm:$0xff]
    %v544 = vld [vmem:[%s103] sm:$0x1]
    %v546 = vperm.slane %v544, 0
    %v549 = vsel %vm66, %v535, 0
    %551 = vmatpush.msra.mxu0 0.0
    %552 = vmatpush.msra.mxu0 0.0
    %553 = vmatpush.msra.mxu0 0.0
    %554 = vmatpush.msra.mxu0 0.0
    %555 = vmatpush.msra.mxu0 0.0
    %556 = vmatpush.msra.mxu0 0.0
    %557 = vmatpush.msra.mxu0 0.0
    %558 = vmatpush.msra.mxu0 0.0
    %559 = vmatpush.msra.mxu0 %v543
    %560 = vmatpush.msra.mxu0 %v542
    %561 = vmatpush.msra.mxu0 %v541
    %562 = vmatpush.msra.mxu0 %v540
    %563 = vmatpush.msra.mxu0 %v539
    %564 = vmatpush.msra.mxu0 %v538
    %565 = vmatpush.msra.mxu0 %v537
    %566 = vmatpush.msra.mxu0 %v536
    %567 = vmatmul.f32.gmra.mxu0 %v549
    %v568 = vpop.f32.mrf.mxu0
    %v569 = vadd.f32 %v546, %v568
    %570 = vdwg.mxu0
    %v571 = vtanh.pop %v569
    %s572 = scalar_lea.vmem %s1, 12
    %v573 = vld [vmem:[%s572] sm:$0x3]
    %574 = vst.msk [vmem:[#allocation2] sm:$0x3] %vm49, %v573
    %576 = vrot.lane.b32.xlu0 %v528, 32
    %v577 = vpop.permute.xlu0 %576
    %579 = vst.msk [vmem:[#allocation2] sm:$0x3] %vm51, %v577
    %v580 = vld [vmem:[#allocation2] sm:$0x3]
    %v581 = vld [vmem:[%s3] sm:$0xff]
    %v582 = vld [vmem:[%s3 + $0x8] sm:$0xff]
    %v583 = vld [vmem:[%s3 + $0x10] sm:$0xff]
    %v584 = vld [vmem:[%s3 + $0x18] sm:$0xff]
    %v585 = vld [vmem:[%s3 + $0x20] sm:$0xff]
    %v586 = vld [vmem:[%s3 + $0x28] sm:$0xff]
    %v587 = vld [vmem:[%s3 + $0x30] sm:$0xff]
    %v588 = vld [vmem:[%s3 + $0x38] sm:$0xff]
    %v589 = vld [vmem:[%s4] sm:$0x1]
    %v591 = vperm.slane %v589, 0
    %v594 = vsel %vm66, %v580, 0
    %596 = vmatpush.msra.mxu0 0.0
    %597 = vmatpush.msra.mxu0 0.0
    %598 = vmatpush.msra.mxu0 0.0
    %599 = vmatpush.msra.mxu0 0.0
    %600 = vmatpush.msra.mxu0 0.0
    %601 = vmatpush.msra.mxu0 0.0
    %602 = vmatpush.msra.mxu0 0.0
    %603 = vmatpush.msra.mxu0 0.0
    %604 = vmatpush.msra.mxu0 %v588
    %605 = vmatpush.msra.mxu0 %v587
    %606 = vmatpush.msra.mxu0 %v586
    %607 = vmatpush.msra.mxu0 %v585
    %608 = vmatpush.msra.mxu0 %v584
    %609 = vmatpush.msra.mxu0 %v583
    %610 = vmatpush.msra.mxu0 %v582
    %611 = vmatpush.msra.mxu0 %v581
    %612 = vmatmul.f32.gmra.mxu0 %v594
    %v613 = vpop.f32.mrf.mxu0
    %v614 = vadd.f32 %v591, %v613
    %615 = vdwg.mxu0
    %v616 = vtanh.pop %v614
    %617 = vst.msk [vmem:[#allocation2] sm:$0x3] %vm49, %v616
    %619 = vrot.lane.b32.xlu0 %v571, 32
    %v620 = vpop.permute.xlu0 %619
    %622 = vst.msk [vmem:[#allocation2] sm:$0x3] %vm51, %v620
    %v623 = vld [vmem:[#allocation2] sm:$0x3]
    %v624 = vld [vmem:[%s94] sm:$0xff]
    %v625 = vld [vmem:[%s94 + $0x8] sm:$0xff]
    %v626 = vld [vmem:[%s94 + $0x10] sm:$0xff]
    %v627 = vld [vmem:[%s94 + $0x18] sm:$0xff]
    %v628 = vld [vmem:[%s94 + $0x20] sm:$0xff]
    %v629 = vld [vmem:[%s94 + $0x28] sm:$0xff]
    %v630 = vld [vmem:[%s94 + $0x30] sm:$0xff]
    %v631 = vld [vmem:[%s94 + $0x38] sm:$0xff]
    %v632 = vld [vmem:[%s103] sm:$0x1]
    %v634 = vperm.slane %v632, 0
    %v637 = vsel %vm66, %v623, 0
    %639 = vmatpush.msra.mxu0 0.0
    %640 = vmatpush.msra.mxu0 0.0
    %641 = vmatpush.msra.mxu0 0.0
    %642 = vmatpush.msra.mxu0 0.0
    %643 = vmatpush.msra.mxu0 0.0
    %644 = vmatpush.msra.mxu0 0.0
    %645 = vmatpush.msra.mxu0 0.0
    %646 = vmatpush.msra.mxu0 0.0
    %647 = vmatpush.msra.mxu0 %v631
    %648 = vmatpush.msra.mxu0 %v630
    %649 = vmatpush.msra.mxu0 %v629
    %650 = vmatpush.msra.mxu0 %v628
    %651 = vmatpush.msra.mxu0 %v627
    %652 = vmatpush.msra.mxu0 %v626
    %653 = vmatpush.msra.mxu0 %v625
    %654 = vmatpush.msra.mxu0 %v624
    %655 = vmatmul.f32.gmra.mxu0 %v637
    %v656 = vpop.f32.mrf.mxu0
    %v657 = vadd.f32 %v634, %v656
    %658 = vdwg.mxu0
    %v659 = vtanh.pop %v657
    %s660 = scalar_lea.vmem %s1, 14
    %v661 = vld [vmem:[%s660] sm:$0x3]
    %662 = vst.msk [vmem:[#allocation2] sm:$0x3] %vm49, %v661
    %664 = vrot.lane.b32.xlu0 %v616, 32
    %v665 = vpop.permute.xlu0 %664
    %667 = vst.msk [vmem:[#allocation2] sm:$0x3] %vm51, %v665
    %v668 = vld [vmem:[#allocation2] sm:$0x3]
    %v669 = vld [vmem:[%s3] sm:$0xff]
    %v670 = vld [vmem:[%s3 + $0x8] sm:$0xff]
    %v671 = vld [vmem:[%s3 + $0x10] sm:$0xff]
    %v672 = vld [vmem:[%s3 + $0x18] sm:$0xff]
    %v673 = vld [vmem:[%s3 + $0x20] sm:$0xff]
    %v674 = vld [vmem:[%s3 + $0x28] sm:$0xff]
    %v675 = vld [vmem:[%s3 + $0x30] sm:$0xff]
    %v676 = vld [vmem:[%s3 + $0x38] sm:$0xff]
    %v677 = vld [vmem:[%s4] sm:$0x1]
    %v679 = vperm.slane %v677, 0
    %v682 = vsel %vm66, %v668, 0
    %684 = vmatpush.msra.mxu0 0.0
    %685 = vmatpush.msra.mxu0 0.0
    %686 = vmatpush.msra.mxu0 0.0
    %687 = vmatpush.msra.mxu0 0.0
    %688 = vmatpush.msra.mxu0 0.0
    %689 = vmatpush.msra.mxu0 0.0
    %690 = vmatpush.msra.mxu0 0.0
    %691 = vmatpush.msra.mxu0 0.0
    %692 = vmatpush.msra.mxu0 %v676
    %693 = vmatpush.msra.mxu0 %v675
    %694 = vmatpush.msra.mxu0 %v674
    %695 = vmatpush.msra.mxu0 %v673
    %696 = vmatpush.msra.mxu0 %v672
    %697 = vmatpush.msra.mxu0 %v671
    %698 = vmatpush.msra.mxu0 %v670
    %699 = vmatpush.msra.mxu0 %v669
    %700 = vmatmul.f32.gmra.mxu0 %v682
    %v701 = vpop.f32.mrf.mxu0
    %v702 = vadd.f32 %v679, %v701
    %703 = vdwg.mxu0
    %v704 = vtanh.pop %v702
    %705 = vst.msk [vmem:[#allocation2] sm:$0x3] %vm49, %v704
    %707 = vrot.lane.b32.xlu0 %v659, 32
    %v708 = vpop.permute.xlu0 %707
    %710 = vst.msk [vmem:[#allocation2] sm:$0x3] %vm51, %v708
    %v711 = vld [vmem:[#allocation2] sm:$0x3]
    %v712 = vld [vmem:[%s94] sm:$0xff]
    %v713 = vld [vmem:[%s94 + $0x8] sm:$0xff]
    %v714 = vld [vmem:[%s94 + $0x10] sm:$0xff]
    %v715 = vld [vmem:[%s94 + $0x18] sm:$0xff]
    %v716 = vld [vmem:[%s94 + $0x20] sm:$0xff]
    %v717 = vld [vmem:[%s94 + $0x28] sm:$0xff]
    %v718 = vld [vmem:[%s94 + $0x30] sm:$0xff]
    %v719 = vld [vmem:[%s94 + $0x38] sm:$0xff]
    %v720 = vld [vmem:[%s103] sm:$0x1]
    %v722 = vperm.slane %v720, 0
    %v725 = vsel %vm66, %v711, 0
    %727 = vmatpush.msra.mxu0 0.0
    %728 = vmatpush.msra.mxu0 0.0
    %729 = vmatpush.msra.mxu0 0.0
    %730 = vmatpush.msra.mxu0 0.0
    %731 = vmatpush.msra.mxu0 0.0
    %732 = vmatpush.msra.mxu0 0.0
    %733 = vmatpush.msra.mxu0 0.0
    %734 = vmatpush.msra.mxu0 0.0
    %735 = vmatpush.msra.mxu0 %v719
    %736 = vmatpush.msra.mxu0 %v718
    %737 = vmatpush.msra.mxu0 %v717
    %738 = vmatpush.msra.mxu0 %v716
    %739 = vmatpush.msra.mxu0 %v715
    %740 = vmatpush.msra.mxu0 %v714
    %741 = vmatpush.msra.mxu0 %v713
    %742 = vmatpush.msra.mxu0 %v712
    %743 = vmatmul.f32.gmra.mxu0 %v725
    %v744 = vpop.f32.mrf.mxu0
    %v745 = vadd.f32 %v722, %v744
    %746 = vdwg.mxu0
    %v747 = vtanh.pop %v745
    %s748 = scalar_lea.vmem %s1, 16
    %v749 = vld [vmem:[%s748] sm:$0x3]
    %750 = vst.msk [vmem:[#allocation2] sm:$0x3] %vm49, %v749
    %752 = vrot.lane.b32.xlu0 %v704, 32
    %v753 = vpop.permute.xlu0 %752
    %755 = vst.msk [vmem:[#allocation2] sm:$0x3] %vm51, %v753
    %v756 = vld [vmem:[#allocation2] sm:$0x3]
    %v757 = vld [vmem:[%s3] sm:$0xff]
    %v758 = vld [vmem:[%s3 + $0x8] sm:$0xff]
    %v759 = vld [vmem:[%s3 + $0x10] sm:$0xff]
    %v760 = vld [vmem:[%s3 + $0x18] sm:$0xff]
    %v761 = vld [vmem:[%s3 + $0x20] sm:$0xff]
    %v762 = vld [vmem:[%s3 + $0x28] sm:$0xff]
    %v763 = vld [vmem:[%s3 + $0x30] sm:$0xff]
    %v764 = vld [vmem:[%s3 + $0x38] sm:$0xff]
    %v765 = vld [vmem:[%s4] sm:$0x1]
    %v767 = vperm.slane %v765, 0
    %v770 = vsel %vm66, %v756, 0
    %772 = vmatpush.msra.mxu0 0.0
    %773 = vmatpush.msra.mxu0 0.0
    %774 = vmatpush.msra.mxu0 0.0
    %775 = vmatpush.msra.mxu0 0.0
    %776 = vmatpush.msra.mxu0 0.0
    %777 = vmatpush.msra.mxu0 0.0
    %778 = vmatpush.msra.mxu0 0.0
    %779 = vmatpush.msra.mxu0 0.0
    %780 = vmatpush.msra.mxu0 %v764
    %781 = vmatpush.msra.mxu0 %v763
    %782 = vmatpush.msra.mxu0 %v762
    %783 = vmatpush.msra.mxu0 %v761
    %784 = vmatpush.msra.mxu0 %v760
    %785 = vmatpush.msra.mxu0 %v759
    %786 = vmatpush.msra.mxu0 %v758
    %787 = vmatpush.msra.mxu0 %v757
    %788 = vmatmul.f32.gmra.mxu0 %v770
    %v789 = vpop.f32.mrf.mxu0
    %v790 = vadd.f32 %v767, %v789
    %791 = vdwg.mxu0
    %v792 = vtanh.pop %v790
    %793 = vst.msk [vmem:[#allocation2] sm:$0x3] %vm49, %v792
    %795 = vrot.lane.b32.xlu0 %v747, 32
    %v796 = vpop.permute.xlu0 %795
    %798 = vst.msk [vmem:[#allocation2] sm:$0x3] %vm51, %v796
    %v799 = vld [vmem:[#allocation2] sm:$0x3]
    %v800 = vld [vmem:[%s94] sm:$0xff]
    %v801 = vld [vmem:[%s94 + $0x8] sm:$0xff]
    %v802 = vld [vmem:[%s94 + $0x10] sm:$0xff]
    %v803 = vld [vmem:[%s94 + $0x18] sm:$0xff]
    %v804 = vld [vmem:[%s94 + $0x20] sm:$0xff]
    %v805 = vld [vmem:[%s94 + $0x28] sm:$0xff]
    %v806 = vld [vmem:[%s94 + $0x30] sm:$0xff]
    %v807 = vld [vmem:[%s94 + $0x38] sm:$0xff]
    %v808 = vld [vmem:[%s103] sm:$0x1]
    %v810 = vperm.slane %v808, 0
    %v813 = vsel %vm66, %v799, 0
    %815 = vmatpush.msra.mxu0 0.0
    %816 = vmatpush.msra.mxu0 0.0
    %817 = vmatpush.msra.mxu0 0.0
    %818 = vmatpush.msra.mxu0 0.0
    %819 = vmatpush.msra.mxu0 0.0
    %820 = vmatpush.msra.mxu0 0.0
    %821 = vmatpush.msra.mxu0 0.0
    %822 = vmatpush.msra.mxu0 0.0
    %823 = vmatpush.msra.mxu0 %v807
    %824 = vmatpush.msra.mxu0 %v806
    %825 = vmatpush.msra.mxu0 %v805
    %826 = vmatpush.msra.mxu0 %v804
    %827 = vmatpush.msra.mxu0 %v803
    %828 = vmatpush.msra.mxu0 %v802
    %829 = vmatpush.msra.mxu0 %v801
    %830 = vmatpush.msra.mxu0 %v800
    %831 = vmatmul.f32.gmra.mxu0 %v813
    %v832 = vpop.f32.mrf.mxu0
    %v833 = vadd.f32 %v810, %v832
    %834 = vdwg.mxu0
    %v835 = vtanh.pop %v833
    %s836 = scalar_lea.vmem %s1, 18
    %v837 = vld [vmem:[%s836] sm:$0x3]
    %838 = vst.msk [vmem:[#allocation2] sm:$0x3] %vm49, %v837
    %840 = vrot.lane.b32.xlu0 %v792, 32
    %v841 = vpop.permute.xlu0 %840
    %843 = vst.msk [vmem:[#allocation2] sm:$0x3] %vm51, %v841
    %v844 = vld [vmem:[#allocation2] sm:$0x3]
    %v845 = vld [vmem:[%s3] sm:$0xff]
    %v846 = vld [vmem:[%s3 + $0x8] sm:$0xff]
    %v847 = vld [vmem:[%s3 + $0x10] sm:$0xff]
    %v848 = vld [vmem:[%s3 + $0x18] sm:$0xff]
    %v849 = vld [vmem:[%s3 + $0x20] sm:$0xff]
    %v850 = vld [vmem:[%s3 + $0x28] sm:$0xff]
    %v851 = vld [vmem:[%s3 + $0x30] sm:$0xff]
    %v852 = vld [vmem:[%s3 + $0x38] sm:$0xff]
    %v853 = vld [vmem:[%s4] sm:$0x1]
    %v855 = vperm.slane %v853, 0
    %v858 = vsel %vm66, %v844, 0
    %860 = vmatpush.msra.mxu0 0.0
    %861 = vmatpush.msra.mxu0 0.0
    %862 = vmatpush.msra.mxu0 0.0
    %863 = vmatpush.msra.mxu0 0.0
    %864 = vmatpush.msra.mxu0 0.0
    %865 = vmatpush.msra.mxu0 0.0
    %866 = vmatpush.msra.mxu0 0.0
    %867 = vmatpush.msra.mxu0 0.0
    %868 = vmatpush.msra.mxu0 %v852
    %869 = vmatpush.msra.mxu0 %v851
    %870 = vmatpush.msra.mxu0 %v850
    %871 = vmatpush.msra.mxu0 %v849
    %872 = vmatpush.msra.mxu0 %v848
    %873 = vmatpush.msra.mxu0 %v847
    %874 = vmatpush.msra.mxu0 %v846
    %875 = vmatpush.msra.mxu0 %v845
    %876 = vmatmul.f32.gmra.mxu0 %v858
    %v877 = vpop.f32.mrf.mxu0
    %v878 = vadd.f32 %v855, %v877
    %879 = vdwg.mxu0
    %v880 = vtanh.pop %v878
    %881 = vst.msk [vmem:[#allocation2] sm:$0x3] %vm49, %v880
    %883 = vrot.lane.b32.xlu0 %v835, 32
    %v884 = vpop.permute.xlu0 %883
    %886 = vst.msk [vmem:[#allocation2] sm:$0x3] %vm51, %v884
    %887 = vst [vmem:[%s10] sm:$0x3] 0.0
    %v888 = vlaneseq
    %v889 = vand.u32 %v888, 127
    %v890 = vcvt.s32.f32 %v889
    %vm891 = vcmp.lt.f32.partialorder %v890, 16.0
    %v892 = vld [vmem:[%s2] sm:$0x3]
    %893 = vst.msk [vmem:[#allocation2] sm:$0x3] %vm49, %v892
    %895 = vrot.lane.b32.xlu0 %v880, 32
    %v896 = vpop.permute.xlu0 %895
    %898 = vst.msk [vmem:[#allocation2] sm:$0x3] %vm51, %v896
    %v899 = vld [vmem:[#allocation2] sm:$0x3]
    %v900 = vld [vmem:[%s5] sm:$0xff]
    %v901 = vld [vmem:[%s5 + $0x8] sm:$0xff]
    %v902 = vld [vmem:[%s5 + $0x10] sm:$0xff]
    %v903 = vld [vmem:[%s5 + $0x18] sm:$0xff]
    %v904 = vld [vmem:[%s5 + $0x20] sm:$0xff]
    %v905 = vld [vmem:[%s5 + $0x28] sm:$0xff]
    %v906 = vld [vmem:[%s5 + $0x30] sm:$0xff]
    %v907 = vld [vmem:[%s5 + $0x38] sm:$0xff]
    %v908 = vld [vmem:[%s6] sm:$0x1]
    %v910 = vperm.slane %v908, 0
    %v913 = vsel %vm66, %v899, 0
    %915 = vmatpush.msra.mxu0 0.0
    %916 = vmatpush.msra.mxu0 0.0
    %917 = vmatpush.msra.mxu0 0.0
    %918 = vmatpush.msra.mxu0 0.0
    %919 = vmatpush.msra.mxu0 0.0
    %920 = vmatpush.msra.mxu0 0.0
    %921 = vmatpush.msra.mxu0 0.0
    %922 = vmatpush.msra.mxu0 0.0
    %923 = vmatpush.msra.mxu0 %v907
    %924 = vmatpush.msra.mxu0 %v906
    %925 = vmatpush.msra.mxu0 %v905
    %926 = vmatpush.msra.mxu0 %v904
    %927 = vmatpush.msra.mxu0 %v903
    %928 = vmatpush.msra.mxu0 %v902
    %929 = vmatpush.msra.mxu0 %v901
    %930 = vmatpush.msra.mxu0 %v900
    %931 = vmatmul.f32.gmra.mxu0 %v913
    %v932 = vpop.f32.mrf.mxu0
    %v933 = vadd.f32 %v910, %v932
    %934 = vdwg.mxu0
    %v935 = vtanh.pop %v933
    %v936 = vld [vmem:[%s7] sm:$0xff]
    %v937 = vld [vmem:[%s7 + $0x8] sm:$0xff]
    %v938 = vld [vmem:[%s7 + $0x10] sm:$0xff]
    %v939 = vld [vmem:[%s7 + $0x18] sm:$0xff]
    %v940 = vld [vmem:[%s8] sm:$0x1]
    %v942 = vperm.slane %v940, 0
    %vm944 = vcmask 261120
    %v946 = vsel %vm944, %v935, 0
    %948 = vmatpush.msra.mxu0 0.0
    %949 = vmatpush.msra.mxu0 0.0
    %950 = vmatpush.msra.mxu0 0.0
    %951 = vmatpush.msra.mxu0 0.0
    %952 = vmatpush.msra.mxu0 0.0
    %953 = vmatpush.msra.mxu0 0.0
    %954 = vmatpush.msra.mxu0 0.0
    %955 = vmatpush.msra.mxu0 0.0
    %956 = vmatpush.msra.mxu0 0.0
    %957 = vmatpush.msra.mxu0 0.0
    %958 = vmatpush.msra.mxu0 0.0
    %959 = vmatpush.msra.mxu0 0.0
    %960 = vmatpush.msra.mxu0 %v939
    %961 = vmatpush.msra.mxu0 %v938
    %962 = vmatpush.msra.mxu0 %v937
    %963 = vmatpush.msra.mxu0 %v936
    %964 = vmatmul.f32.gmra.mxu0 %v946
    %v965 = vpop.f32.mrf.mxu0
    %v966 = vadd.f32 %v942, %v965
    %967 = vdwg.mxu0
    %s968 = scalar_lea.vmem %s10, 2
    %969 = vst [vmem:[%s968] sm:$0x3] %v966
    %v970 = vsel %vm891, %v966, -1e+30
    %vm971 = vcmask 1041408
    %v972 = vsel %vm971, %v970, -inf
    %973 = vmax.xlane.f32.xlu0 %v972
    %v974 = vpop.xlane.xlu0 %973
    %vm975 = vcmp.eq.f32.partialorder %v970, %v974
    %v976 = vsel %vm975, %v890, 128.0
    %v977 = vsel %vm971, %v976, inf
    %978 = vmin.xlane.f32.xlu0 %v977
    %v979 = vpop.xlane.xlu0 %978
    %vm980 = vcmp.eq.f32.partialorder %v890, %v979
    %v981 = vsel %vm980, 1, 0
    %v982 = vcvt.s32.f32 %v981
    %v983 = vld [vmem:[%s9] sm:$0xff]
    %v984 = vld [vmem:[%s9 + $0x8] sm:$0xff]
    %vm985 = vcmask 130048
    %v987 = vsel %vm985, %v982, 0
    %989 = vmatpush.msra.mxu0 0.0
    %990 = vmatpush.msra.mxu0 0.0
    %991 = vmatpush.msra.mxu0 0.0
    %992 = vmatpush.msra.mxu0 0.0
    %993 = vmatpush.msra.mxu0 0.0
    %994 = vmatpush.msra.mxu0 0.0
    %995 = vmatpush.msra.mxu0 0.0
    %996 = vmatpush.msra.mxu0 0.0
    %997 = vmatpush.msra.mxu0 0.0
    %998 = vmatpush.msra.mxu0 0.0
    %999 = vmatpush.msra.mxu0 0.0
    %1000 = vmatpush.msra.mxu0 0.0
    %1001 = vmatpush.msra.mxu0 0.0
    %1002 = vmatpush.msra.mxu0 0.0
    %1003 = vmatpush.msra.mxu0 %v984
    %1004 = vmatpush.msra.mxu0 %v983
    %1005 = vmatmul.f32.gmra.mxu0 %v987
    %v1006 = vpop.f32.mrf.mxu0
    %v1007 = vadd.f32 0.0, %v1006
    %1008 = vdwg.mxu0
    %s1009 = sld [smem:[#allocation3 + $0x1]]
    %s1010 = scvt.s32.f32 %s1009
    %s1011 = scalar_lea.vmem %s2, 2
    %v1012 = vld [vmem:[%s1011] sm:$0x3]
    %v1013 = vstv %s1010
    %v1014 = vmul.f32 %v1013, %v1012
    %s1015 = ssub.f32 1.0, %s1010
    %v1016 = vstv %s1015
    %v1017 = vmul.f32 %v1016, %v1007
    %v1018 = vadd.f32 %v1014, %v1017
    %1019 = vst.msk [vmem:[#allocation2] sm:$0x3] %vm49, %v1018
    %1020 = vrot.lane.b32.xlu0 %v935, 32
    %v1021 = vpop.permute.xlu0 %1020
    %1023 = vst.msk [vmem:[#allocation2] sm:$0x3] %vm51, %v1021
    %v1024 = vld [vmem:[#allocation2] sm:$0x3]
    %v1025 = vld [vmem:[%s5] sm:$0xff]
    %v1026 = vld [vmem:[%s5 + $0x8] sm:$0xff]
    %v1027 = vld [vmem:[%s5 + $0x10] sm:$0xff]
    %v1028 = vld [vmem:[%s5 + $0x18] sm:$0xff]
    %v1029 = vld [vmem:[%s5 + $0x20] sm:$0xff]
    %v1030 = vld [vmem:[%s5 + $0x28] sm:$0xff]
    %v1031 = vld [vmem:[%s5 + $0x30] sm:$0xff]
    %v1032 = vld [vmem:[%s5 + $0x38] sm:$0xff]
    %v1033 = vld [vmem:[%s6] sm:$0x1]
    %v1035 = vperm.slane %v1033, 0
    %v1038 = vsel %vm66, %v1024, 0
    %1040 = vmatpush.msra.mxu0 0.0
    %1041 = vmatpush.msra.mxu0 0.0
    %1042 = vmatpush.msra.mxu0 0.0
    %1043 = vmatpush.msra.mxu0 0.0
    %1044 = vmatpush.msra.mxu0 0.0
    %1045 = vmatpush.msra.mxu0 0.0
    %1046 = vmatpush.msra.mxu0 0.0
    %1047 = vmatpush.msra.mxu0 0.0
    %1048 = vmatpush.msra.mxu0 %v1032
    %1049 = vmatpush.msra.mxu0 %v1031
    %1050 = vmatpush.msra.mxu0 %v1030
    %1051 = vmatpush.msra.mxu0 %v1029
    %1052 = vmatpush.msra.mxu0 %v1028
    %1053 = vmatpush.msra.mxu0 %v1027
    %1054 = vmatpush.msra.mxu0 %v1026
    %1055 = vmatpush.msra.mxu0 %v1025
    %1056 = vmatmul.f32.gmra.mxu0 %v1038
    %v1057 = vpop.f32.mrf.mxu0
    %v1058 = vadd.f32 %v1035, %v1057
    %1059 = vdwg.mxu0
    %v1060 = vtanh.pop %v1058
    %v1061 = vld [vmem:[%s7] sm:$0xff]
    %v1062 = vld [vmem:[%s7 + $0x8] sm:$0xff]
    %v1063 = vld [vmem:[%s7 + $0x10] sm:$0xff]
    %v1064 = vld [vmem:[%s7 + $0x18] sm:$0xff]
    %v1065 = vld [vmem:[%s8] sm:$0x1]
    %v1067 = vperm.slane %v1065, 0
    %v1070 = vsel %vm944, %v1060, 0
    %1072 = vmatpush.msra.mxu0 0.0
    %1073 = vmatpush.msra.mxu0 0.0
    %1074 = vmatpush.msra.mxu0 0.0
    %1075 = vmatpush.msra.mxu0 0.0
    %1076 = vmatpush.msra.mxu0 0.0
    %1077 = vmatpush.msra.mxu0 0.0
    %1078 = vmatpush.msra.mxu0 0.0
    %1079 = vmatpush.msra.mxu0 0.0
    %1080 = vmatpush.msra.mxu0 0.0
    %1081 = vmatpush.msra.mxu0 0.0
    %1082 = vmatpush.msra.mxu0 0.0
    %1083 = vmatpush.msra.mxu0 0.0
    %1084 = vmatpush.msra.mxu0 %v1064
    %1085 = vmatpush.msra.mxu0 %v1063
    %1086 = vmatpush.msra.mxu0 %v1062
    %1087 = vmatpush.msra.mxu0 %v1061
    %1088 = vmatmul.f32.gmra.mxu0 %v1070
    %v1089 = vpop.f32.mrf.mxu0
    %v1090 = vadd.f32 %v1067, %v1089
    %1091 = vdwg.mxu0
    %s1092 = scalar_lea.vmem %s10, 4
    %1093 = vst [vmem:[%s1092] sm:$0x3] %v1090
    %v1094 = vsel %vm891, %v1090, -1e+30
    %v1095 = vsel %vm971, %v1094, -inf
    %1096 = vmax.xlane.f32.xlu0 %v1095
    %v1097 = vpop.xlane.xlu0 %1096
    %vm1098 = vcmp.eq.f32.partialorder %v1094, %v1097
    %v1099 = vsel %vm1098, %v890, 128.0
    %v1100 = vsel %vm971, %v1099, inf
    %1101 = vmin.xlane.f32.xlu0 %v1100
    %v1102 = vpop.xlane.xlu0 %1101
    %vm1103 = vcmp.eq.f32.partialorder %v890, %v1102
    %v1104 = vsel %vm1103, 1, 0
    %v1105 = vcvt.s32.f32 %v1104
    %v1106 = vld [vmem:[%s9] sm:$0xff]
    %v1107 = vld [vmem:[%s9 + $0x8] sm:$0xff]
    %v1109 = vsel %vm985, %v1105, 0
    %1111 = vmatpush.msra.mxu0 0.0
    %1112 = vmatpush.msra.mxu0 0.0
    %1113 = vmatpush.msra.mxu0 0.0
    %1114 = vmatpush.msra.mxu0 0.0
    %1115 = vmatpush.msra.mxu0 0.0
    %1116 = vmatpush.msra.mxu0 0.0
    %1117 = vmatpush.msra.mxu0 0.0
    %1118 = vmatpush.msra.mxu0 0.0
    %1119 = vmatpush.msra.mxu0 0.0
    %1120 = vmatpush.msra.mxu0 0.0
    %1121 = vmatpush.msra.mxu0 0.0
    %1122 = vmatpush.msra.mxu0 0.0
    %1123 = vmatpush.msra.mxu0 0.0
    %1124 = vmatpush.msra.mxu0 0.0
    %1125 = vmatpush.msra.mxu0 %v1107
    %1126 = vmatpush.msra.mxu0 %v1106
    %1127 = vmatmul.f32.gmra.mxu0 %v1109
    %v1128 = vpop.f32.mrf.mxu0
    %v1129 = vadd.f32 0.0, %v1128
    %1130 = vdwg.mxu0
    %s1131 = sld [smem:[#allocation3 + $0x2]]
    %s1132 = scvt.s32.f32 %s1131
    %s1133 = scalar_lea.vmem %s2, 4
    %v1134 = vld [vmem:[%s1133] sm:$0x3]
    %v1135 = vstv %s1132
    %v1136 = vmul.f32 %v1135, %v1134
    %s1137 = ssub.f32 1.0, %s1132
    %v1138 = vstv %s1137
    %v1139 = vmul.f32 %v1138, %v1129
    %v1140 = vadd.f32 %v1136, %v1139
    %1141 = vst.msk [vmem:[#allocation2] sm:$0x3] %vm49, %v1140
    %1142 = vrot.lane.b32.xlu0 %v1060, 32
    %v1143 = vpop.permute.xlu0 %1142
    %1145 = vst.msk [vmem:[#allocation2] sm:$0x3] %vm51, %v1143
    %v1146 = vld [vmem:[#allocation2] sm:$0x3]
    %v1147 = vld [vmem:[%s5] sm:$0xff]
    %v1148 = vld [vmem:[%s5 + $0x8] sm:$0xff]
    %v1149 = vld [vmem:[%s5 + $0x10] sm:$0xff]
    %v1150 = vld [vmem:[%s5 + $0x18] sm:$0xff]
    %v1151 = vld [vmem:[%s5 + $0x20] sm:$0xff]
    %v1152 = vld [vmem:[%s5 + $0x28] sm:$0xff]
    %v1153 = vld [vmem:[%s5 + $0x30] sm:$0xff]
    %v1154 = vld [vmem:[%s5 + $0x38] sm:$0xff]
    %v1155 = vld [vmem:[%s6] sm:$0x1]
    %v1157 = vperm.slane %v1155, 0
    %v1160 = vsel %vm66, %v1146, 0
    %1162 = vmatpush.msra.mxu0 0.0
    %1163 = vmatpush.msra.mxu0 0.0
    %1164 = vmatpush.msra.mxu0 0.0
    %1165 = vmatpush.msra.mxu0 0.0
    %1166 = vmatpush.msra.mxu0 0.0
    %1167 = vmatpush.msra.mxu0 0.0
    %1168 = vmatpush.msra.mxu0 0.0
    %1169 = vmatpush.msra.mxu0 0.0
    %1170 = vmatpush.msra.mxu0 %v1154
    %1171 = vmatpush.msra.mxu0 %v1153
    %1172 = vmatpush.msra.mxu0 %v1152
    %1173 = vmatpush.msra.mxu0 %v1151
    %1174 = vmatpush.msra.mxu0 %v1150
    %1175 = vmatpush.msra.mxu0 %v1149
    %1176 = vmatpush.msra.mxu0 %v1148
    %1177 = vmatpush.msra.mxu0 %v1147
    %1178 = vmatmul.f32.gmra.mxu0 %v1160
    %v1179 = vpop.f32.mrf.mxu0
    %v1180 = vadd.f32 %v1157, %v1179
    %1181 = vdwg.mxu0
    %v1182 = vtanh.pop %v1180
    %v1183 = vld [vmem:[%s7] sm:$0xff]
    %v1184 = vld [vmem:[%s7 + $0x8] sm:$0xff]
    %v1185 = vld [vmem:[%s7 + $0x10] sm:$0xff]
    %v1186 = vld [vmem:[%s7 + $0x18] sm:$0xff]
    %v1187 = vld [vmem:[%s8] sm:$0x1]
    %v1189 = vperm.slane %v1187, 0
    %v1192 = vsel %vm944, %v1182, 0
    %1194 = vmatpush.msra.mxu0 0.0
    %1195 = vmatpush.msra.mxu0 0.0
    %1196 = vmatpush.msra.mxu0 0.0
    %1197 = vmatpush.msra.mxu0 0.0
    %1198 = vmatpush.msra.mxu0 0.0
    %1199 = vmatpush.msra.mxu0 0.0
    %1200 = vmatpush.msra.mxu0 0.0
    %1201 = vmatpush.msra.mxu0 0.0
    %1202 = vmatpush.msra.mxu0 0.0
    %1203 = vmatpush.msra.mxu0 0.0
    %1204 = vmatpush.msra.mxu0 0.0
    %1205 = vmatpush.msra.mxu0 0.0
    %1206 = vmatpush.msra.mxu0 %v1186
    %1207 = vmatpush.msra.mxu0 %v1185
    %1208 = vmatpush.msra.mxu0 %v1184
    %1209 = vmatpush.msra.mxu0 %v1183
    %1210 = vmatmul.f32.gmra.mxu0 %v1192
    %v1211 = vpop.f32.mrf.mxu0
    %v1212 = vadd.f32 %v1189, %v1211
    %1213 = vdwg.mxu0
    %s1214 = scalar_lea.vmem %s10, 6
    %1215 = vst [vmem:[%s1214] sm:$0x3] %v1212
    %v1216 = vsel %vm891, %v1212, -1e+30
    %v1217 = vsel %vm971, %v1216, -inf
    %1218 = vmax.xlane.f32.xlu0 %v1217
    %v1219 = vpop.xlane.xlu0 %1218
    %vm1220 = vcmp.eq.f32.partialorder %v1216, %v1219
    %v1221 = vsel %vm1220, %v890, 128.0
    %v1222 = vsel %vm971, %v1221, inf
    %1223 = vmin.xlane.f32.xlu0 %v1222
    %v1224 = vpop.xlane.xlu0 %1223
    %vm1225 = vcmp.eq.f32.partialorder %v890, %v1224
    %v1226 = vsel %vm1225, 1, 0
    %v1227 = vcvt.s32.f32 %v1226
    %v1228 = vld [vmem:[%s9] sm:$0xff]
    %v1229 = vld [vmem:[%s9 + $0x8] sm:$0xff]
    %v1231 = vsel %vm985, %v1227, 0
    %1233 = vmatpush.msra.mxu0 0.0
    %1234 = vmatpush.msra.mxu0 0.0
    %1235 = vmatpush.msra.mxu0 0.0
    %1236 = vmatpush.msra.mxu0 0.0
    %1237 = vmatpush.msra.mxu0 0.0
    %1238 = vmatpush.msra.mxu0 0.0
    %1239 = vmatpush.msra.mxu0 0.0
    %1240 = vmatpush.msra.mxu0 0.0
    %1241 = vmatpush.msra.mxu0 0.0
    %1242 = vmatpush.msra.mxu0 0.0
    %1243 = vmatpush.msra.mxu0 0.0
    %1244 = vmatpush.msra.mxu0 0.0
    %1245 = vmatpush.msra.mxu0 0.0
    %1246 = vmatpush.msra.mxu0 0.0
    %1247 = vmatpush.msra.mxu0 %v1229
    %1248 = vmatpush.msra.mxu0 %v1228
    %1249 = vmatmul.f32.gmra.mxu0 %v1231
    %v1250 = vpop.f32.mrf.mxu0
    %v1251 = vadd.f32 0.0, %v1250
    %1252 = vdwg.mxu0
    %s1253 = sld [smem:[#allocation3 + $0x3]]
    %s1254 = scvt.s32.f32 %s1253
    %s1255 = scalar_lea.vmem %s2, 6
    %v1256 = vld [vmem:[%s1255] sm:$0x3]
    %v1257 = vstv %s1254
    %v1258 = vmul.f32 %v1257, %v1256
    %s1259 = ssub.f32 1.0, %s1254
    %v1260 = vstv %s1259
    %v1261 = vmul.f32 %v1260, %v1251
    %v1262 = vadd.f32 %v1258, %v1261
    %1263 = vst.msk [vmem:[#allocation2] sm:$0x3] %vm49, %v1262
    %1264 = vrot.lane.b32.xlu0 %v1182, 32
    %v1265 = vpop.permute.xlu0 %1264
    %1267 = vst.msk [vmem:[#allocation2] sm:$0x3] %vm51, %v1265
    %v1268 = vld [vmem:[#allocation2] sm:$0x3]
    %v1269 = vld [vmem:[%s5] sm:$0xff]
    %v1270 = vld [vmem:[%s5 + $0x8] sm:$0xff]
    %v1271 = vld [vmem:[%s5 + $0x10] sm:$0xff]
    %v1272 = vld [vmem:[%s5 + $0x18] sm:$0xff]
    %v1273 = vld [vmem:[%s5 + $0x20] sm:$0xff]
    %v1274 = vld [vmem:[%s5 + $0x28] sm:$0xff]
    %v1275 = vld [vmem:[%s5 + $0x30] sm:$0xff]
    %v1276 = vld [vmem:[%s5 + $0x38] sm:$0xff]
    %v1277 = vld [vmem:[%s6] sm:$0x1]
    %v1279 = vperm.slane %v1277, 0
    %v1282 = vsel %vm66, %v1268, 0
    %1284 = vmatpush.msra.mxu0 0.0
    %1285 = vmatpush.msra.mxu0 0.0
    %1286 = vmatpush.msra.mxu0 0.0
    %1287 = vmatpush.msra.mxu0 0.0
    %1288 = vmatpush.msra.mxu0 0.0
    %1289 = vmatpush.msra.mxu0 0.0
    %1290 = vmatpush.msra.mxu0 0.0
    %1291 = vmatpush.msra.mxu0 0.0
    %1292 = vmatpush.msra.mxu0 %v1276
    %1293 = vmatpush.msra.mxu0 %v1275
    %1294 = vmatpush.msra.mxu0 %v1274
    %1295 = vmatpush.msra.mxu0 %v1273
    %1296 = vmatpush.msra.mxu0 %v1272
    %1297 = vmatpush.msra.mxu0 %v1271
    %1298 = vmatpush.msra.mxu0 %v1270
    %1299 = vmatpush.msra.mxu0 %v1269
    %1300 = vmatmul.f32.gmra.mxu0 %v1282
    %v1301 = vpop.f32.mrf.mxu0
    %v1302 = vadd.f32 %v1279, %v1301
    %1303 = vdwg.mxu0
    %v1304 = vtanh.pop %v1302
    %v1305 = vld [vmem:[%s7] sm:$0xff]
    %v1306 = vld [vmem:[%s7 + $0x8] sm:$0xff]
    %v1307 = vld [vmem:[%s7 + $0x10] sm:$0xff]
    %v1308 = vld [vmem:[%s7 + $0x18] sm:$0xff]
    %v1309 = vld [vmem:[%s8] sm:$0x1]
    %v1311 = vperm.slane %v1309, 0
    %v1314 = vsel %vm944, %v1304, 0
    %1316 = vmatpush.msra.mxu0 0.0
    %1317 = vmatpush.msra.mxu0 0.0
    %1318 = vmatpush.msra.mxu0 0.0
    %1319 = vmatpush.msra.mxu0 0.0
    %1320 = vmatpush.msra.mxu0 0.0
    %1321 = vmatpush.msra.mxu0 0.0
    %1322 = vmatpush.msra.mxu0 0.0
    %1323 = vmatpush.msra.mxu0 0.0
    %1324 = vmatpush.msra.mxu0 0.0
    %1325 = vmatpush.msra.mxu0 0.0
    %1326 = vmatpush.msra.mxu0 0.0
    %1327 = vmatpush.msra.mxu0 0.0
    %1328 = vmatpush.msra.mxu0 %v1308
    %1329 = vmatpush.msra.mxu0 %v1307
    %1330 = vmatpush.msra.mxu0 %v1306
    %1331 = vmatpush.msra.mxu0 %v1305
    %1332 = vmatmul.f32.gmra.mxu0 %v1314
    %v1333 = vpop.f32.mrf.mxu0
    %v1334 = vadd.f32 %v1311, %v1333
    %1335 = vdwg.mxu0
    %s1336 = scalar_lea.vmem %s10, 8
    %1337 = vst [vmem:[%s1336] sm:$0x3] %v1334
    %v1338 = vsel %vm891, %v1334, -1e+30
    %v1339 = vsel %vm971, %v1338, -inf
    %1340 = vmax.xlane.f32.xlu0 %v1339
    %v1341 = vpop.xlane.xlu0 %1340
    %vm1342 = vcmp.eq.f32.partialorder %v1338, %v1341
    %v1343 = vsel %vm1342, %v890, 128.0
    %v1344 = vsel %vm971, %v1343, inf
    %1345 = vmin.xlane.f32.xlu0 %v1344
    %v1346 = vpop.xlane.xlu0 %1345
    %vm1347 = vcmp.eq.f32.partialorder %v890, %v1346
    %v1348 = vsel %vm1347, 1, 0
    %v1349 = vcvt.s32.f32 %v1348
    %v1350 = vld [vmem:[%s9] sm:$0xff]
    %v1351 = vld [vmem:[%s9 + $0x8] sm:$0xff]
    %v1353 = vsel %vm985, %v1349, 0
    %1355 = vmatpush.msra.mxu0 0.0
    %1356 = vmatpush.msra.mxu0 0.0
    %1357 = vmatpush.msra.mxu0 0.0
    %1358 = vmatpush.msra.mxu0 0.0
    %1359 = vmatpush.msra.mxu0 0.0
    %1360 = vmatpush.msra.mxu0 0.0
    %1361 = vmatpush.msra.mxu0 0.0
    %1362 = vmatpush.msra.mxu0 0.0
    %1363 = vmatpush.msra.mxu0 0.0
    %1364 = vmatpush.msra.mxu0 0.0
    %1365 = vmatpush.msra.mxu0 0.0
    %1366 = vmatpush.msra.mxu0 0.0
    %1367 = vmatpush.msra.mxu0 0.0
    %1368 = vmatpush.msra.mxu0 0.0
    %1369 = vmatpush.msra.mxu0 %v1351
    %1370 = vmatpush.msra.mxu0 %v1350
    %1371 = vmatmul.f32.gmra.mxu0 %v1353
    %v1372 = vpop.f32.mrf.mxu0
    %v1373 = vadd.f32 0.0, %v1372
    %1374 = vdwg.mxu0
    %s1375 = sld [smem:[#allocation3 + $0x4]]
    %s1376 = scvt.s32.f32 %s1375
    %s1377 = scalar_lea.vmem %s2, 8
    %v1378 = vld [vmem:[%s1377] sm:$0x3]
    %v1379 = vstv %s1376
    %v1380 = vmul.f32 %v1379, %v1378
    %s1381 = ssub.f32 1.0, %s1376
    %v1382 = vstv %s1381
    %v1383 = vmul.f32 %v1382, %v1373
    %v1384 = vadd.f32 %v1380, %v1383
    %1385 = vst.msk [vmem:[#allocation2] sm:$0x3] %vm49, %v1384
    %1386 = vrot.lane.b32.xlu0 %v1304, 32
    %v1387 = vpop.permute.xlu0 %1386
    %1389 = vst.msk [vmem:[#allocation2] sm:$0x3] %vm51, %v1387
    %v1390 = vld [vmem:[#allocation2] sm:$0x3]
    %v1391 = vld [vmem:[%s5] sm:$0xff]
    %v1392 = vld [vmem:[%s5 + $0x8] sm:$0xff]
    %v1393 = vld [vmem:[%s5 + $0x10] sm:$0xff]
    %v1394 = vld [vmem:[%s5 + $0x18] sm:$0xff]
    %v1395 = vld [vmem:[%s5 + $0x20] sm:$0xff]
    %v1396 = vld [vmem:[%s5 + $0x28] sm:$0xff]
    %v1397 = vld [vmem:[%s5 + $0x30] sm:$0xff]
    %v1398 = vld [vmem:[%s5 + $0x38] sm:$0xff]
    %v1399 = vld [vmem:[%s6] sm:$0x1]
    %v1401 = vperm.slane %v1399, 0
    %v1404 = vsel %vm66, %v1390, 0
    %1406 = vmatpush.msra.mxu0 0.0
    %1407 = vmatpush.msra.mxu0 0.0
    %1408 = vmatpush.msra.mxu0 0.0
    %1409 = vmatpush.msra.mxu0 0.0
    %1410 = vmatpush.msra.mxu0 0.0
    %1411 = vmatpush.msra.mxu0 0.0
    %1412 = vmatpush.msra.mxu0 0.0
    %1413 = vmatpush.msra.mxu0 0.0
    %1414 = vmatpush.msra.mxu0 %v1398
    %1415 = vmatpush.msra.mxu0 %v1397
    %1416 = vmatpush.msra.mxu0 %v1396
    %1417 = vmatpush.msra.mxu0 %v1395
    %1418 = vmatpush.msra.mxu0 %v1394
    %1419 = vmatpush.msra.mxu0 %v1393
    %1420 = vmatpush.msra.mxu0 %v1392
    %1421 = vmatpush.msra.mxu0 %v1391
    %1422 = vmatmul.f32.gmra.mxu0 %v1404
    %v1423 = vpop.f32.mrf.mxu0
    %v1424 = vadd.f32 %v1401, %v1423
    %1425 = vdwg.mxu0
    %v1426 = vtanh.pop %v1424
    %v1427 = vld [vmem:[%s7] sm:$0xff]
    %v1428 = vld [vmem:[%s7 + $0x8] sm:$0xff]
    %v1429 = vld [vmem:[%s7 + $0x10] sm:$0xff]
    %v1430 = vld [vmem:[%s7 + $0x18] sm:$0xff]
    %v1431 = vld [vmem:[%s8] sm:$0x1]
    %v1433 = vperm.slane %v1431, 0
    %v1436 = vsel %vm944, %v1426, 0
    %1438 = vmatpush.msra.mxu0 0.0
    %1439 = vmatpush.msra.mxu0 0.0
    %1440 = vmatpush.msra.mxu0 0.0
    %1441 = vmatpush.msra.mxu0 0.0
    %1442 = vmatpush.msra.mxu0 0.0
    %1443 = vmatpush.msra.mxu0 0.0
    %1444 = vmatpush.msra.mxu0 0.0
    %1445 = vmatpush.msra.mxu0 0.0
    %1446 = vmatpush.msra.mxu0 0.0
    %1447 = vmatpush.msra.mxu0 0.0
    %1448 = vmatpush.msra.mxu0 0.0
    %1449 = vmatpush.msra.mxu0 0.0
    %1450 = vmatpush.msra.mxu0 %v1430
    %1451 = vmatpush.msra.mxu0 %v1429
    %1452 = vmatpush.msra.mxu0 %v1428
    %1453 = vmatpush.msra.mxu0 %v1427
    %1454 = vmatmul.f32.gmra.mxu0 %v1436
    %v1455 = vpop.f32.mrf.mxu0
    %v1456 = vadd.f32 %v1433, %v1455
    %1457 = vdwg.mxu0
    %s1458 = scalar_lea.vmem %s10, 10
    %1459 = vst [vmem:[%s1458] sm:$0x3] %v1456
    %v1460 = vsel %vm891, %v1456, -1e+30
    %v1461 = vsel %vm971, %v1460, -inf
    %1462 = vmax.xlane.f32.xlu0 %v1461
    %v1463 = vpop.xlane.xlu0 %1462
    %vm1464 = vcmp.eq.f32.partialorder %v1460, %v1463
    %v1465 = vsel %vm1464, %v890, 128.0
    %v1466 = vsel %vm971, %v1465, inf
    %1467 = vmin.xlane.f32.xlu0 %v1466
    %v1468 = vpop.xlane.xlu0 %1467
    %vm1469 = vcmp.eq.f32.partialorder %v890, %v1468
    %v1470 = vsel %vm1469, 1, 0
    %v1471 = vcvt.s32.f32 %v1470
    %v1472 = vld [vmem:[%s9] sm:$0xff]
    %v1473 = vld [vmem:[%s9 + $0x8] sm:$0xff]
    %v1475 = vsel %vm985, %v1471, 0
    %1477 = vmatpush.msra.mxu0 0.0
    %1478 = vmatpush.msra.mxu0 0.0
    %1479 = vmatpush.msra.mxu0 0.0
    %1480 = vmatpush.msra.mxu0 0.0
    %1481 = vmatpush.msra.mxu0 0.0
    %1482 = vmatpush.msra.mxu0 0.0
    %1483 = vmatpush.msra.mxu0 0.0
    %1484 = vmatpush.msra.mxu0 0.0
    %1485 = vmatpush.msra.mxu0 0.0
    %1486 = vmatpush.msra.mxu0 0.0
    %1487 = vmatpush.msra.mxu0 0.0
    %1488 = vmatpush.msra.mxu0 0.0
    %1489 = vmatpush.msra.mxu0 0.0
    %1490 = vmatpush.msra.mxu0 0.0
    %1491 = vmatpush.msra.mxu0 %v1473
    %1492 = vmatpush.msra.mxu0 %v1472
    %1493 = vmatmul.f32.gmra.mxu0 %v1475
    %v1494 = vpop.f32.mrf.mxu0
    %v1495 = vadd.f32 0.0, %v1494
    %1496 = vdwg.mxu0
    %s1497 = sld [smem:[#allocation3 + $0x5]]
    %s1498 = scvt.s32.f32 %s1497
    %s1499 = scalar_lea.vmem %s2, 10
    %v1500 = vld [vmem:[%s1499] sm:$0x3]
    %v1501 = vstv %s1498
    %v1502 = vmul.f32 %v1501, %v1500
    %s1503 = ssub.f32 1.0, %s1498
    %v1504 = vstv %s1503
    %v1505 = vmul.f32 %v1504, %v1495
    %v1506 = vadd.f32 %v1502, %v1505
    %1507 = vst.msk [vmem:[#allocation2] sm:$0x3] %vm49, %v1506
    %1508 = vrot.lane.b32.xlu0 %v1426, 32
    %v1509 = vpop.permute.xlu0 %1508
    %1511 = vst.msk [vmem:[#allocation2] sm:$0x3] %vm51, %v1509
    %v1512 = vld [vmem:[#allocation2] sm:$0x3]
    %v1513 = vld [vmem:[%s5] sm:$0xff]
    %v1514 = vld [vmem:[%s5 + $0x8] sm:$0xff]
    %v1515 = vld [vmem:[%s5 + $0x10] sm:$0xff]
    %v1516 = vld [vmem:[%s5 + $0x18] sm:$0xff]
    %v1517 = vld [vmem:[%s5 + $0x20] sm:$0xff]
    %v1518 = vld [vmem:[%s5 + $0x28] sm:$0xff]
    %v1519 = vld [vmem:[%s5 + $0x30] sm:$0xff]
    %v1520 = vld [vmem:[%s5 + $0x38] sm:$0xff]
    %v1521 = vld [vmem:[%s6] sm:$0x1]
    %v1523 = vperm.slane %v1521, 0
    %v1526 = vsel %vm66, %v1512, 0
    %1528 = vmatpush.msra.mxu0 0.0
    %1529 = vmatpush.msra.mxu0 0.0
    %1530 = vmatpush.msra.mxu0 0.0
    %1531 = vmatpush.msra.mxu0 0.0
    %1532 = vmatpush.msra.mxu0 0.0
    %1533 = vmatpush.msra.mxu0 0.0
    %1534 = vmatpush.msra.mxu0 0.0
    %1535 = vmatpush.msra.mxu0 0.0
    %1536 = vmatpush.msra.mxu0 %v1520
    %1537 = vmatpush.msra.mxu0 %v1519
    %1538 = vmatpush.msra.mxu0 %v1518
    %1539 = vmatpush.msra.mxu0 %v1517
    %1540 = vmatpush.msra.mxu0 %v1516
    %1541 = vmatpush.msra.mxu0 %v1515
    %1542 = vmatpush.msra.mxu0 %v1514
    %1543 = vmatpush.msra.mxu0 %v1513
    %1544 = vmatmul.f32.gmra.mxu0 %v1526
    %v1545 = vpop.f32.mrf.mxu0
    %v1546 = vadd.f32 %v1523, %v1545
    %1547 = vdwg.mxu0
    %v1548 = vtanh.pop %v1546
    %v1549 = vld [vmem:[%s7] sm:$0xff]
    %v1550 = vld [vmem:[%s7 + $0x8] sm:$0xff]
    %v1551 = vld [vmem:[%s7 + $0x10] sm:$0xff]
    %v1552 = vld [vmem:[%s7 + $0x18] sm:$0xff]
    %v1553 = vld [vmem:[%s8] sm:$0x1]
    %v1555 = vperm.slane %v1553, 0
    %v1558 = vsel %vm944, %v1548, 0
    %1560 = vmatpush.msra.mxu0 0.0
    %1561 = vmatpush.msra.mxu0 0.0
    %1562 = vmatpush.msra.mxu0 0.0
    %1563 = vmatpush.msra.mxu0 0.0
    %1564 = vmatpush.msra.mxu0 0.0
    %1565 = vmatpush.msra.mxu0 0.0
    %1566 = vmatpush.msra.mxu0 0.0
    %1567 = vmatpush.msra.mxu0 0.0
    %1568 = vmatpush.msra.mxu0 0.0
    %1569 = vmatpush.msra.mxu0 0.0
    %1570 = vmatpush.msra.mxu0 0.0
    %1571 = vmatpush.msra.mxu0 0.0
    %1572 = vmatpush.msra.mxu0 %v1552
    %1573 = vmatpush.msra.mxu0 %v1551
    %1574 = vmatpush.msra.mxu0 %v1550
    %1575 = vmatpush.msra.mxu0 %v1549
    %1576 = vmatmul.f32.gmra.mxu0 %v1558
    %v1577 = vpop.f32.mrf.mxu0
    %v1578 = vadd.f32 %v1555, %v1577
    %1579 = vdwg.mxu0
    %s1580 = scalar_lea.vmem %s10, 12
    %1581 = vst [vmem:[%s1580] sm:$0x3] %v1578
    %v1582 = vsel %vm891, %v1578, -1e+30
    %v1583 = vsel %vm971, %v1582, -inf
    %1584 = vmax.xlane.f32.xlu0 %v1583
    %v1585 = vpop.xlane.xlu0 %1584
    %vm1586 = vcmp.eq.f32.partialorder %v1582, %v1585
    %v1587 = vsel %vm1586, %v890, 128.0
    %v1588 = vsel %vm971, %v1587, inf
    %1589 = vmin.xlane.f32.xlu0 %v1588
    %v1590 = vpop.xlane.xlu0 %1589
    %vm1591 = vcmp.eq.f32.partialorder %v890, %v1590
    %v1592 = vsel %vm1591, 1, 0
    %v1593 = vcvt.s32.f32 %v1592
    %v1594 = vld [vmem:[%s9] sm:$0xff]
    %v1595 = vld [vmem:[%s9 + $0x8] sm:$0xff]
    %v1597 = vsel %vm985, %v1593, 0
    %1599 = vmatpush.msra.mxu0 0.0
    %1600 = vmatpush.msra.mxu0 0.0
    %1601 = vmatpush.msra.mxu0 0.0
    %1602 = vmatpush.msra.mxu0 0.0
    %1603 = vmatpush.msra.mxu0 0.0
    %1604 = vmatpush.msra.mxu0 0.0
    %1605 = vmatpush.msra.mxu0 0.0
    %1606 = vmatpush.msra.mxu0 0.0
    %1607 = vmatpush.msra.mxu0 0.0
    %1608 = vmatpush.msra.mxu0 0.0
    %1609 = vmatpush.msra.mxu0 0.0
    %1610 = vmatpush.msra.mxu0 0.0
    %1611 = vmatpush.msra.mxu0 0.0
    %1612 = vmatpush.msra.mxu0 0.0
    %1613 = vmatpush.msra.mxu0 %v1595
    %1614 = vmatpush.msra.mxu0 %v1594
    %1615 = vmatmul.f32.gmra.mxu0 %v1597
    %v1616 = vpop.f32.mrf.mxu0
    %v1617 = vadd.f32 0.0, %v1616
    %1618 = vdwg.mxu0
    %s1619 = sld [smem:[#allocation3 + $0x6]]
    %s1620 = scvt.s32.f32 %s1619
    %s1621 = scalar_lea.vmem %s2, 12
    %v1622 = vld [vmem:[%s1621] sm:$0x3]
    %v1623 = vstv %s1620
    %v1624 = vmul.f32 %v1623, %v1622
    %s1625 = ssub.f32 1.0, %s1620
    %v1626 = vstv %s1625
    %v1627 = vmul.f32 %v1626, %v1617
    %v1628 = vadd.f32 %v1624, %v1627
    %1629 = vst.msk [vmem:[#allocation2] sm:$0x3] %vm49, %v1628
    %1630 = vrot.lane.b32.xlu0 %v1548, 32
    %v1631 = vpop.permute.xlu0 %1630
    %1633 = vst.msk [vmem:[#allocation2] sm:$0x3] %vm51, %v1631
    %v1634 = vld [vmem:[#allocation2] sm:$0x3]
    %v1635 = vld [vmem:[%s5] sm:$0xff]
    %v1636 = vld [vmem:[%s5 + $0x8] sm:$0xff]
    %v1637 = vld [vmem:[%s5 + $0x10] sm:$0xff]
    %v1638 = vld [vmem:[%s5 + $0x18] sm:$0xff]
    %v1639 = vld [vmem:[%s5 + $0x20] sm:$0xff]
    %v1640 = vld [vmem:[%s5 + $0x28] sm:$0xff]
    %v1641 = vld [vmem:[%s5 + $0x30] sm:$0xff]
    %v1642 = vld [vmem:[%s5 + $0x38] sm:$0xff]
    %v1643 = vld [vmem:[%s6] sm:$0x1]
    %v1645 = vperm.slane %v1643, 0
    %v1648 = vsel %vm66, %v1634, 0
    %1650 = vmatpush.msra.mxu0 0.0
    %1651 = vmatpush.msra.mxu0 0.0
    %1652 = vmatpush.msra.mxu0 0.0
    %1653 = vmatpush.msra.mxu0 0.0
    %1654 = vmatpush.msra.mxu0 0.0
    %1655 = vmatpush.msra.mxu0 0.0
    %1656 = vmatpush.msra.mxu0 0.0
    %1657 = vmatpush.msra.mxu0 0.0
    %1658 = vmatpush.msra.mxu0 %v1642
    %1659 = vmatpush.msra.mxu0 %v1641
    %1660 = vmatpush.msra.mxu0 %v1640
    %1661 = vmatpush.msra.mxu0 %v1639
    %1662 = vmatpush.msra.mxu0 %v1638
    %1663 = vmatpush.msra.mxu0 %v1637
    %1664 = vmatpush.msra.mxu0 %v1636
    %1665 = vmatpush.msra.mxu0 %v1635
    %1666 = vmatmul.f32.gmra.mxu0 %v1648
    %v1667 = vpop.f32.mrf.mxu0
    %v1668 = vadd.f32 %v1645, %v1667
    %1669 = vdwg.mxu0
    %v1670 = vtanh.pop %v1668
    %v1671 = vld [vmem:[%s7] sm:$0xff]
    %v1672 = vld [vmem:[%s7 + $0x8] sm:$0xff]
    %v1673 = vld [vmem:[%s7 + $0x10] sm:$0xff]
    %v1674 = vld [vmem:[%s7 + $0x18] sm:$0xff]
    %v1675 = vld [vmem:[%s8] sm:$0x1]
    %v1677 = vperm.slane %v1675, 0
    %v1680 = vsel %vm944, %v1670, 0
    %1682 = vmatpush.msra.mxu0 0.0
    %1683 = vmatpush.msra.mxu0 0.0
    %1684 = vmatpush.msra.mxu0 0.0
    %1685 = vmatpush.msra.mxu0 0.0
    %1686 = vmatpush.msra.mxu0 0.0
    %1687 = vmatpush.msra.mxu0 0.0
    %1688 = vmatpush.msra.mxu0 0.0
    %1689 = vmatpush.msra.mxu0 0.0
    %1690 = vmatpush.msra.mxu0 0.0
    %1691 = vmatpush.msra.mxu0 0.0
    %1692 = vmatpush.msra.mxu0 0.0
    %1693 = vmatpush.msra.mxu0 0.0
    %1694 = vmatpush.msra.mxu0 %v1674
    %1695 = vmatpush.msra.mxu0 %v1673
    %1696 = vmatpush.msra.mxu0 %v1672
    %1697 = vmatpush.msra.mxu0 %v1671
    %1698 = vmatmul.f32.gmra.mxu0 %v1680
    %v1699 = vpop.f32.mrf.mxu0
    %v1700 = vadd.f32 %v1677, %v1699
    %1701 = vdwg.mxu0
    %s1702 = scalar_lea.vmem %s10, 14
    %1703 = vst [vmem:[%s1702] sm:$0x3] %v1700
    // Predicated region
    $region46: #{seq2seq_pallas.1} parent=1 // pred_check
      _
    $region47: #{seq2seq_pallas.1} parent=1 // pred_check_branch
      %1705 = sbr.rel (0) target = $region49
    $region48: #{seq2seq_pallas.1} parent=1 // pred_region
      _
    $region49: #{seq2seq_pallas.1} parent=1 // pred_fallthru
      _
    // Predicated region
    $region50: #{seq2seq_pallas.1} parent=1 // pred_check
      _
    $region51: #{seq2seq_pallas.1} parent=1 // pred_check_branch
      %1707 = sbr.rel (0) target = $region53
    $region52: #{seq2seq_pallas.1} parent=1 // pred_region
      _
    $region53: #{seq2seq_pallas.1} parent=1 // pred_fallthru
      _
    %1708 = vsyncpa [#allocation4], 1

</llo_original>
